<compile_context>
chip_gen: v7x
topology: tpu7x:2x2x1
jax: 0.10.0
libtpu: 0.0.40
codegen_flags: <defaults>
</compile_context>

<pallas_src>
import functools
import math

import jax
import jax.numpy as jnp
from jax.experimental import pallas as pl
from jax.experimental.pallas import tpu as pltpu

LANE = 128


# ---------------------------------------------------------------------------
# small helpers
# ---------------------------------------------------------------------------
def _round_up(n, m):
    return ((n + m - 1) // m) * m


def _pad2d(a, rows, cols):
    return jnp.pad(a, ((0, rows - a.shape[0]), (0, cols - a.shape[1])))


def _vmem_limit(est_bytes):
    # 2x margin, floored at 4 MiB, capped at 48 MiB (headroom on v7x 64 MiB).
    return int(min(48 * 2**20, max(4 * 2**20, 2 * est_bytes)))


def _gelu_tanh(x):
    # TODO(synk): nn.GELU default is the exact erf form; the tanh approximation
    # (max abs error ~1e-3) is used in-kernel to stay on well-supported Mosaic
    # transcendentals (tanh on the EUP).
    c = 0.7978845608028654  # sqrt(2/pi)
    return 0.5 * x * (1.0 + jnp.tanh(c * (x + 0.044715 * x * x * x)))


# ---------------------------------------------------------------------------
# fused (LayerNorm?) -> matmul -> (+bias) -> (activation?) -> (+residual?)
# ---------------------------------------------------------------------------
def _make_fused_linear_kernel(has_ln, n_ln, eps, activation, has_residual):
    def kernel(*refs):
        i = 0
        x_ref = refs[i]; i += 1
        if has_ln:
            g_ref = refs[i]; bln_ref = refs[i + 1]; i += 2
        w_ref = refs[i]; i += 1
        b_ref = refs[i]; i += 1
        if has_residual:
            r_ref = refs[i]; i += 1
        o_ref = refs[i]

        x = x_ref[...].astype(jnp.float32)
        if has_ln:
            # Padded lanes of x are exact zeros, so sum / n_ln and
            # E[x^2] - mean^2 give the exact statistics over the real features.
            inv_n = 1.0 / float(n_ln)
            mean = jnp.sum(x, axis=-1, keepdims=True) * inv_n
            var = jnp.sum(x * x, axis=-1, keepdims=True) * inv_n - mean * mean
            x = (x - mean) * jax.lax.rsqrt(var + eps) * g_ref[...] + bln_ref[...]
        acc = jnp.dot(x, w_ref[...], preferred_element_type=jnp.float32)  # MXU
        acc = acc + b_ref[...]
        if activation == "relu":
            acc = jnp.maximum(acc, 0.0)
        elif activation == "gelu":
            acc = _gelu_tanh(acc)
        if has_residual:
            acc = acc + r_ref[...]
        o_ref[...] = acc.astype(o_ref.dtype)

    return kernel


def fused_linear(x, w, b=None, *, ln=None, n_ln=None, activation="none",
                 residual=None, eps=1e-5, block_rows=512):
    """y = act(LN?(x) @ W + b) [+ residual].

    Returns [rows, cout_p] with cout_p = round_up(cout, 128); columns >= cout
    are exact zeros (W / bias are zero-padded), so callers can keep the
    lane-padded layout alive across the network.  When `ln` is given, x's
    columns >= n_ln must be zero.
    """
    rows, cin = x.shape
    cout = w.shape[1]
    cout_p = _round_up(cout, LANE)
    has_ln = ln is not None
    has_res = residual is not None
    if has_ln:
        assert n_ln is not None
    if has_res:
        assert residual.shape == (rows, cout_p), (residual.shape, rows, cout_p)

    # Row tiling: full-extent single step for small inputs, 8-aligned tiles
    # with pipelined activation DMA otherwise.
    if rows <= block_rows:
        tm, rows_p = rows, rows
        xp, res_p = x, residual
    else:
        tm = block_rows
        rows_p = _round_up(rows, tm)
        xp = _pad2d(x, rows_p, cin)
        res_p = None if residual is None else _pad2d(residual, rows_p, cout_p)

    wp = _pad2d(w.astype(jnp.float32), cin, cout_p)          # zero-pad rows/cols
    if b is None:
        bp = jnp.zeros((1, cout_p), jnp.float32)
    else:
        bp = _pad2d(b.reshape(1, -1).astype(jnp.float32), 1, cout_p)

    operands = [xp]
    in_specs = [pl.BlockSpec((tm, cin), lambda i: (i, 0))]
    if has_ln:
        g, bb = ln
        gp = _pad2d(g.reshape(1, -1).astype(jnp.float32), 1, cin)
        bbp = _pad2d(bb.reshape(1, -1).astype(jnp.float32), 1, cin)
        operands += [gp, bbp]
        in_specs += [pl.BlockSpec((1, cin), lambda i: (0, 0)),
                     pl.BlockSpec((1, cin), lambda i: (0, 0))]
    operands += [wp, bp]
    in_specs += [pl.BlockSpec((cin, cout_p), lambda i: (0, 0)),
                 pl.BlockSpec((1, cout_p), lambda i: (0, 0))]
    if has_res:
        operands.append(res_p)
        in_specs.append(pl.BlockSpec((tm, cout_p), lambda i: (i, 0)))

    est = 4 * (2 * tm * cin + cin * cout_p + cout_p + 4 * cin
               + (2 + 2 * int(has_res)) * tm * cout_p)
    out = pl.pallas_call(
        _make_fused_linear_kernel(has_ln, n_ln, eps, activation, has_res),
        out_shape=jax.ShapeDtypeStruct((rows_p, cout_p), jnp.float32),
        grid=(rows_p // tm,),
        in_specs=in_specs,
        out_specs=pl.BlockSpec((tm, cout_p), lambda i: (i, 0)),
        compiler_params=pltpu.CompilerParams(
            dimension_semantics=("parallel",),
            vmem_limit_bytes=_vmem_limit(est)),
    )(*operands)
    return out if rows_p == rows else out[:rows]


# ---------------------------------------------------------------------------
# attention core: all (batch, head) slices in one kernel call
# ---------------------------------------------------------------------------
def _attn_kernel(q_ref, k_ref, v_ref, o_ref, *, scale):
    q = q_ref[...]
    k = k_ref[...]
    v = v_ref[...]
    s = jnp.einsum("bqd,bkd->bqk", q, k,
                   preferred_element_type=jnp.float32) * scale
    s = s - jnp.max(s, axis=-1, keepdims=True)
    p = jnp.exp(s)
    p = p * pl.reciprocal(jnp.sum(p, axis=-1, keepdims=True), approx=True)
    o_ref[...] = jnp.einsum("bqk,bkd->bqd", p, v,
                            preferred_element_type=jnp.float32
                            ).astype(o_ref.dtype)


def attention_pallas(q, k, v, scale):
    bh, t, dh = q.shape
    est = 4 * (8 * bh * t * dh + 3 * bh * t * t)
    return pl.pallas_call(
        functools.partial(_attn_kernel, scale=scale),
        out_shape=jax.ShapeDtypeStruct((bh, t, dh), jnp.float32),
        grid=(1,),
        in_specs=[pl.BlockSpec((bh, t, dh), lambda i: (0, 0, 0))
                  for _ in range(3)],
        out_specs=pl.BlockSpec((bh, t, dh), lambda i: (0, 0, 0)),
        compiler_params=pltpu.CompilerParams(
            dimension_semantics=("arbitrary",),
            vmem_limit_bytes=_vmem_limit(est)),
    )(q, k, v)


# ---------------------------------------------------------------------------
# final LayerNorm + ClassificationHead (class-token rows only), fully fused
# ---------------------------------------------------------------------------
def _head_kernel(x_ref, g_ref, b_ref, w1_ref, w2_ref, o_ref, *, n_ln, eps):
    x = x_ref[...].astype(jnp.float32)
    inv_n = 1.0 / float(n_ln)
    mean = jnp.sum(x, axis=-1, keepdims=True) * inv_n
    var = jnp.sum(x * x, axis=-1, keepdims=True) * inv_n - mean * mean
    xn = (x - mean) * jax.lax.rsqrt(var + eps) * g_ref[...] + b_ref[...]
    h = jnp.maximum(jnp.dot(xn, w1_ref[...],
                            preferred_element_type=jnp.float32), 0.0)
    o_ref[...] = jnp.dot(h, w2_ref[...],
                         preferred_element_type=jnp.float32).astype(o_ref.dtype)


def lnf_head_pallas(cls_tok, gamma, beta, w1, w2, *, n_ln, eps=1e-5):
    rows, cin = cls_tok.shape                  # [B, E_p], padded lanes zero
    hidden, k = w1.shape[1], w2.shape[1]
    h_p = _round_up(hidden, LANE)
    k_p = _round_up(k, LANE)
    gp = _pad2d(gamma.reshape(1, -1).astype(jnp.float32), 1, cin)
    bp = _pad2d(beta.reshape(1, -1).astype(jnp.float32), 1, cin)
    w1p = _pad2d(w1.astype(jnp.float32), cin, h_p)
    w2p = _pad2d(w2.astype(jnp.float32), h_p, k_p)
    est = 4 * (2 * rows * cin + cin * h_p + h_p * k_p + rows * h_p
               + 2 * rows * k_p + 2 * cin)
    out = pl.pallas_call(
        functools.partial(_head_kernel, n_ln=n_ln, eps=eps),
        out_shape=jax.ShapeDtypeStruct((rows, k_p), jnp.float32),
        grid=(1,),
        in_specs=[pl.BlockSpec((rows, cin), lambda i: (0, 0)),
                  pl.BlockSpec((1, cin), lambda i: (0, 0)),
                  pl.BlockSpec((1, cin), lambda i: (0, 0)),
                  pl.BlockSpec((cin, h_p), lambda i: (0, 0)),
                  pl.BlockSpec((h_p, k_p), lambda i: (0, 0))],
        out_specs=pl.BlockSpec((rows, k_p), lambda i: (0, 0)),
        compiler_params=pltpu.CompilerParams(
            vmem_limit_bytes=_vmem_limit(est)),
    )(cls_tok, gp, bp, w1p, w2p)
    return out[:, :k]


# ---------------------------------------------------------------------------
# ViT forward built on the kernels above (reshape/concat plumbing in JAX)
# ---------------------------------------------------------------------------
def patch_embed_pallas(x_img, conv_w, conv_b, cls_emb, pos_emb, patch, n_embd):
    B, C, H, W = x_img.shape
    hp, wp = H // patch, W // patch
    p = x_img.reshape(B, C, hp, patch, wp, patch)
    p = jnp.transpose(p, (0, 2, 4, 1, 3, 5)).reshape(B * hp * wp,
                                                     C * patch * patch)
    w_mat = jnp.transpose(conv_w.reshape(n_embd, C * patch * patch))
    e_p = _round_up(n_embd, LANE)
    tok = fused_linear(p, w_mat, conv_b).reshape(B, hp * wp, e_p)
    pad = ((0, 0), (0, 0), (0, e_p - n_embd))
    cls = jnp.broadcast_to(jnp.pad(cls_emb, pad), (B, 1, e_p))
    pos = jnp.pad(pos_emb, pad)
    return jnp.concatenate([cls, tok], axis=1) + pos       # padded lanes zero


def transformer_block_pallas(p, x2d, B, T, n_embd, num_heads):
    e_p = x2d.shape[1]
    dh = n_embd // num_heads

    # Fused LN1 + packed QKV projection (single MXU pass, one HBM round trip).
    w_qkv = jnp.concatenate([_pad2d(p["wq"], n_embd, e_p),
                             _pad2d(p["wk"], n_embd, e_p),
                             _pad2d(p["wv"], n_embd, e_p)], axis=1)
    b_qkv = jnp.concatenate([jnp.pad(p["bq"], (0, e_p - n_embd)),
                             jnp.pad(p["bk"], (0, e_p - n_embd)),
                             jnp.pad(p["bv"], (0, e_p - n_embd))])
    qkv = fused_linear(x2d, w_qkv, b_qkv,
                       ln=(p["ln1_g"], p["ln1_b"]), n_ln=n_embd)

    def to_heads(a):
        a = a.reshape(B, T, num_heads, dh)
        return jnp.transpose(a, (0, 2, 1, 3)).reshape(B * num_heads, T, dh)

    q = to_heads(qkv[:, 0:n_embd])
    k = to_heads(qkv[:, e_p:e_p + n_embd])
    v = to_heads(qkv[:, 2 * e_p:2 * e_p + n_embd])
    attn = attention_pallas(q, k, v, 1.0 / math.sqrt(dh))
    attn = jnp.transpose(attn.reshape(B, num_heads, T, dh),
                         (0, 2, 1, 3)).reshape(B * T, n_embd)

    # attention out-projection + residual (fused)
    x2d = fused_linear(attn, p["wo"], p["bo"], residual=x2d)
    # fused LN2 + MLP fc + GELU, then proj + residual (fused)
    h = fused_linear(x2d, p["w_fc"], p["b_fc"],
                     ln=(p["ln2_g"], p["ln2_b"]), n_ln=n_embd,
                     activation="gelu")
    x2d = fused_linear(h, p["w_proj"], p["b_proj"], residual=x2d)
    return x2d


def vit_forward(params, x_img, *, patch, n_embd, num_heads):
    seq = patch_embed_pallas(x_img, params["conv_w"], params["conv_b"],
                             params["cls"], params["pos"], patch, n_embd)
    B, T, e_p = seq.shape
    x2d = seq.reshape(B * T, e_p)
    for p in params["blocks"]:
        x2d = transformer_block_pallas(p, x2d, B, T, n_embd, num_heads)
    # ln_f is row-wise, so applying it to the class-token rows only is exact.
    cls_tok = x2d.reshape(B, T, e_p)[:, 0]
    return lnf_head_pallas(cls_tok, params["lnf_g"], params["lnf_b"],
                           params["head_w1"], params["head_w2"], n_ln=n_embd)


# ---------------------------------------------------------------------------
# pure-JAX reference of the PyTorch forward (f32, exact erf GELU)
# ---------------------------------------------------------------------------
def vit_reference(params, x_img, *, patch, n_embd, num_heads):
    B, C, H, W = x_img.shape
    hp, wp = H // patch, W // patch
    p = x_img.reshape(B, C, hp, patch, wp, patch)
    p = jnp.transpose(p, (0, 2, 4, 1, 3, 5)).reshape(B, hp * wp, -1)
    w_mat = jnp.transpose(params["conv_w"].reshape(n_embd, -1))
    x = p @ w_mat + params["conv_b"]
    cls = jnp.broadcast_to(params["cls"], (B, 1, n_embd))
    x = jnp.concatenate([cls, x], axis=1) + params["pos"]
    T = x.shape[1]
    dh = n_embd // num_heads

    def ln(a, g, b):
        mu = a.mean(-1, keepdims=True)
        var = ((a - mu) ** 2).mean(-1, keepdims=True)
        return (a - mu) / jnp.sqrt(var + 1e-5) * g + b

    for bp in params["blocks"]:
        h = ln(x, bp["ln1_g"], bp["ln1_b"])
        q = jnp.transpose((h @ bp["wq"] + bp["bq"]).reshape(B, T, num_heads, dh), (0, 2, 1, 3))
        k = jnp.transpose((h @ bp["wk"] + bp["bk"]).reshape(B, T, num_heads, dh), (0, 2, 1, 3))
        v = jnp.transpose((h @ bp["wv"] + bp["bv"]).reshape(B, T, num_heads, dh), (0, 2, 1, 3))
        att = (q @ jnp.swapaxes(k, -1, -2)) * (1.0 / math.sqrt(dh))
        att = jax.nn.softmax(att, axis=-1)
        o = jnp.transpose(att @ v, (0, 2, 1, 3)).reshape(B, T, n_embd)
        x = x + (o @ bp["wo"] + bp["bo"])
        h = ln(x, bp["ln2_g"], bp["ln2_b"])
        h = jax.nn.gelu(h @ bp["w_fc"] + bp["b_fc"], approximate=False)
        x = x + (h @ bp["w_proj"] + bp["b_proj"])
    x = ln(x, params["lnf_g"], params["lnf_b"])
    cls_tok = x[:, 0]
    return jnp.maximum(cls_tok @ params["head_w1"], 0.0) @ params["head_w2"]


# ---------------------------------------------------------------------------
if __name__ == "__main__":
    B, C_IN, IMG, PATCH = 2, 4, 16, 4
    E, HEADS, LAYERS, K = 32, 4, 2, 8
    NP = (IMG // PATCH) ** 2
    T = NP + 1

    key = jax.random.PRNGKey(0)
    keys = iter(jax.random.split(key, 40))

    def uni(k_, shape, bound):
        return jax.random.uniform(k_, shape, jnp.float32, -bound, bound)

    fan_conv = C_IN * PATCH * PATCH
    params = {
        "conv_w": uni(next(keys), (E, C_IN, PATCH, PATCH), 1.0 / math.sqrt(fan_conv)),
        "conv_b": uni(next(keys), (E,), 1.0 / math.sqrt(fan_conv)),
        "cls": 0.02 * jax.random.normal(next(keys), (1, 1, E), jnp.float32),
        "pos": 0.02 * jax.random.normal(next(keys), (1, T, E), jnp.float32),
        "lnf_g": jnp.ones((E,), jnp.float32),
        "lnf_b": jnp.zeros((E,), jnp.float32),
        "head_w1": uni(next(keys), (E, 2 * E), 1.0 / math.sqrt(E)),
        "head_w2": uni(next(keys), (2 * E, K), 1.0 / math.sqrt(2 * E)),
        "blocks": [],
    }
    bnd = 1.0 / math.sqrt(E)
    for _ in range(LAYERS):
        params["blocks"].append({
            "ln1_g": jnp.ones((E,), jnp.float32), "ln1_b": jnp.zeros((E,), jnp.float32),
            "ln2_g": jnp.ones((E,), jnp.float32), "ln2_b": jnp.zeros((E,), jnp.float32),
            "wq": uni(next(keys), (E, E), bnd), "bq": uni(next(keys), (E,), bnd),
            "wk": uni(next(keys), (E, E), bnd), "bk": uni(next(keys), (E,), bnd),
            "wv": uni(next(keys), (E, E), bnd), "bv": uni(next(keys), (E,), bnd),
            "wo": uni(next(keys), (E, E), bnd), "bo": uni(next(keys), (E,), bnd),
            "w_fc": uni(next(keys), (E, E), bnd), "b_fc": uni(next(keys), (E,), bnd),
            "w_proj": uni(next(keys), (E, E), bnd), "b_proj": uni(next(keys), (E,), bnd),
        })

    x_img = jax.random.normal(next(keys), (B, C_IN, IMG, IMG), jnp.float32)

    fwd = jax.jit(functools.partial(vit_forward, patch=PATCH, n_embd=E,
                                    num_heads=HEADS))
    logits = jax.block_until_ready(fwd(params, x_img))

    ref = jax.block_until_ready(
        vit_reference(params, x_img, patch=PATCH, n_embd=E, num_heads=HEADS))

    assert logits.shape == (B, K)
    max_err = float(jnp.max(jnp.abs(logits - ref)))
    assert max_err < 1e-1, f"max abs err {max_err}"
    print("KERNEL_OK")
</pallas_src>

<mosaic_0001>
module attributes {stable_mosaic.version = 11 : i64} {
  func.func @kernel(%arg0: i32, %arg1: memref<32x64xf32, #tpu.memory_space<vmem>>, %arg2: memref<64x128xf32, #tpu.memory_space<vmem>>, %arg3: memref<1x128xf32, #tpu.memory_space<vmem>>, %arg4: memref<32x128xf32, #tpu.memory_space<vmem>>) attributes {dimension_semantics = [#tpu.dimension_semantics<parallel>], iteration_bounds = array<i64: 1>, scalar_prefetch = 0 : i64, scratch_operands = 0 : i64, tpu.core_type = #tpu.core_type<tc>, window_params = [{transform_indices = @transform_0, window_bounds = array<i64: 32, 64>}, {pipeline_mode = #tpu.pipeline_mode<synchronous>, transform_indices = @transform_1, window_bounds = array<i64: 64, 128>}, {pipeline_mode = #tpu.pipeline_mode<synchronous>, transform_indices = @transform_2, window_bounds = array<i64: 1, 128>}, {transform_indices = @transform_3, window_bounds = array<i64: 32, 128>}]} {
    %c0 = arith.constant 0 : index
    %c0_0 = arith.constant 0 : index
    %0 = vector.load %arg1[%c0, %c0_0] : memref<32x64xf32, #tpu.memory_space<vmem>>, vector<32x64xf32>
    %c0_1 = arith.constant 0 : index
    %c0_2 = arith.constant 0 : index
    %1 = vector.load %arg2[%c0_1, %c0_2] : memref<64x128xf32, #tpu.memory_space<vmem>>, vector<64x128xf32>
    %cst = arith.constant dense<0.000000e+00> : vector<32x128xf32>
    %2 = tpu.matmul %0, %1, %cst {dimension_numbers = #tpu.dot_dimension_numbers<[1], [0], [0], [1], [0, 0, 1, 1], [], []>} : vector<32x64xf32>, vector<64x128xf32>, vector<32x128xf32> -> vector<32x128xf32>
    %c0_3 = arith.constant 0 : index
    %c0_4 = arith.constant 0 : index
    %3 = vector.load %arg3[%c0_3, %c0_4] : memref<1x128xf32, #tpu.memory_space<vmem>>, vector<1x128xf32>
    %4 = vector.broadcast %3 : vector<1x128xf32> to vector<32x128xf32>
    %5 = arith.addf %2, %4 : vector<32x128xf32>
    %c0_5 = arith.constant 0 : index
    %c0_6 = arith.constant 0 : index
    %6 = vector.load %arg4[%c0_5, %c0_6] : memref<32x128xf32, #tpu.memory_space<vmem>>, vector<32x128xf32>
    tpu.vector_store %arg4[%c0_5, %c0_6], %5 {strides = array<i32>} : memref<32x128xf32, #tpu.memory_space<vmem>>, vector<32x128xf32>,
    return
  }
  func.func @transform_0(%arg0: i32) -> (i32, i32) {
    %c0_i32 = arith.constant 0 : i32
    %c0_i32_0 = arith.constant 0 : i32
    return %arg0, %c0_i32 : i32, i32
  }
  func.func @transform_1(%arg0: i32) -> (i32, i32) {
    %c0_i32 = arith.constant 0 : i32
    %c0_i32_0 = arith.constant 0 : i32
    %c0_i32_1 = arith.constant 0 : i32
    return %c0_i32, %c0_i32_0 : i32, i32
  }
  func.func @transform_2(%arg0: i32) -> (i32, i32) {
    %c0_i32 = arith.constant 0 : i32
    %c0_i32_0 = arith.constant 0 : i32
    %c0_i32_1 = arith.constant 0 : i32
    return %c0_i32, %c0_i32_0 : i32, i32
  }
  func.func @transform_3(%arg0: i32) -> (i32, i32) {
    %c0_i32 = arith.constant 0 : i32
    %c0_i32_0 = arith.constant 0 : i32
    return %arg0, %c0_i32 : i32, i32
  }
}

module attributes {stable_mosaic.version = 11 : i64} {
  func.func @kernel(%arg0: i32, %arg1: memref<34x128xf32, #tpu.memory_space<vmem>>, %arg2: memref<1x128xf32, #tpu.memory_space<vmem>>, %arg3: memref<1x128xf32, #tpu.memory_space<vmem>>, %arg4: memref<128x384xf32, #tpu.memory_space<vmem>>, %arg5: memref<1x384xf32, #tpu.memory_space<vmem>>, %arg6: memref<34x384xf32, #tpu.memory_space<vmem>>) attributes {dimension_semantics = [#tpu.dimension_semantics<parallel>], iteration_bounds = array<i64: 1>, scalar_prefetch = 0 : i64, scratch_operands = 0 : i64, tpu.core_type = #tpu.core_type<tc>, window_params = [{transform_indices = @transform_0, window_bounds = array<i64: 34, 128>}, {pipeline_mode = #tpu.pipeline_mode<synchronous>, transform_indices = @transform_1, window_bounds = array<i64: 1, 128>}, {pipeline_mode = #tpu.pipeline_mode<synchronous>, transform_indices = @transform_2, window_bounds = array<i64: 1, 128>}, {pipeline_mode = #tpu.pipeline_mode<synchronous>, transform_indices = @transform_3, window_bounds = array<i64: 128, 384>}, {pipeline_mode = #tpu.pipeline_mode<synchronous>, transform_indices = @transform_4, window_bounds = array<i64: 1, 384>}, {transform_indices = @transform_5, window_bounds = array<i64: 34, 384>}]} {
    %c0 = arith.constant 0 : index
    %c0_0 = arith.constant 0 : index
    %0 = vector.load %arg1[%c0, %c0_0] : memref<34x128xf32, #tpu.memory_space<vmem>>, vector<34x128xf32>
    %cst = arith.constant dense<0.000000e+00> : vector<34xf32>
    %1 = vector.multi_reduction <add>, %0, %cst [1] : vector<34x128xf32> to vector<34xf32>
    %2 = vector.shape_cast %1 : vector<34xf32> to vector<34x1xf32>
    %cst_1 = arith.constant 3.125000e-02 : f32
    %3 = vector.broadcast %cst_1 : f32 to vector<34x1xf32>
    %4 = arith.mulf %2, %3 : vector<34x1xf32>
    %5 = arith.mulf %0, %0 : vector<34x128xf32>
    %cst_2 = arith.constant dense<0.000000e+00> : vector<34xf32>
    %6 = vector.multi_reduction <add>, %5, %cst_2 [1] : vector<34x128xf32> to vector<34xf32>
    %7 = vector.shape_cast %6 : vector<34xf32> to vector<34x1xf32>
    %cst_3 = arith.constant 3.125000e-02 : f32
    %8 = vector.broadcast %cst_3 : f32 to vector<34x1xf32>
    %9 = arith.mulf %7, %8 : vector<34x1xf32>
    %10 = arith.mulf %4, %4 : vector<34x1xf32>
    %11 = arith.subf %9, %10 : vector<34x1xf32>
    %12 = vector.broadcast %4 : vector<34x1xf32> to vector<34x128xf32>
    %13 = arith.subf %0, %12 : vector<34x128xf32>
    %cst_4 = arith.constant 9.99999974E-6 : f32
    %14 = vector.broadcast %cst_4 : f32 to vector<34x1xf32>
    %15 = arith.addf %11, %14 : vector<34x1xf32>
    %16 = math.rsqrt %15 : vector<34x1xf32>
    %17 = vector.broadcast %16 : vector<34x1xf32> to vector<34x128xf32>
    %18 = arith.mulf %13, %17 : vector<34x128xf32>
    %c0_5 = arith.constant 0 : index
    %c0_6 = arith.constant 0 : index
    %19 = vector.load %arg2[%c0_5, %c0_6] : memref<1x128xf32, #tpu.memory_space<vmem>>, vector<1x128xf32>
    %20 = vector.broadcast %19 : vector<1x128xf32> to vector<34x128xf32>
    %21 = arith.mulf %18, %20 : vector<34x128xf32>
    %c0_7 = arith.constant 0 : index
    %c0_8 = arith.constant 0 : index
    %22 = vector.load %arg3[%c0_7, %c0_8] : memref<1x128xf32, #tpu.memory_space<vmem>>, vector<1x128xf32>
    %23 = vector.broadcast %22 : vector<1x128xf32> to vector<34x128xf32>
    %24 = arith.addf %21, %23 : vector<34x128xf32>
    %c0_9 = arith.constant 0 : index
    %c0_10 = arith.constant 0 : index
    %25 = vector.load %arg4[%c0_9, %c0_10] : memref<128x384xf32, #tpu.memory_space<vmem>>, vector<128x384xf32>
    %cst_11 = arith.constant dense<0.000000e+00> : vector<34x384xf32>
    %26 = tpu.matmul %24, %25, %cst_11 {dimension_numbers = #tpu.dot_dimension_numbers<[1], [0], [0], [1], [0, 0, 1, 1], [], []>} : vector<34x128xf32>, vector<128x384xf32>, vector<34x384xf32> -> vector<34x384xf32>
    %c0_12 = arith.constant 0 : index
    %c0_13 = arith.constant 0 : index
    %27 = vector.load %arg5[%c0_12, %c0_13] : memref<1x384xf32, #tpu.memory_space<vmem>>, vector<1x384xf32>
    %28 = vector.broadcast %27 : vector<1x384xf32> to vector<34x384xf32>
    %29 = arith.addf %26, %28 : vector<34x384xf32>
    %c0_14 = arith.constant 0 : index
    %c0_15 = arith.constant 0 : index
    %30 = vector.load %arg6[%c0_14, %c0_15] : memref<34x384xf32, #tpu.memory_space<vmem>>, vector<34x384xf32>
    tpu.vector_store %arg6[%c0_14, %c0_15], %29 {strides = array<i32>} : memref<34x384xf32, #tpu.memory_space<vmem>>, vector<34x384xf32>,
    return
  }
  func.func @transform_0(%arg0: i32) -> (i32, i32) {
    %c0_i32 = arith.constant 0 : i32
    %c0_i32_0 = arith.constant 0 : i32
    return %arg0, %c0_i32 : i32, i32
  }
  func.func @transform_1(%arg0: i32) -> (i32, i32) {
    %c0_i32 = arith.constant 0 : i32
    %c0_i32_0 = arith.constant 0 : i32
    %c0_i32_1 = arith.constant 0 : i32
    return %c0_i32, %c0_i32_0 : i32, i32
  }
  func.func @transform_2(%arg0: i32) -> (i32, i32) {
    %c0_i32 = arith.constant 0 : i32
    %c0_i32_0 = arith.constant 0 : i32
    %c0_i32_1 = arith.constant 0 : i32
    return %c0_i32, %c0_i32_0 : i32, i32
  }
  func.func @transform_3(%arg0: i32) -> (i32, i32) {
    %c0_i32 = arith.constant 0 : i32
    %c0_i32_0 = arith.constant 0 : i32
    %c0_i32_1 = arith.constant 0 : i32
    return %c0_i32, %c0_i32_0 : i32, i32
  }
  func.func @transform_4(%arg0: i32) -> (i32, i32) {
    %c0_i32 = arith.constant 0 : i32
    %c0_i32_0 = arith.constant 0 : i32
    %c0_i32_1 = arith.constant 0 : i32
    return %c0_i32, %c0_i32_0 : i32, i32
  }
  func.func @transform_5(%arg0: i32) -> (i32, i32) {
    %c0_i32 = arith.constant 0 : i32
    %c0_i32_0 = arith.constant 0 : i32
    return %arg0, %c0_i32 : i32, i32
  }
}

module attributes {stable_mosaic.version = 11 : i64} {
  func.func @_attn_kernel(%arg0: i32, %arg1: memref<8x17x8xf32, #tpu.memory_space<vmem>>, %arg2: memref<8x17x8xf32, #tpu.memory_space<vmem>>, %arg3: memref<8x17x8xf32, #tpu.memory_space<vmem>>, %arg4: memref<8x17x8xf32, #tpu.memory_space<vmem>>) attributes {dimension_semantics = [#tpu.dimension_semantics<arbitrary>], iteration_bounds = array<i64: 1>, scalar_prefetch = 0 : i64, scratch_operands = 0 : i64, tpu.core_type = #tpu.core_type<tc>, window_params = [{pipeline_mode = #tpu.pipeline_mode<synchronous>, transform_indices = @transform_0, window_bounds = array<i64: 8, 17, 8>}, {pipeline_mode = #tpu.pipeline_mode<synchronous>, transform_indices = @transform_1, window_bounds = array<i64: 8, 17, 8>}, {pipeline_mode = #tpu.pipeline_mode<synchronous>, transform_indices = @transform_2, window_bounds = array<i64: 8, 17, 8>}, {pipeline_mode = #tpu.pipeline_mode<synchronous>, transform_indices = @transform_3, window_bounds = array<i64: 8, 17, 8>}]} {
    %c0 = arith.constant 0 : index
    %c0_0 = arith.constant 0 : index
    %c0_1 = arith.constant 0 : index
    %0 = vector.load %arg1[%c0, %c0_0, %c0_1] : memref<8x17x8xf32, #tpu.memory_space<vmem>>, vector<8x17x8xf32>
    %c0_2 = arith.constant 0 : index
    %c0_3 = arith.constant 0 : index
    %c0_4 = arith.constant 0 : index
    %1 = vector.load %arg2[%c0_2, %c0_3, %c0_4] : memref<8x17x8xf32, #tpu.memory_space<vmem>>, vector<8x17x8xf32>
    %c0_5 = arith.constant 0 : index
    %c0_6 = arith.constant 0 : index
    %c0_7 = arith.constant 0 : index
    %2 = vector.load %arg3[%c0_5, %c0_6, %c0_7] : memref<8x17x8xf32, #tpu.memory_space<vmem>>, vector<8x17x8xf32>
    "tpu.trace_start"() <{level = 10 : i32, message = "bqd,bkd->bqk"}> : () -> ()
    %cst = arith.constant dense<0.000000e+00> : vector<8x17x17xf32>
    %3 = tpu.matmul %0, %1, %cst {dimension_numbers = #tpu.dot_dimension_numbers<[2], [2], [1], [1], [0, 0, 0, 1, 1, 1], [0], [0]>} : vector<8x17x8xf32>, vector<8x17x8xf32>, vector<8x17x17xf32> -> vector<8x17x17xf32>
    "tpu.trace_stop"() : () -> ()
    %cst_8 = arith.constant 0.353553385 : f32
    %4 = vector.broadcast %cst_8 : f32 to vector<8x17x17xf32>
    %5 = arith.mulf %3, %4 : vector<8x17x17xf32>
    %cst_9 = arith.constant dense<0xFF800000> : vector<8x17xf32>
    %6 = vector.multi_reduction <maximumf>, %5, %cst_9 [2] : vector<8x17x17xf32> to vector<8x17xf32>
    %7 = vector.shape_cast %6 : vector<8x17xf32> to vector<8x17x1xf32>
    %8 = vector.broadcast %7 : vector<8x17x1xf32> to vector<8x17x17xf32>
    %9 = arith.subf %5, %8 : vector<8x17x17xf32>
    %10 = math.exp %9 : vector<8x17x17xf32>
    %cst_10 = arith.constant dense<0.000000e+00> : vector<8x17xf32>
    %11 = vector.multi_reduction <add>, %10, %cst_10 [2] : vector<8x17x17xf32> to vector<8x17xf32>
    %12 = vector.shape_cast %11 : vector<8x17xf32> to vector<8x17x1xf32>
    %13 = tpu.reciprocal %12 {approx = true} : vector<8x17x1xf32> -> vector<8x17x1xf32>
    %14 = vector.broadcast %13 : vector<8x17x1xf32> to vector<8x17x17xf32>
    %15 = arith.mulf %10, %14 : vector<8x17x17xf32>
    "tpu.trace_start"() <{level = 10 : i32, message = "bqk,bkd->bqd"}> : () -> ()
    %cst_11 = arith.constant dense<0.000000e+00> : vector<8x17x8xf32>
    %16 = tpu.matmul %15, %2, %cst_11 {dimension_numbers = #tpu.dot_dimension_numbers<[2], [1], [1], [2], [0, 0, 0, 1, 1, 2], [0], [0]>} : vector<8x17x17xf32>, vector<8x17x8xf32>, vector<8x17x8xf32> -> vector<8x17x8xf32>
    "tpu.trace_stop"() : () -> ()
    %c0_12 = arith.constant 0 : index
    %c0_13 = arith.constant 0 : index
    %c0_14 = arith.constant 0 : index
    %17 = vector.load %arg4[%c0_12, %c0_13, %c0_14] : memref<8x17x8xf32, #tpu.memory_space<vmem>>, vector<8x17x8xf32>
    tpu.vector_store %arg4[%c0_12, %c0_13, %c0_14], %16 {strides = array<i32>} : memref<8x17x8xf32, #tpu.memory_space<vmem>>, vector<8x17x8xf32>,
    return
  }
  func.func @transform_0(%arg0: i32) -> (i32, i32, i32) {
    %c0_i32 = arith.constant 0 : i32
    %c0_i32_0 = arith.constant 0 : i32
    %c0_i32_1 = arith.constant 0 : i32
    %c0_i32_2 = arith.constant 0 : i32
    return %c0_i32, %c0_i32_0, %c0_i32_1 : i32, i32, i32
  }
  func.func @transform_1(%arg0: i32) -> (i32, i32, i32) {
    %c0_i32 = arith.constant 0 : i32
    %c0_i32_0 = arith.constant 0 : i32
    %c0_i32_1 = arith.constant 0 : i32
    %c0_i32_2 = arith.constant 0 : i32
    return %c0_i32, %c0_i32_0, %c0_i32_1 : i32, i32, i32
  }
  func.func @transform_2(%arg0: i32) -> (i32, i32, i32) {
    %c0_i32 = arith.constant 0 : i32
    %c0_i32_0 = arith.constant 0 : i32
    %c0_i32_1 = arith.constant 0 : i32
    %c0_i32_2 = arith.constant 0 : i32
    return %c0_i32, %c0_i32_0, %c0_i32_1 : i32, i32, i32
  }
  func.func @transform_3(%arg0: i32) -> (i32, i32, i32) {
    %c0_i32 = arith.constant 0 : i32
    %c0_i32_0 = arith.constant 0 : i32
    %c0_i32_1 = arith.constant 0 : i32
    %c0_i32_2 = arith.constant 0 : i32
    return %c0_i32, %c0_i32_0, %c0_i32_1 : i32, i32, i32
  }
}

module attributes {stable_mosaic.version = 11 : i64} {
  func.func @kernel(%arg0: i32, %arg1: memref<34x128xf32, #tpu.memory_space<vmem>>, %arg2: memref<1x128xf32, #tpu.memory_space<vmem>>, %arg3: memref<1x128xf32, #tpu.memory_space<vmem>>, %arg4: memref<128x128xf32, #tpu.memory_space<vmem>>, %arg5: memref<1x128xf32, #tpu.memory_space<vmem>>, %arg6: memref<34x128xf32, #tpu.memory_space<vmem>>) attributes {dimension_semantics = [#tpu.dimension_semantics<parallel>], iteration_bounds = array<i64: 1>, scalar_prefetch = 0 : i64, scratch_operands = 0 : i64, tpu.core_type = #tpu.core_type<tc>, window_params = [{transform_indices = @transform_0, window_bounds = array<i64: 34, 128>}, {pipeline_mode = #tpu.pipeline_mode<synchronous>, transform_indices = @transform_1, window_bounds = array<i64: 1, 128>}, {pipeline_mode = #tpu.pipeline_mode<synchronous>, transform_indices = @transform_2, window_bounds = array<i64: 1, 128>}, {pipeline_mode = #tpu.pipeline_mode<synchronous>, transform_indices = @transform_3, window_bounds = array<i64: 128, 128>}, {pipeline_mode = #tpu.pipeline_mode<synchronous>, transform_indices = @transform_4, window_bounds = array<i64: 1, 128>}, {transform_indices = @transform_5, window_bounds = array<i64: 34, 128>}]} {
    %c0 = arith.constant 0 : index
    %c0_0 = arith.constant 0 : index
    %0 = vector.load %arg1[%c0, %c0_0] : memref<34x128xf32, #tpu.memory_space<vmem>>, vector<34x128xf32>
    %cst = arith.constant dense<0.000000e+00> : vector<34xf32>
    %1 = vector.multi_reduction <add>, %0, %cst [1] : vector<34x128xf32> to vector<34xf32>
    %2 = vector.shape_cast %1 : vector<34xf32> to vector<34x1xf32>
    %cst_1 = arith.constant 3.125000e-02 : f32
    %3 = vector.broadcast %cst_1 : f32 to vector<34x1xf32>
    %4 = arith.mulf %2, %3 : vector<34x1xf32>
    %5 = arith.mulf %0, %0 : vector<34x128xf32>
    %cst_2 = arith.constant dense<0.000000e+00> : vector<34xf32>
    %6 = vector.multi_reduction <add>, %5, %cst_2 [1] : vector<34x128xf32> to vector<34xf32>
    %7 = vector.shape_cast %6 : vector<34xf32> to vector<34x1xf32>
    %cst_3 = arith.constant 3.125000e-02 : f32
    %8 = vector.broadcast %cst_3 : f32 to vector<34x1xf32>
    %9 = arith.mulf %7, %8 : vector<34x1xf32>
    %10 = arith.mulf %4, %4 : vector<34x1xf32>
    %11 = arith.subf %9, %10 : vector<34x1xf32>
    %12 = vector.broadcast %4 : vector<34x1xf32> to vector<34x128xf32>
    %13 = arith.subf %0, %12 : vector<34x128xf32>
    %cst_4 = arith.constant 9.99999974E-6 : f32
    %14 = vector.broadcast %cst_4 : f32 to vector<34x1xf32>
    %15 = arith.addf %11, %14 : vector<34x1xf32>
    %16 = math.rsqrt %15 : vector<34x1xf32>
    %17 = vector.broadcast %16 : vector<34x1xf32> to vector<34x128xf32>
    %18 = arith.mulf %13, %17 : vector<34x128xf32>
    %c0_5 = arith.constant 0 : index
    %c0_6 = arith.constant 0 : index
    %19 = vector.load %arg2[%c0_5, %c0_6] : memref<1x128xf32, #tpu.memory_space<vmem>>, vector<1x128xf32>
    %20 = vector.broadcast %19 : vector<1x128xf32> to vector<34x128xf32>
    %21 = arith.mulf %18, %20 : vector<34x128xf32>
    %c0_7 = arith.constant 0 : index
    %c0_8 = arith.constant 0 : index
    %22 = vector.load %arg3[%c0_7, %c0_8] : memref<1x128xf32, #tpu.memory_space<vmem>>, vector<1x128xf32>
    %23 = vector.broadcast %22 : vector<1x128xf32> to vector<34x128xf32>
    %24 = arith.addf %21, %23 : vector<34x128xf32>
    %c0_9 = arith.constant 0 : index
    %c0_10 = arith.constant 0 : index
    %25 = vector.load %arg4[%c0_9, %c0_10] : memref<128x128xf32, #tpu.memory_space<vmem>>, vector<128x128xf32>
    %cst_11 = arith.constant dense<0.000000e+00> : vector<34x128xf32>
    %26 = tpu.matmul %24, %25, %cst_11 {dimension_numbers = #tpu.dot_dimension_numbers<[1], [0], [0], [1], [0, 0, 1, 1], [], []>} : vector<34x128xf32>, vector<128x128xf32>, vector<34x128xf32> -> vector<34x128xf32>
    %c0_12 = arith.constant 0 : index
    %c0_13 = arith.constant 0 : index
    %27 = vector.load %arg5[%c0_12, %c0_13] : memref<1x128xf32, #tpu.memory_space<vmem>>, vector<1x128xf32>
    %28 = vector.broadcast %27 : vector<1x128xf32> to vector<34x128xf32>
    %29 = arith.addf %26, %28 : vector<34x128xf32>
    %cst_14 = arith.constant 5.000000e-01 : f32
    %30 = vector.broadcast %cst_14 : f32 to vector<34x128xf32>
    %31 = arith.mulf %30, %29 : vector<34x128xf32>
    %cst_15 = arith.constant 4.471500e-02 : f32
    %32 = vector.broadcast %cst_15 : f32 to vector<34x128xf32>
    %33 = arith.mulf %32, %29 : vector<34x128xf32>
    %34 = arith.mulf %33, %29 : vector<34x128xf32>
    %35 = arith.mulf %34, %29 : vector<34x128xf32>
    %36 = arith.addf %29, %35 : vector<34x128xf32>
    %cst_16 = arith.constant 0.797884583 : f32
    %37 = vector.broadcast %cst_16 : f32 to vector<34x128xf32>
    %38 = arith.mulf %37, %36 : vector<34x128xf32>
    %39 = math.tanh %38 : vector<34x128xf32>
    %cst_17 = arith.constant 1.000000e+00 : f32
    %40 = vector.broadcast %cst_17 : f32 to vector<34x128xf32>
    %41 = arith.addf %40, %39 : vector<34x128xf32>
    %42 = arith.mulf %31, %41 : vector<34x128xf32>
    %c0_18 = arith.constant 0 : index
    %c0_19 = arith.constant 0 : index
    %43 = vector.load %arg6[%c0_18, %c0_19] : memref<34x128xf32, #tpu.memory_space<vmem>>, vector<34x128xf32>
    tpu.vector_store %arg6[%c0_18, %c0_19], %42 {strides = array<i32>} : memref<34x128xf32, #tpu.memory_space<vmem>>, vector<34x128xf32>,
    return
  }
  func.func @transform_0(%arg0: i32) -> (i32, i32) {
    %c0_i32 = arith.constant 0 : i32
    %c0_i32_0 = arith.constant 0 : i32
    return %arg0, %c0_i32 : i32, i32
  }
  func.func @transform_1(%arg0: i32) -> (i32, i32) {
    %c0_i32 = arith.constant 0 : i32
    %c0_i32_0 = arith.constant 0 : i32
    %c0_i32_1 = arith.constant 0 : i32
    return %c0_i32, %c0_i32_0 : i32, i32
  }
  func.func @transform_2(%arg0: i32) -> (i32, i32) {
    %c0_i32 = arith.constant 0 : i32
    %c0_i32_0 = arith.constant 0 : i32
    %c0_i32_1 = arith.constant 0 : i32
    return %c0_i32, %c0_i32_0 : i32, i32
  }
  func.func @transform_3(%arg0: i32) -> (i32, i32) {
    %c0_i32 = arith.constant 0 : i32
    %c0_i32_0 = arith.constant 0 : i32
    %c0_i32_1 = arith.constant 0 : i32
    return %c0_i32, %c0_i32_0 : i32, i32
  }
  func.func @transform_4(%arg0: i32) -> (i32, i32) {
    %c0_i32 = arith.constant 0 : i32
    %c0_i32_0 = arith.constant 0 : i32
    %c0_i32_1 = arith.constant 0 : i32
    return %c0_i32, %c0_i32_0 : i32, i32
  }
  func.func @transform_5(%arg0: i32) -> (i32, i32) {
    %c0_i32 = arith.constant 0 : i32
    %c0_i32_0 = arith.constant 0 : i32
    return %arg0, %c0_i32 : i32, i32
  }
}

module attributes {stable_mosaic.version = 11 : i64} {
  func.func @kernel(%arg0: i32, %arg1: memref<34x32xf32, #tpu.memory_space<vmem>>, %arg2: memref<32x128xf32, #tpu.memory_space<vmem>>, %arg3: memref<1x128xf32, #tpu.memory_space<vmem>>, %arg4: memref<34x128xf32, #tpu.memory_space<vmem>>, %arg5: memref<34x128xf32, #tpu.memory_space<vmem>>) attributes {dimension_semantics = [#tpu.dimension_semantics<parallel>], iteration_bounds = array<i64: 1>, scalar_prefetch = 0 : i64, scratch_operands = 0 : i64, tpu.core_type = #tpu.core_type<tc>, window_params = [{transform_indices = @transform_0, window_bounds = array<i64: 34, 32>}, {pipeline_mode = #tpu.pipeline_mode<synchronous>, transform_indices = @transform_1, window_bounds = array<i64: 32, 128>}, {pipeline_mode = #tpu.pipeline_mode<synchronous>, transform_indices = @transform_2, window_bounds = array<i64: 1, 128>}, {transform_indices = @transform_3, window_bounds = array<i64: 34, 128>}, {transform_indices = @transform_4, window_bounds = array<i64: 34, 128>}]} {
    %c0 = arith.constant 0 : index
    %c0_0 = arith.constant 0 : index
    %0 = vector.load %arg1[%c0, %c0_0] : memref<34x32xf32, #tpu.memory_space<vmem>>, vector<34x32xf32>
    %c0_1 = arith.constant 0 : index
    %c0_2 = arith.constant 0 : index
    %1 = vector.load %arg2[%c0_1, %c0_2] : memref<32x128xf32, #tpu.memory_space<vmem>>, vector<32x128xf32>
    %cst = arith.constant dense<0.000000e+00> : vector<34x128xf32>
    %2 = tpu.matmul %0, %1, %cst {dimension_numbers = #tpu.dot_dimension_numbers<[1], [0], [0], [1], [0, 0, 1, 1], [], []>} : vector<34x32xf32>, vector<32x128xf32>, vector<34x128xf32> -> vector<34x128xf32>
    %c0_3 = arith.constant 0 : index
    %c0_4 = arith.constant 0 : index
    %3 = vector.load %arg3[%c0_3, %c0_4] : memref<1x128xf32, #tpu.memory_space<vmem>>, vector<1x128xf32>
    %4 = vector.broadcast %3 : vector<1x128xf32> to vector<34x128xf32>
    %5 = arith.addf %2, %4 : vector<34x128xf32>
    %c0_5 = arith.constant 0 : index
    %c0_6 = arith.constant 0 : index
    %6 = vector.load %arg4[%c0_5, %c0_6] : memref<34x128xf32, #tpu.memory_space<vmem>>, vector<34x128xf32>
    %7 = arith.addf %5, %6 : vector<34x128xf32>
    %c0_7 = arith.constant 0 : index
    %c0_8 = arith.constant 0 : index
    %8 = vector.load %arg5[%c0_7, %c0_8] : memref<34x128xf32, #tpu.memory_space<vmem>>, vector<34x128xf32>
    tpu.vector_store %arg5[%c0_7, %c0_8], %7 {strides = array<i32>} : memref<34x128xf32, #tpu.memory_space<vmem>>, vector<34x128xf32>,
    return
  }
  func.func @transform_0(%arg0: i32) -> (i32, i32) {
    %c0_i32 = arith.constant 0 : i32
    %c0_i32_0 = arith.constant 0 : i32
    return %arg0, %c0_i32 : i32, i32
  }
  func.func @transform_1(%arg0: i32) -> (i32, i32) {
    %c0_i32 = arith.constant 0 : i32
    %c0_i32_0 = arith.constant 0 : i32
    %c0_i32_1 = arith.constant 0 : i32
    return %c0_i32, %c0_i32_0 : i32, i32
  }
  func.func @transform_2(%arg0: i32) -> (i32, i32) {
    %c0_i32 = arith.constant 0 : i32
    %c0_i32_0 = arith.constant 0 : i32
    %c0_i32_1 = arith.constant 0 : i32
    return %c0_i32, %c0_i32_0 : i32, i32
  }
  func.func @transform_3(%arg0: i32) -> (i32, i32) {
    %c0_i32 = arith.constant 0 : i32
    %c0_i32_0 = arith.constant 0 : i32
    return %arg0, %c0_i32 : i32, i32
  }
  func.func @transform_4(%arg0: i32) -> (i32, i32) {
    %c0_i32 = arith.constant 0 : i32
    %c0_i32_0 = arith.constant 0 : i32
    return %arg0, %c0_i32 : i32, i32
  }
}

module attributes {stable_mosaic.version = 11 : i64} {
  func.func @kernel(%arg0: i32, %arg1: memref<34x128xf32, #tpu.memory_space<vmem>>, %arg2: memref<128x128xf32, #tpu.memory_space<vmem>>, %arg3: memref<1x128xf32, #tpu.memory_space<vmem>>, %arg4: memref<34x128xf32, #tpu.memory_space<vmem>>, %arg5: memref<34x128xf32, #tpu.memory_space<vmem>>) attributes {dimension_semantics = [#tpu.dimension_semantics<parallel>], iteration_bounds = array<i64: 1>, scalar_prefetch = 0 : i64, scratch_operands = 0 : i64, tpu.core_type = #tpu.core_type<tc>, window_params = [{transform_indices = @transform_0, window_bounds = array<i64: 34, 128>}, {pipeline_mode = #tpu.pipeline_mode<synchronous>, transform_indices = @transform_1, window_bounds = array<i64: 128, 128>}, {pipeline_mode = #tpu.pipeline_mode<synchronous>, transform_indices = @transform_2, window_bounds = array<i64: 1, 128>}, {transform_indices = @transform_3, window_bounds = array<i64: 34, 128>}, {transform_indices = @transform_4, window_bounds = array<i64: 34, 128>}]} {
    %c0 = arith.constant 0 : index
    %c0_0 = arith.constant 0 : index
    %0 = vector.load %arg1[%c0, %c0_0] : memref<34x128xf32, #tpu.memory_space<vmem>>, vector<34x128xf32>
    %c0_1 = arith.constant 0 : index
    %c0_2 = arith.constant 0 : index
    %1 = vector.load %arg2[%c0_1, %c0_2] : memref<128x128xf32, #tpu.memory_space<vmem>>, vector<128x128xf32>
    %cst = arith.constant dense<0.000000e+00> : vector<34x128xf32>
    %2 = tpu.matmul %0, %1, %cst {dimension_numbers = #tpu.dot_dimension_numbers<[1], [0], [0], [1], [0, 0, 1, 1], [], []>} : vector<34x128xf32>, vector<128x128xf32>, vector<34x128xf32> -> vector<34x128xf32>
    %c0_3 = arith.constant 0 : index
    %c0_4 = arith.constant 0 : index
    %3 = vector.load %arg3[%c0_3, %c0_4] : memref<1x128xf32, #tpu.memory_space<vmem>>, vector<1x128xf32>
    %4 = vector.broadcast %3 : vector<1x128xf32> to vector<34x128xf32>
    %5 = arith.addf %2, %4 : vector<34x128xf32>
    %c0_5 = arith.constant 0 : index
    %c0_6 = arith.constant 0 : index
    %6 = vector.load %arg4[%c0_5, %c0_6] : memref<34x128xf32, #tpu.memory_space<vmem>>, vector<34x128xf32>
    %7 = arith.addf %5, %6 : vector<34x128xf32>
    %c0_7 = arith.constant 0 : index
    %c0_8 = arith.constant 0 : index
    %8 = vector.load %arg5[%c0_7, %c0_8] : memref<34x128xf32, #tpu.memory_space<vmem>>, vector<34x128xf32>
    tpu.vector_store %arg5[%c0_7, %c0_8], %7 {strides = array<i32>} : memref<34x128xf32, #tpu.memory_space<vmem>>, vector<34x128xf32>,
    return
  }
  func.func @transform_0(%arg0: i32) -> (i32, i32) {
    %c0_i32 = arith.constant 0 : i32
    %c0_i32_0 = arith.constant 0 : i32
    return %arg0, %c0_i32 : i32, i32
  }
  func.func @transform_1(%arg0: i32) -> (i32, i32) {
    %c0_i32 = arith.constant 0 : i32
    %c0_i32_0 = arith.constant 0 : i32
    %c0_i32_1 = arith.constant 0 : i32
    return %c0_i32, %c0_i32_0 : i32, i32
  }
  func.func @transform_2(%arg0: i32) -> (i32, i32) {
    %c0_i32 = arith.constant 0 : i32
    %c0_i32_0 = arith.constant 0 : i32
    %c0_i32_1 = arith.constant 0 : i32
    return %c0_i32, %c0_i32_0 : i32, i32
  }
  func.func @transform_3(%arg0: i32) -> (i32, i32) {
    %c0_i32 = arith.constant 0 : i32
    %c0_i32_0 = arith.constant 0 : i32
    return %arg0, %c0_i32 : i32, i32
  }
  func.func @transform_4(%arg0: i32) -> (i32, i32) {
    %c0_i32 = arith.constant 0 : i32
    %c0_i32_0 = arith.constant 0 : i32
    return %arg0, %c0_i32 : i32, i32
  }
}

module attributes {stable_mosaic.version = 11 : i64} {
  func.func @_head_kernel(%arg0: i32, %arg1: memref<2x128xf32, #tpu.memory_space<vmem>>, %arg2: memref<1x128xf32, #tpu.memory_space<vmem>>, %arg3: memref<1x128xf32, #tpu.memory_space<vmem>>, %arg4: memref<128x128xf32, #tpu.memory_space<vmem>>, %arg5: memref<128x128xf32, #tpu.memory_space<vmem>>, %arg6: memref<2x128xf32, #tpu.memory_space<vmem>>) attributes {dimension_semantics = [#tpu.dimension_semantics<arbitrary>], iteration_bounds = array<i64: 1>, scalar_prefetch = 0 : i64, scratch_operands = 0 : i64, tpu.core_type = #tpu.core_type<tc>, window_params = [{pipeline_mode = #tpu.pipeline_mode<synchronous>, transform_indices = @transform_0, window_bounds = array<i64: 2, 128>}, {pipeline_mode = #tpu.pipeline_mode<synchronous>, transform_indices = @transform_1, window_bounds = array<i64: 1, 128>}, {pipeline_mode = #tpu.pipeline_mode<synchronous>, transform_indices = @transform_2, window_bounds = array<i64: 1, 128>}, {pipeline_mode = #tpu.pipeline_mode<synchronous>, transform_indices = @transform_3, window_bounds = array<i64: 128, 128>}, {pipeline_mode = #tpu.pipeline_mode<synchronous>, transform_indices = @transform_4, window_bounds = array<i64: 128, 128>}, {pipeline_mode = #tpu.pipeline_mode<synchronous>, transform_indices = @transform_5, window_bounds = array<i64: 2, 128>}]} {
    %c0 = arith.constant 0 : index
    %c0_0 = arith.constant 0 : index
    %0 = vector.load %arg1[%c0, %c0_0] : memref<2x128xf32, #tpu.memory_space<vmem>>, vector<2x128xf32>
    %cst = arith.constant dense<0.000000e+00> : vector<2xf32>
    %1 = vector.multi_reduction <add>, %0, %cst [1] : vector<2x128xf32> to vector<2xf32>
    %2 = vector.shape_cast %1 : vector<2xf32> to vector<2x1xf32>
    %cst_1 = arith.constant 3.125000e-02 : f32
    %3 = vector.broadcast %cst_1 : f32 to vector<2x1xf32>
    %4 = arith.mulf %2, %3 : vector<2x1xf32>
    %5 = arith.mulf %0, %0 : vector<2x128xf32>
    %cst_2 = arith.constant dense<0.000000e+00> : vector<2xf32>
    %6 = vector.multi_reduction <add>, %5, %cst_2 [1] : vector<2x128xf32> to vector<2xf32>
    %7 = vector.shape_cast %6 : vector<2xf32> to vector<2x1xf32>
    %cst_3 = arith.constant 3.125000e-02 : f32
    %8 = vector.broadcast %cst_3 : f32 to vector<2x1xf32>
    %9 = arith.mulf %7, %8 : vector<2x1xf32>
    %10 = arith.mulf %4, %4 : vector<2x1xf32>
    %11 = arith.subf %9, %10 : vector<2x1xf32>
    %12 = vector.broadcast %4 : vector<2x1xf32> to vector<2x128xf32>
    %13 = arith.subf %0, %12 : vector<2x128xf32>
    %cst_4 = arith.constant 9.99999974E-6 : f32
    %14 = vector.broadcast %cst_4 : f32 to vector<2x1xf32>
    %15 = arith.addf %11, %14 : vector<2x1xf32>
    %16 = math.rsqrt %15 : vector<2x1xf32>
    %17 = vector.broadcast %16 : vector<2x1xf32> to vector<2x128xf32>
    %18 = arith.mulf %13, %17 : vector<2x128xf32>
    %c0_5 = arith.constant 0 : index
    %c0_6 = arith.constant 0 : index
    %19 = vector.load %arg2[%c0_5, %c0_6] : memref<1x128xf32, #tpu.memory_space<vmem>>, vector<1x128xf32>
    %20 = vector.broadcast %19 : vector<1x128xf32> to vector<2x128xf32>
    %21 = arith.mulf %18, %20 : vector<2x128xf32>
    %c0_7 = arith.constant 0 : index
    %c0_8 = arith.constant 0 : index
    %22 = vector.load %arg3[%c0_7, %c0_8] : memref<1x128xf32, #tpu.memory_space<vmem>>, vector<1x128xf32>
    %23 = vector.broadcast %22 : vector<1x128xf32> to vector<2x128xf32>
    %24 = arith.addf %21, %23 : vector<2x128xf32>
    %c0_9 = arith.constant 0 : index
    %c0_10 = arith.constant 0 : index
    %25 = vector.load %arg4[%c0_9, %c0_10] : memref<128x128xf32, #tpu.memory_space<vmem>>, vector<128x128xf32>
    %cst_11 = arith.constant dense<0.000000e+00> : vector<2x128xf32>
    %26 = tpu.matmul %24, %25, %cst_11 {dimension_numbers = #tpu.dot_dimension_numbers<[1], [0], [0], [1], [0, 0, 1, 1], [], []>} : vector<2x128xf32>, vector<128x128xf32>, vector<2x128xf32> -> vector<2x128xf32>
    %cst_12 = arith.constant 0.000000e+00 : f32
    %27 = vector.broadcast %cst_12 : f32 to vector<2x128xf32>
    %28 = arith.maximumf %26, %27 : vector<2x128xf32>
    %c0_13 = arith.constant 0 : index
    %c0_14 = arith.constant 0 : index
    %29 = vector.load %arg5[%c0_13, %c0_14] : memref<128x128xf32, #tpu.memory_space<vmem>>, vector<128x128xf32>
    %cst_15 = arith.constant dense<0.000000e+00> : vector<2x128xf32>
    %30 = tpu.matmul %28, %29, %cst_15 {dimension_numbers = #tpu.dot_dimension_numbers<[1], [0], [0], [1], [0, 0, 1, 1], [], []>} : vector<2x128xf32>, vector<128x128xf32>, vector<2x128xf32> -> vector<2x128xf32>
    %c0_16 = arith.constant 0 : index
    %c0_17 = arith.constant 0 : index
    %31 = vector.load %arg6[%c0_16, %c0_17] : memref<2x128xf32, #tpu.memory_space<vmem>>, vector<2x128xf32>
    tpu.vector_store %arg6[%c0_16, %c0_17], %30 {strides = array<i32>} : memref<2x128xf32, #tpu.memory_space<vmem>>, vector<2x128xf32>,
    return
  }
  func.func @transform_0(%arg0: i32) -> (i32, i32) {
    %c0_i32 = arith.constant 0 : i32
    %c0_i32_0 = arith.constant 0 : i32
    %c0_i32_1 = arith.constant 0 : i32
    return %c0_i32, %c0_i32_0 : i32, i32
  }
  func.func @transform_1(%arg0: i32) -> (i32, i32) {
    %c0_i32 = arith.constant 0 : i32
    %c0_i32_0 = arith.constant 0 : i32
    %c0_i32_1 = arith.constant 0 : i32
    return %c0_i32, %c0_i32_0 : i32, i32
  }
  func.func @transform_2(%arg0: i32) -> (i32, i32) {
    %c0_i32 = arith.constant 0 : i32
    %c0_i32_0 = arith.constant 0 : i32
    %c0_i32_1 = arith.constant 0 : i32
    return %c0_i32, %c0_i32_0 : i32, i32
  }
  func.func @transform_3(%arg0: i32) -> (i32, i32) {
    %c0_i32 = arith.constant 0 : i32
    %c0_i32_0 = arith.constant 0 : i32
    %c0_i32_1 = arith.constant 0 : i32
    return %c0_i32, %c0_i32_0 : i32, i32
  }
  func.func @transform_4(%arg0: i32) -> (i32, i32) {
    %c0_i32 = arith.constant 0 : i32
    %c0_i32_0 = arith.constant 0 : i32
    %c0_i32_1 = arith.constant 0 : i32
    return %c0_i32, %c0_i32_0 : i32, i32
  }
  func.func @transform_5(%arg0: i32) -> (i32, i32) {
    %c0_i32 = arith.constant 0 : i32
    %c0_i32_0 = arith.constant 0 : i32
    %c0_i32_1 = arith.constant 0 : i32
    return %c0_i32, %c0_i32_0 : i32, i32
  }
}

</mosaic_0001>

<llo_original>
// kernel: vit_forward.12
$region0: #{vit_forward.12}
  #allocation0 [shape = 'u32[]', space=smem, size = 0x4, offset = 0x4, fixed_abs, tag = 'smem constant byte address 0x4 - core index']
  #allocation1 [shape = 'u32[144,128]{1,0:T(1,128)}', space=vmem, size = 0x12000, scoped, tag = 'internal scratch']
  %s0 = inlined_call_operand.vmem [shape: f32[32,64], index: 0, kind: input, shape index: {}]
  %s1 = inlined_call_operand.vmem [shape: f32[64,128], index: 1, kind: input, shape index: {}]
  %s2 = inlined_call_operand.vmem [shape: f32[1,128], index: 2, kind: input, shape index: {}]
  %s3 = inlined_call_operand.vmem [shape: f32[32,128], index: 3, kind: output, shape index: {}]
  %s4 = sld [smem:[#allocation0]]
  $region22: #{vit_forward.12} parent=0
    _
  %s6 = ssub.s32 1, %s4
  %s7 = scalar_select 0, %s6, %s4
  // Predicated region
  $region2: #{vit_forward.12} parent=0 // pred_check
    _
  $region3: #{vit_forward.12} parent=0 // pred_check_branch
    %9 = sbr.rel (0) target = $region5
  $region4: #{vit_forward.12} parent=0 // pred_region
    _
  $region5: #{vit_forward.12} parent=0 // pred_fallthru
    _
  // Predicated region
  $region6: #{vit_forward.12} parent=0 // pred_check
    _
  $region7: #{vit_forward.12} parent=0 // pred_check_branch
    %11 = sbr.rel (0) target = $region9
  $region8: #{vit_forward.12} parent=0 // pred_region
    _
  $region9: #{vit_forward.12} parent=0 // pred_fallthru
    _
  // Predicated region
  $region10: #{vit_forward.12} parent=0 // pred_check
    _
  $region11: #{vit_forward.12} parent=0 // pred_check_branch
    %13 = sbr.rel (0) target = $region13
  $region12: #{vit_forward.12} parent=0 // pred_region
    _
  $region13: #{vit_forward.12} parent=0 // pred_fallthru
    _
  %v14 = vld [vmem:[%s0] sm:$0xff]
  %v15 = vld [vmem:[%s0 + $0x8] sm:$0xff]
  %v16 = vld [vmem:[%s0 + $0x10] sm:$0xff]
  %v17 = vld [vmem:[%s0 + $0x18] sm:$0xff]
  %v18 = vld [vmem:[%s1] sm:$0xff]
  %v19 = vld [vmem:[%s1 + $0x8] sm:$0xff]
  %v20 = vld [vmem:[%s1 + $0x10] sm:$0xff]
  %v21 = vld [vmem:[%s1 + $0x18] sm:$0xff]
  %v22 = vld [vmem:[%s1 + $0x20] sm:$0xff]
  %v23 = vld [vmem:[%s1 + $0x28] sm:$0xff]
  %v24 = vld [vmem:[%s1 + $0x30] sm:$0xff]
  %v25 = vld [vmem:[%s1 + $0x38] sm:$0xff]
  %v26 = vld [vmem:[%s2] sm:$0x1]
  %v28 = vlaneseq
  %v29 = vshrl.u32 %v28, 7
  %v30 = vsub.s32 0, %v29
  %v31 = vrot.slane %v26, %v30
  %vm33 = vcmask 523264
  %v35 = vsel %vm33, %v14, 0
  %v38 = vsel %vm33, %v15, 0
  %v41 = vsel %vm33, %v16, 0
  %v44 = vsel %vm33, %v17, 0
  %46 = vmatprep.subr.mxu0 0.0
  %47 = vmatpush1.msra.mxu0 %v18
  %48 = vmatprep.subr.mxu0 0.0
  %49 = vmatpush1.msra.mxu0 %v19
  %50 = vmatprep.subr.mxu0 0.0
  %51 = vmatpush1.msra.mxu0 %v20
  %52 = vmatprep.subr.mxu0 0.0
  %53 = vmatpush1.msra.mxu0 %v21
  %54 = vmatprep.subr.mxu0 0.0
  %55 = vmatpush1.msra.mxu0 %v22
  %56 = vmatprep.subr.mxu0 0.0
  %57 = vmatpush1.msra.mxu0 %v23
  %58 = vmatprep.subr.mxu0 0.0
  %59 = vmatpush1.msra.mxu0 %v24
  %60 = vmatprep.subr.mxu0 0.0
  %61 = vmatpush1.msra.mxu0 %v25
  %62 = vmatprep.subr.mxu0 0.0
  %63 = vmatpush1.msra.mxu0 0.0
  %64 = vmatprep.subr.mxu0 0.0
  %65 = vmatpush1.msra.mxu0 0.0
  %66 = vmatprep.subr.mxu0 0.0
  %67 = vmatpush1.msra.mxu0 0.0
  %68 = vmatprep.subr.mxu0 0.0
  %69 = vmatpush1.msra.mxu0 0.0
  %70 = vmatprep.subr.mxu0 0.0
  %71 = vmatpush1.msra.mxu0 0.0
  %72 = vmatprep.subr.mxu0 0.0
  %73 = vmatpush1.msra.mxu0 0.0
  %74 = vmatprep.subr.mxu0 0.0
  %75 = vmatpush1.msra.mxu0 0.0
  %76 = vmatprep.subr.mxu0 0.0
  %77 = vmatpush1.msra.mxu0 0.0
  %78 = vmatprep.subr.mxu0 0.0
  %79 = vmatpush1.msra.mxu0 0.0
  %80 = vmatprep.subr.mxu0 0.0
  %81 = vmatpush1.msra.mxu0 0.0
  %82 = vmatprep.subr.mxu0 0.0
  %83 = vmatpush1.msra.mxu0 0.0
  %84 = vmatprep.subr.mxu0 0.0
  %85 = vmatpush1.msra.mxu0 0.0
  %86 = vmatprep.subr.mxu0 0.0
  %87 = vmatpush1.msra.mxu0 0.0
  %88 = vmatprep.subr.mxu0 0.0
  %89 = vmatpush1.msra.mxu0 0.0
  %90 = vmatprep.subr.mxu0 0.0
  %91 = vmatpush1.msra.mxu0 0.0
  %92 = vmatprep.subr.mxu0 0.0
  %93 = vmatpush1.msra.mxu0 0.0
  %94 = vmatprep.subr.mxu0 0.0
  %95 = vmatpush1.msra.mxu0 0.0
  %96 = vmatprep.subr.mxu0 0.0
  %97 = vmatpush1.msra.mxu0 0.0
  %98 = vmatprep.subr.mxu0 0.0
  %99 = vmatpush1.msra.mxu0 0.0
  %100 = vmatprep.subr.mxu0 0.0
  %101 = vmatpush1.msra.mxu0 0.0
  %102 = vmatprep.subr.mxu0 0.0
  %103 = vmatpush1.msra.mxu0 0.0
  %104 = vmatprep.subr.mxu0 0.0
  %105 = vmatpush1.msra.mxu0 0.0
  %106 = vmatprep.subr.mxu0 0.0
  %107 = vmatpush1.msra.mxu0 0.0
  %108 = vmatprep.subr.mxu0 0.0
  %109 = vmatpush1.msra.mxu0 0.0
  %110 = vmatprep.mubr.f32.mxu0 0.0
  %111 = vmatmul.mubr.f32.gmra.mrb[0].mxu0 %v35
  %v112 = vpop.f32.mrb[0].mxu0
  %v113 = vadd.f32 %v31, %v112
  %v114 = vpop.f32.mrb[0].mxu0
  %115 = vmatprep.mubr.f32.mxu0 0.0
  %116 = vmatmul.mubr.f32.gmra.mrb[0].mxu0 %v38
  %v117 = vpop.f32.mrb[0].mxu0
  %v118 = vadd.f32 %v31, %v117
  %v119 = vpop.f32.mrb[0].mxu0
  %120 = vmatprep.mubr.f32.mxu0 0.0
  %121 = vmatmul.mubr.f32.gmra.mrb[0].mxu0 %v41
  %v122 = vpop.f32.mrb[0].mxu0
  %v123 = vadd.f32 %v31, %v122
  %v124 = vpop.f32.mrb[0].mxu0
  %125 = vmatprep.mubr.f32.mxu0 0.0
  %126 = vmatmul.mubr.f32.gmra.mrb[0].mxu0 %v44
  %v127 = vpop.f32.mrb[0].mxu0
  %v128 = vadd.f32 %v31, %v127
  %v129 = vpop.f32.mrb[0].mxu0
  %130 = vdwg.mxu0
  %131 = vst [vmem:[%s3] sm:$0xff] %v113
  %132 = vst [vmem:[%s3 + $0x8] sm:$0xff] %v118
  %133 = vst [vmem:[%s3 + $0x10] sm:$0xff] %v123
  %134 = vst [vmem:[%s3 + $0x18] sm:$0xff] %v128
  // Predicated region
  $region14: #{vit_forward.12} parent=0 // pred_check
    _
  $region15: #{vit_forward.12} parent=0 // pred_check_branch
    %136 = sbr.rel (0) target = $region17
  $region16: #{vit_forward.12} parent=0 // pred_region
    _
  $region17: #{vit_forward.12} parent=0 // pred_fallthru
    _
  // Predicated region
  $region18: #{vit_forward.12} parent=0 // pred_check
    _
  $region19: #{vit_forward.12} parent=0 // pred_check_branch
    %138 = sbr.rel (0) target = $region21
  $region20: #{vit_forward.12} parent=0 // pred_region
    _
  $region21: #{vit_forward.12} parent=0 // pred_fallthru
    _

// kernel: vit_forward.13
$region0: #{vit_forward.13}
  #allocation0 [shape = 'u32[]', space=smem, size = 0x4, offset = 0x4, fixed_abs, tag = 'smem constant byte address 0x4 - core index']
  #allocation1 [shape = 'u32[144,128]{1,0:T(1,128)}', space=vmem, size = 0x12000, scoped, tag = 'internal scratch']
  %s0 = inlined_call_operand.vmem [shape: f32[34,128], index: 0, kind: input, shape index: {}]
  %s1 = inlined_call_operand.vmem [shape: f32[1,128], index: 1, kind: input, shape index: {}]
  %s2 = inlined_call_operand.vmem [shape: f32[1,128], index: 2, kind: input, shape index: {}]
  %s3 = inlined_call_operand.vmem [shape: f32[128,384], index: 3, kind: input, shape index: {}]
  %s4 = inlined_call_operand.vmem [shape: f32[1,384], index: 4, kind: input, shape index: {}]
  %s5 = inlined_call_operand.vmem [shape: f32[34,384], index: 5, kind: output, shape index: {}]
  %s6 = sld [smem:[#allocation0]]
  $region30: #{vit_forward.13} parent=0
    _
  %s8 = ssub.s32 1, %s6
  %s9 = scalar_select 0, %s8, %s6
  // Predicated region
  $region2: #{vit_forward.13} parent=0 // pred_check
    _
  $region3: #{vit_forward.13} parent=0 // pred_check_branch
    %11 = sbr.rel (0) target = $region5
  $region4: #{vit_forward.13} parent=0 // pred_region
    _
  $region5: #{vit_forward.13} parent=0 // pred_fallthru
    _
  // Predicated region
  $region6: #{vit_forward.13} parent=0 // pred_check
    _
  $region7: #{vit_forward.13} parent=0 // pred_check_branch
    %13 = sbr.rel (0) target = $region9
  $region8: #{vit_forward.13} parent=0 // pred_region
    _
  $region9: #{vit_forward.13} parent=0 // pred_fallthru
    _
  // Predicated region
  $region10: #{vit_forward.13} parent=0 // pred_check
    _
  $region11: #{vit_forward.13} parent=0 // pred_check_branch
    %15 = sbr.rel (0) target = $region13
  $region12: #{vit_forward.13} parent=0 // pred_region
    _
  $region13: #{vit_forward.13} parent=0 // pred_fallthru
    _
  // Predicated region
  $region14: #{vit_forward.13} parent=0 // pred_check
    _
  $region15: #{vit_forward.13} parent=0 // pred_check_branch
    %17 = sbr.rel (0) target = $region17
  $region16: #{vit_forward.13} parent=0 // pred_region
    _
  $region17: #{vit_forward.13} parent=0 // pred_fallthru
    _
  // Predicated region
  $region18: #{vit_forward.13} parent=0 // pred_check
    _
  $region19: #{vit_forward.13} parent=0 // pred_check_branch
    %19 = sbr.rel (0) target = $region21
  $region20: #{vit_forward.13} parent=0 // pred_region
    _
  $region21: #{vit_forward.13} parent=0 // pred_fallthru
    _
  %v20 = vld [vmem:[%s0] sm:$0xff]
  %v21 = vld [vmem:[%s0 + $0x8] sm:$0xff]
  %v22 = vld [vmem:[%s0 + $0x10] sm:$0xff]
  %v23 = vld [vmem:[%s0 + $0x18] sm:$0xff]
  %v24 = vld [vmem:[%s0 + $0x20] sm:$0x3]
  %25 = vadd.xlane.f32.xlu0 %v20
  %v26 = vpop.xlane.xlu0 %25
  %27 = vadd.xlane.f32.xlu0 %v21
  %v28 = vpop.xlane.xlu0 %27
  %29 = vadd.xlane.f32.xlu0 %v22
  %v30 = vpop.xlane.xlu0 %29
  %31 = vadd.xlane.f32.xlu0 %v23
  %v32 = vpop.xlane.xlu0 %31
  %vm33 = vcmask 1041408
  %v34 = vsel %vm33, %v24, 0.0
  %35 = vadd.xlane.f32.xlu0 %v34
  %v36 = vpop.xlane.xlu0 %35
  %v37 = vmul.f32 %v26, 0.03125
  %v38 = vmul.f32 %v28, 0.03125
  %v39 = vmul.f32 %v30, 0.03125
  %v40 = vmul.f32 %v32, 0.03125
  %v41 = vmul.f32 %v36, 0.03125
  %v42 = vmul.f32 %v20, %v20
  %v43 = vmul.f32 %v21, %v21
  %v44 = vmul.f32 %v22, %v22
  %v45 = vmul.f32 %v23, %v23
  %v46 = vmul.f32 %v24, %v24
  %47 = vadd.xlane.f32.xlu0 %v42
  %v48 = vpop.xlane.xlu0 %47
  %49 = vadd.xlane.f32.xlu0 %v43
  %v50 = vpop.xlane.xlu0 %49
  %51 = vadd.xlane.f32.xlu0 %v44
  %v52 = vpop.xlane.xlu0 %51
  %53 = vadd.xlane.f32.xlu0 %v45
  %v54 = vpop.xlane.xlu0 %53
  %v55 = vsel %vm33, %v46, 0.0
  %56 = vadd.xlane.f32.xlu0 %v55
  %v57 = vpop.xlane.xlu0 %56
  %v58 = vmul.f32 %v48, 0.03125
  %v59 = vmul.f32 %v50, 0.03125
  %v60 = vmul.f32 %v52, 0.03125
  %v61 = vmul.f32 %v54, 0.03125
  %v62 = vmul.f32 %v57, 0.03125
  %v63 = vmul.f32 %v37, %v37
  %v64 = vmul.f32 %v38, %v38
  %v65 = vmul.f32 %v39, %v39
  %v66 = vmul.f32 %v40, %v40
  %v67 = vmul.f32 %v41, %v41
  %v68 = vsub.f32 %v58, %v63
  %v69 = vsub.f32 %v59, %v64
  %v70 = vsub.f32 %v60, %v65
  %v71 = vsub.f32 %v61, %v66
  %v72 = vsub.f32 %v62, %v67
  %v73 = vsub.f32 %v20, %v37
  %v74 = vsub.f32 %v21, %v38
  %v75 = vsub.f32 %v22, %v39
  %v76 = vsub.f32 %v23, %v40
  %v77 = vsub.f32 %v24, %v41
  %v78 = vadd.f32 %v68, 1e-05
  %v79 = vadd.f32 %v69, 1e-05
  %v80 = vadd.f32 %v70, 1e-05
  %v81 = vadd.f32 %v71, 1e-05
  %v82 = vadd.f32 %v72, 1e-05
  %v83 = vrsqrt.pop %v78
  %v84 = vrsqrt.pop %v79
  %v85 = vrsqrt.pop %v80
  %v86 = vrsqrt.pop %v81
  %v87 = vrsqrt.pop %v82
  %v88 = vmul.f32 %v73, %v83
  %v89 = vmul.f32 %v74, %v84
  %v90 = vmul.f32 %v75, %v85
  %v91 = vmul.f32 %v76, %v86
  %v92 = vmul.f32 %v77, %v87
  %v93 = vld [vmem:[%s1] sm:$0x1]
  %v95 = vlaneseq
  %v96 = vshrl.u32 %v95, 7
  %v97 = vsub.s32 0, %v96
  %v98 = vrot.slane %v93, %v97
  %v100 = vmul.f32 %v88, %v98
  %v101 = vmul.f32 %v89, %v98
  %v102 = vmul.f32 %v90, %v98
  %v103 = vmul.f32 %v91, %v98
  %v104 = vmul.f32 %v92, %v98
  %v105 = vld [vmem:[%s2] sm:$0x1]
  %v107 = vlaneseq
  %v108 = vshrl.u32 %v107, 7
  %v109 = vsub.s32 0, %v108
  %v110 = vrot.slane %v105, %v109
  %v112 = vadd.f32 %v100, %v110
  %v113 = vadd.f32 %v101, %v110
  %v114 = vadd.f32 %v102, %v110
  %v115 = vadd.f32 %v103, %v110
  %v116 = vadd.f32 %v104, %v110
  %v117 = vld [vmem:[%s3] sm:$0xff]
  %v118 = vld [vmem:[%s3 + $0x8] sm:$0xff]
  %v119 = vld [vmem:[%s3 + $0x10] sm:$0xff]
  %v120 = vld [vmem:[%s3 + $0x18] sm:$0xff]
  %v121 = vld [vmem:[%s3 + $0x20] sm:$0xff]
  %v122 = vld [vmem:[%s3 + $0x28] sm:$0xff]
  %v123 = vld [vmem:[%s3 + $0x30] sm:$0xff]
  %v124 = vld [vmem:[%s3 + $0x38] sm:$0xff]
  %v125 = vld [vmem:[%s3 + $0x40] sm:$0xff]
  %v126 = vld [vmem:[%s3 + $0x48] sm:$0xff]
  %v127 = vld [vmem:[%s3 + $0x50] sm:$0xff]
  %v128 = vld [vmem:[%s3 + $0x58] sm:$0xff]
  %v129 = vld [vmem:[%s3 + $0x60] sm:$0xff]
  %v130 = vld [vmem:[%s3 + $0x68] sm:$0xff]
  %v131 = vld [vmem:[%s3 + $0x70] sm:$0xff]
  %v132 = vld [vmem:[%s3 + $0x78] sm:$0xff]
  %v133 = vld [vmem:[%s3 + $0x80] sm:$0xff]
  %v134 = vld [vmem:[%s3 + $0x88] sm:$0xff]
  %v135 = vld [vmem:[%s3 + $0x90] sm:$0xff]
  %v136 = vld [vmem:[%s3 + $0x98] sm:$0xff]
  %v137 = vld [vmem:[%s3 + $0xa0] sm:$0xff]
  %v138 = vld [vmem:[%s3 + $0xa8] sm:$0xff]
  %v139 = vld [vmem:[%s3 + $0xb0] sm:$0xff]
  %v140 = vld [vmem:[%s3 + $0xb8] sm:$0xff]
  %v141 = vld [vmem:[%s3 + $0xc0] sm:$0xff]
  %v142 = vld [vmem:[%s3 + $0xc8] sm:$0xff]
  %v143 = vld [vmem:[%s3 + $0xd0] sm:$0xff]
  %v144 = vld [vmem:[%s3 + $0xd8] sm:$0xff]
  %v145 = vld [vmem:[%s3 + $0xe0] sm:$0xff]
  %v146 = vld [vmem:[%s3 + $0xe8] sm:$0xff]
  %v147 = vld [vmem:[%s3 + $0xf0] sm:$0xff]
  %v148 = vld [vmem:[%s3 + $0xf8] sm:$0xff]
  %v149 = vld [vmem:[%s3 + $0x100] sm:$0xff]
  %v150 = vld [vmem:[%s3 + $0x108] sm:$0xff]
  %v151 = vld [vmem:[%s3 + $0x110] sm:$0xff]
  %v152 = vld [vmem:[%s3 + $0x118] sm:$0xff]
  %v153 = vld [vmem:[%s3 + $0x120] sm:$0xff]
  %v154 = vld [vmem:[%s3 + $0x128] sm:$0xff]
  %v155 = vld [vmem:[%s3 + $0x130] sm:$0xff]
  %v156 = vld [vmem:[%s3 + $0x138] sm:$0xff]
  %v157 = vld [vmem:[%s3 + $0x140] sm:$0xff]
  %v158 = vld [vmem:[%s3 + $0x148] sm:$0xff]
  %v159 = vld [vmem:[%s3 + $0x150] sm:$0xff]
  %v160 = vld [vmem:[%s3 + $0x158] sm:$0xff]
  %v161 = vld [vmem:[%s3 + $0x160] sm:$0xff]
  %v162 = vld [vmem:[%s3 + $0x168] sm:$0xff]
  %v163 = vld [vmem:[%s3 + $0x170] sm:$0xff]
  %v164 = vld [vmem:[%s3 + $0x178] sm:$0xff]
  %v165 = vld [vmem:[%s4] sm:$0x7]
  %v167 = vlaneseq
  %v168 = vshrl.u32 %v167, 7
  %v169 = vsub.s32 0, %v168
  %v170 = vrot.slane %v165, %v169
  %v171 = vlaneseq
  %v172 = vshrl.u32 %v171, 7
  %v173 = vsub.s32 1, %v172
  %v174 = vrot.slane %v165, %v173
  %v175 = vlaneseq
  %v176 = vshrl.u32 %v175, 7
  %v177 = vsub.s32 2, %v176
  %v178 = vrot.slane %v165, %v177
  %182 = vmatprep.subr.mxu0 %v118
  %183 = vmatpush1.msra.mxu0 %v117
  %184 = vmatprep.subr.mxu0 %v121
  %185 = vmatpush1.msra.mxu0 %v120
  %186 = vmatprep.subr.mxu0 %v124
  %187 = vmatpush1.msra.mxu0 %v123
  %188 = vmatprep.subr.mxu0 %v127
  %189 = vmatpush1.msra.mxu0 %v126
  %190 = vmatprep.subr.mxu0 %v130
  %191 = vmatpush1.msra.mxu0 %v129
  %192 = vmatprep.subr.mxu0 %v133
  %193 = vmatpush1.msra.mxu0 %v132
  %194 = vmatprep.subr.mxu0 %v136
  %195 = vmatpush1.msra.mxu0 %v135
  %196 = vmatprep.subr.mxu0 %v139
  %197 = vmatpush1.msra.mxu0 %v138
  %198 = vmatprep.subr.mxu0 %v142
  %199 = vmatpush1.msra.mxu0 %v141
  %200 = vmatprep.subr.mxu0 %v145
  %201 = vmatpush1.msra.mxu0 %v144
  %202 = vmatprep.subr.mxu0 %v148
  %203 = vmatpush1.msra.mxu0 %v147
  %204 = vmatprep.subr.mxu0 %v151
  %205 = vmatpush1.msra.mxu0 %v150
  %206 = vmatprep.subr.mxu0 %v154
  %207 = vmatpush1.msra.mxu0 %v153
  %208 = vmatprep.subr.mxu0 %v157
  %209 = vmatpush1.msra.mxu0 %v156
  %210 = vmatprep.subr.mxu0 %v160
  %211 = vmatpush1.msra.mxu0 %v159
  %212 = vmatprep.subr.mxu0 %v163
  %213 = vmatpush1.msra.mxu0 %v162
  %214 = vmatprep.subr.mxu0 0.0
  %215 = vmatpush1.msra.mxu0 0.0
  %216 = vmatprep.subr.mxu0 0.0
  %217 = vmatpush1.msra.mxu0 0.0
  %218 = vmatprep.subr.mxu0 0.0
  %219 = vmatpush1.msra.mxu0 0.0
  %220 = vmatprep.subr.mxu0 0.0
  %221 = vmatpush1.msra.mxu0 0.0
  %222 = vmatprep.subr.mxu0 0.0
  %223 = vmatpush1.msra.mxu0 0.0
  %224 = vmatprep.subr.mxu0 0.0
  %225 = vmatpush1.msra.mxu0 0.0
  %226 = vmatprep.subr.mxu0 0.0
  %227 = vmatpush1.msra.mxu0 0.0
  %228 = vmatprep.subr.mxu0 0.0
  %229 = vmatpush1.msra.mxu0 0.0
  %230 = vmatprep.subr.mxu0 0.0
  %231 = vmatpush1.msra.mxu0 0.0
  %232 = vmatprep.subr.mxu0 0.0
  %233 = vmatpush1.msra.mxu0 0.0
  %234 = vmatprep.subr.mxu0 0.0
  %235 = vmatpush1.msra.mxu0 0.0
  %236 = vmatprep.subr.mxu0 0.0
  %237 = vmatpush1.msra.mxu0 0.0
  %238 = vmatprep.subr.mxu0 0.0
  %239 = vmatpush1.msra.mxu0 0.0
  %240 = vmatprep.subr.mxu0 0.0
  %241 = vmatpush1.msra.mxu0 0.0
  %242 = vmatprep.subr.mxu0 0.0
  %243 = vmatpush1.msra.mxu0 0.0
  %244 = vmatprep.subr.mxu0 0.0
  %245 = vmatpush1.msra.mxu0 0.0
  %246 = vmatprep.mubr.f32.mxu0 0.0
  %247 = vmatmul.mubr.f32.gmra.mrb[0].mxu0 %v112
  %v248 = vpop.f32.mrb[0].mxu0
  %v249 = vadd.f32 %v170, %v248
  %v250 = vpop.f32.mrb[0].mxu0
  %v251 = vadd.f32 %v174, %v250
  %252 = vmatprep.mubr.f32.mxu0 0.0
  %253 = vmatmul.mubr.f32.gmra.mrb[0].mxu0 %v113
  %v254 = vpop.f32.mrb[0].mxu0
  %v255 = vadd.f32 %v170, %v254
  %v256 = vpop.f32.mrb[0].mxu0
  %v257 = vadd.f32 %v174, %v256
  %258 = vmatprep.mubr.f32.mxu0 0.0
  %259 = vmatmul.mubr.f32.gmra.mrb[0].mxu0 %v114
  %v260 = vpop.f32.mrb[0].mxu0
  %v261 = vadd.f32 %v170, %v260
  %v262 = vpop.f32.mrb[0].mxu0
  %v263 = vadd.f32 %v174, %v262
  %264 = vmatprep.mubr.f32.mxu0 0.0
  %265 = vmatmul.mubr.f32.gmra.mrb[0].mxu0 %v115
  %v266 = vpop.f32.mrb[0].mxu0
  %v267 = vadd.f32 %v170, %v266
  %v268 = vpop.f32.mrb[0].mxu0
  %v269 = vadd.f32 %v174, %v268
  %270 = vmatprep.mubr.f32.mxu0 0.0
  %271 = vmatmul.mubr.f32.gmra.mrb[0].mxu0 %v116
  %v272 = vpop.f32.mrb[0].mxu0
  %v273 = vadd.f32 %v170, %v272
  %v274 = vpop.f32.mrb[0].mxu0
  %v275 = vadd.f32 %v174, %v274
  %276 = vdwg.mxu0
  %277 = vmatprep.subr.mxu0 0.0
  %278 = vmatpush1.msra.mxu0 %v119
  %279 = vmatprep.subr.mxu0 0.0
  %280 = vmatpush1.msra.mxu0 %v122
  %281 = vmatprep.subr.mxu0 0.0
  %282 = vmatpush1.msra.mxu0 %v125
  %283 = vmatprep.subr.mxu0 0.0
  %284 = vmatpush1.msra.mxu0 %v128
  %285 = vmatprep.subr.mxu0 0.0
  %286 = vmatpush1.msra.mxu0 %v131
  %287 = vmatprep.subr.mxu0 0.0
  %288 = vmatpush1.msra.mxu0 %v134
  %289 = vmatprep.subr.mxu0 0.0
  %290 = vmatpush1.msra.mxu0 %v137
  %291 = vmatprep.subr.mxu0 0.0
  %292 = vmatpush1.msra.mxu0 %v140
  %293 = vmatprep.subr.mxu0 0.0
  %294 = vmatpush1.msra.mxu0 %v143
  %295 = vmatprep.subr.mxu0 0.0
  %296 = vmatpush1.msra.mxu0 %v146
  %297 = vmatprep.subr.mxu0 0.0
  %298 = vmatpush1.msra.mxu0 %v149
  %299 = vmatprep.subr.mxu0 0.0
  %300 = vmatpush1.msra.mxu0 %v152
  %301 = vmatprep.subr.mxu0 0.0
  %302 = vmatpush1.msra.mxu0 %v155
  %303 = vmatprep.subr.mxu0 0.0
  %304 = vmatpush1.msra.mxu0 %v158
  %305 = vmatprep.subr.mxu0 0.0
  %306 = vmatpush1.msra.mxu0 %v161
  %307 = vmatprep.subr.mxu0 0.0
  %308 = vmatpush1.msra.mxu0 %v164
  %309 = vmatprep.subr.mxu0 0.0
  %310 = vmatpush1.msra.mxu0 0.0
  %311 = vmatprep.subr.mxu0 0.0
  %312 = vmatpush1.msra.mxu0 0.0
  %313 = vmatprep.subr.mxu0 0.0
  %314 = vmatpush1.msra.mxu0 0.0
  %315 = vmatprep.subr.mxu0 0.0
  %316 = vmatpush1.msra.mxu0 0.0
  %317 = vmatprep.subr.mxu0 0.0
  %318 = vmatpush1.msra.mxu0 0.0
  %319 = vmatprep.subr.mxu0 0.0
  %320 = vmatpush1.msra.mxu0 0.0
  %321 = vmatprep.subr.mxu0 0.0
  %322 = vmatpush1.msra.mxu0 0.0
  %323 = vmatprep.subr.mxu0 0.0
  %324 = vmatpush1.msra.mxu0 0.0
  %325 = vmatprep.subr.mxu0 0.0
  %326 = vmatpush1.msra.mxu0 0.0
  %327 = vmatprep.subr.mxu0 0.0
  %328 = vmatpush1.msra.mxu0 0.0
  %329 = vmatprep.subr.mxu0 0.0
  %330 = vmatpush1.msra.mxu0 0.0
  %331 = vmatprep.subr.mxu0 0.0
  %332 = vmatpush1.msra.mxu0 0.0
  %333 = vmatprep.subr.mxu0 0.0
  %334 = vmatpush1.msra.mxu0 0.0
  %335 = vmatprep.subr.mxu0 0.0
  %336 = vmatpush1.msra.mxu0 0.0
  %337 = vmatprep.subr.mxu0 0.0
  %338 = vmatpush1.msra.mxu0 0.0
  %339 = vmatprep.subr.mxu0 0.0
  %340 = vmatpush1.msra.mxu0 0.0
  %341 = vmatprep.mubr.f32.mxu0 0.0
  %342 = vmatmul.mubr.f32.gmra.mrb[0].mxu0 %v112
  %v343 = vpop.f32.mrb[0].mxu0
  %v344 = vadd.f32 %v178, %v343
  %v345 = vpop.f32.mrb[0].mxu0
  %346 = vmatprep.mubr.f32.mxu0 0.0
  %347 = vmatmul.mubr.f32.gmra.mrb[0].mxu0 %v113
  %v348 = vpop.f32.mrb[0].mxu0
  %v349 = vadd.f32 %v178, %v348
  %v350 = vpop.f32.mrb[0].mxu0
  %351 = vmatprep.mubr.f32.mxu0 0.0
  %352 = vmatmul.mubr.f32.gmra.mrb[0].mxu0 %v114
  %v353 = vpop.f32.mrb[0].mxu0
  %v354 = vadd.f32 %v178, %v353
  %v355 = vpop.f32.mrb[0].mxu0
  %356 = vmatprep.mubr.f32.mxu0 0.0
  %357 = vmatmul.mubr.f32.gmra.mrb[0].mxu0 %v115
  %v358 = vpop.f32.mrb[0].mxu0
  %v359 = vadd.f32 %v178, %v358
  %v360 = vpop.f32.mrb[0].mxu0
  %361 = vmatprep.mubr.f32.mxu0 0.0
  %362 = vmatmul.mubr.f32.gmra.mrb[0].mxu0 %v116
  %v363 = vpop.f32.mrb[0].mxu0
  %v364 = vadd.f32 %v178, %v363
  %v365 = vpop.f32.mrb[0].mxu0
  %366 = vdwg.mxu0
  %367 = vst [vmem:[%s5] sm:$0xff] %v249
  %368 = vst [vmem:[%s5 + $0x8] sm:$0xff] %v251
  %369 = vst [vmem:[%s5 + $0x10] sm:$0xff] %v344
  %370 = vst [vmem:[%s5 + $0x18] sm:$0xff] %v255
  %371 = vst [vmem:[%s5 + $0x20] sm:$0xff] %v257
  %372 = vst [vmem:[%s5 + $0x28] sm:$0xff] %v349
  %373 = vst [vmem:[%s5 + $0x30] sm:$0xff] %v261
  %374 = vst [vmem:[%s5 + $0x38] sm:$0xff] %v263
  %375 = vst [vmem:[%s5 + $0x40] sm:$0xff] %v354
  %376 = vst [vmem:[%s5 + $0x48] sm:$0xff] %v267
  %377 = vst [vmem:[%s5 + $0x50] sm:$0xff] %v269
  %378 = vst [vmem:[%s5 + $0x58] sm:$0xff] %v359
  %379 = vst [vmem:[%s5 + $0x60] sm:$0x3] %v273
  %380 = vst [vmem:[%s5 + $0x68] sm:$0x3] %v275
  %381 = vst [vmem:[%s5 + $0x70] sm:$0x3] %v364
  // Predicated region
  $region22: #{vit_forward.13} parent=0 // pred_check
    _
  $region23: #{vit_forward.13} parent=0 // pred_check_branch
    %383 = sbr.rel (0) target = $region25
  $region24: #{vit_forward.13} parent=0 // pred_region
    _
  $region25: #{vit_forward.13} parent=0 // pred_fallthru
    _
  // Predicated region
  $region26: #{vit_forward.13} parent=0 // pred_check
    _
  $region27: #{vit_forward.13} parent=0 // pred_check_branch
    %385 = sbr.rel (0) target = $region29
  $region28: #{vit_forward.13} parent=0 // pred_region
    _
  $region29: #{vit_forward.13} parent=0 // pred_fallthru
    _

// kernel: vit_forward.14
$region0: #{vit_forward.14}
  #allocation0 [shape = 'u32[]', space=smem, size = 0x4, offset = 0x4, fixed_abs, tag = 'smem constant byte address 0x4 - core index']
  #allocation1 [shape = 'u32[144,128]{1,0:T(1,128)}', space=vmem, size = 0x12000, scoped, tag = 'internal scratch']
  %s0 = inlined_call_operand.vmem [shape: f32[8,17,8], index: 0, kind: input, shape index: {}]
  %s1 = inlined_call_operand.vmem [shape: f32[8,17,8], index: 1, kind: input, shape index: {}]
  %s2 = inlined_call_operand.vmem [shape: f32[8,17,8], index: 2, kind: input, shape index: {}]
  %s3 = inlined_call_operand.vmem [shape: f32[8,17,8], index: 3, kind: output, shape index: {}]
  %s4 = sld [smem:[#allocation0]]
  $region22: #{vit_forward.14} parent=0
    _
  %s6 = ssub.s32 1, %s4
  %s7 = scalar_select 0, %s6, %s4
  // Predicated region
  $region2: #{vit_forward.14} parent=0 // pred_check
    _
  $region3: #{vit_forward.14} parent=0 // pred_check_branch
    %9 = sbr.rel (0) target = $region5
  $region4: #{vit_forward.14} parent=0 // pred_region
    _
  $region5: #{vit_forward.14} parent=0 // pred_fallthru
    _
  // Predicated region
  $region6: #{vit_forward.14} parent=0 // pred_check
    _
  $region7: #{vit_forward.14} parent=0 // pred_check_branch
    %11 = sbr.rel (0) target = $region9
  $region8: #{vit_forward.14} parent=0 // pred_region
    _
  $region9: #{vit_forward.14} parent=0 // pred_fallthru
    _
  // Predicated region
  $region10: #{vit_forward.14} parent=0 // pred_check
    _
  $region11: #{vit_forward.14} parent=0 // pred_check_branch
    %13 = sbr.rel (0) target = $region13
  $region12: #{vit_forward.14} parent=0 // pred_region
    _
  $region13: #{vit_forward.14} parent=0 // pred_fallthru
    _
  %v14 = vld [vmem:[%s0] sm:$0xff]
  %v15 = vld [vmem:[%s0 + $0x8] sm:$0xff]
  %v16 = vld [vmem:[%s0 + $0x10] sm:$0x1]
  %v17 = vld [vmem:[%s0 + $0x18] sm:$0xff]
  %v18 = vld [vmem:[%s0 + $0x20] sm:$0xff]
  %v19 = vld [vmem:[%s0 + $0x28] sm:$0x1]
  %v20 = vld [vmem:[%s0 + $0x30] sm:$0xff]
  %v21 = vld [vmem:[%s0 + $0x38] sm:$0xff]
  %v22 = vld [vmem:[%s0 + $0x40] sm:$0x1]
  %v23 = vld [vmem:[%s0 + $0x48] sm:$0xff]
  %v24 = vld [vmem:[%s0 + $0x50] sm:$0xff]
  %v25 = vld [vmem:[%s0 + $0x58] sm:$0x1]
  %v26 = vld [vmem:[%s0 + $0x60] sm:$0xff]
  %v27 = vld [vmem:[%s0 + $0x68] sm:$0xff]
  %v28 = vld [vmem:[%s0 + $0x70] sm:$0x1]
  %v29 = vld [vmem:[%s0 + $0x78] sm:$0xff]
  %v30 = vld [vmem:[%s0 + $0x80] sm:$0xff]
  %v31 = vld [vmem:[%s0 + $0x88] sm:$0x1]
  %v32 = vld [vmem:[%s0 + $0x90] sm:$0xff]
  %v33 = vld [vmem:[%s0 + $0x98] sm:$0xff]
  %v34 = vld [vmem:[%s0 + $0xa0] sm:$0x1]
  %v35 = vld [vmem:[%s0 + $0xa8] sm:$0xff]
  %v36 = vld [vmem:[%s0 + $0xb0] sm:$0xff]
  %v37 = vld [vmem:[%s0 + $0xb8] sm:$0x1]
  %v38 = vld [vmem:[%s1] sm:$0xff]
  %v39 = vld [vmem:[%s1 + $0x8] sm:$0xff]
  %v40 = vld [vmem:[%s1 + $0x10] sm:$0x1]
  %v41 = vld [vmem:[%s1 + $0x18] sm:$0xff]
  %v42 = vld [vmem:[%s1 + $0x20] sm:$0xff]
  %v43 = vld [vmem:[%s1 + $0x28] sm:$0x1]
  %v44 = vld [vmem:[%s1 + $0x30] sm:$0xff]
  %v45 = vld [vmem:[%s1 + $0x38] sm:$0xff]
  %v46 = vld [vmem:[%s1 + $0x40] sm:$0x1]
  %v47 = vld [vmem:[%s1 + $0x48] sm:$0xff]
  %v48 = vld [vmem:[%s1 + $0x50] sm:$0xff]
  %v49 = vld [vmem:[%s1 + $0x58] sm:$0x1]
  %v50 = vld [vmem:[%s1 + $0x60] sm:$0xff]
  %v51 = vld [vmem:[%s1 + $0x68] sm:$0xff]
  %v52 = vld [vmem:[%s1 + $0x70] sm:$0x1]
  %v53 = vld [vmem:[%s1 + $0x78] sm:$0xff]
  %v54 = vld [vmem:[%s1 + $0x80] sm:$0xff]
  %v55 = vld [vmem:[%s1 + $0x88] sm:$0x1]
  %v56 = vld [vmem:[%s1 + $0x90] sm:$0xff]
  %v57 = vld [vmem:[%s1 + $0x98] sm:$0xff]
  %v58 = vld [vmem:[%s1 + $0xa0] sm:$0x1]
  %v59 = vld [vmem:[%s1 + $0xa8] sm:$0xff]
  %v60 = vld [vmem:[%s1 + $0xb0] sm:$0xff]
  %v61 = vld [vmem:[%s1 + $0xb8] sm:$0x1]
  %v62 = vld [vmem:[%s2] sm:$0xff]
  %v63 = vld [vmem:[%s2 + $0x8] sm:$0xff]
  %v64 = vld [vmem:[%s2 + $0x10] sm:$0x1]
  %v65 = vld [vmem:[%s2 + $0x18] sm:$0xff]
  %v66 = vld [vmem:[%s2 + $0x20] sm:$0xff]
  %v67 = vld [vmem:[%s2 + $0x28] sm:$0x1]
  %v68 = vld [vmem:[%s2 + $0x30] sm:$0xff]
  %v69 = vld [vmem:[%s2 + $0x38] sm:$0xff]
  %v70 = vld [vmem:[%s2 + $0x40] sm:$0x1]
  %v71 = vld [vmem:[%s2 + $0x48] sm:$0xff]
  %v72 = vld [vmem:[%s2 + $0x50] sm:$0xff]
  %v73 = vld [vmem:[%s2 + $0x58] sm:$0x1]
  %v74 = vld [vmem:[%s2 + $0x60] sm:$0xff]
  %v75 = vld [vmem:[%s2 + $0x68] sm:$0xff]
  %v76 = vld [vmem:[%s2 + $0x70] sm:$0x1]
  %v77 = vld [vmem:[%s2 + $0x78] sm:$0xff]
  %v78 = vld [vmem:[%s2 + $0x80] sm:$0xff]
  %v79 = vld [vmem:[%s2 + $0x88] sm:$0x1]
  %v80 = vld [vmem:[%s2 + $0x90] sm:$0xff]
  %v81 = vld [vmem:[%s2 + $0x98] sm:$0xff]
  %v82 = vld [vmem:[%s2 + $0xa0] sm:$0x1]
  %v83 = vld [vmem:[%s2 + $0xa8] sm:$0xff]
  %v84 = vld [vmem:[%s2 + $0xb0] sm:$0xff]
  %v85 = vld [vmem:[%s2 + $0xb8] sm:$0x1]
  %vm86 = vcmask 64512
  %v88 = vsel %vm86, %v14, 0
  %v91 = vsel %vm86, %v15, 0
  %v94 = vsel %vm86, %v16, 0
  %v97 = vsel %vm86, %v38, 0
  %v100 = vsel %vm86, %v39, 0
  %v103 = vsel %vm86, %v40, 0
  %105 = vmatprep.subr.mxu0 0.0
  %106 = vmatpush1.xpose.msra.mxu0 %v97
  %107 = vmatprep.subr.mxu0 0.0
  %108 = vmatpush1.xpose.msra.mxu0 %v100
  %109 = vmatprep.subr.mxu0 0.0
  %110 = vmatpush1.xpose.msra.mxu0 %v103
  %111 = vmatprep.subr.mxu0 0.0
  %112 = vmatpush1.xpose.msra.mxu0 0.0
  %113 = vmatprep.subr.mxu0 0.0
  %114 = vmatpush1.xpose.msra.mxu0 0.0
  %115 = vmatprep.subr.mxu0 0.0
  %116 = vmatpush1.xpose.msra.mxu0 0.0
  %117 = vmatprep.subr.mxu0 0.0
  %118 = vmatpush1.xpose.msra.mxu0 0.0
  %119 = vmatprep.subr.mxu0 0.0
  %120 = vmatpush1.xpose.msra.mxu0 0.0
  %121 = vmatprep.subr.mxu0 0.0
  %122 = vmatpush1.xpose.msra.mxu0 0.0
  %123 = vmatprep.subr.mxu0 0.0
  %124 = vmatpush1.xpose.msra.mxu0 0.0
  %125 = vmatprep.subr.mxu0 0.0
  %126 = vmatpush1.xpose.msra.mxu0 0.0
  %127 = vmatprep.subr.mxu0 0.0
  %128 = vmatpush1.xpose.msra.mxu0 0.0
  %129 = vmatprep.subr.mxu0 0.0
  %130 = vmatpush1.xpose.msra.mxu0 0.0
  %131 = vmatprep.subr.mxu0 0.0
  %132 = vmatpush1.xpose.msra.mxu0 0.0
  %133 = vmatprep.subr.mxu0 0.0
  %134 = vmatpush1.xpose.msra.mxu0 0.0
  %135 = vmatprep.subr.mxu0 0.0
  %136 = vmatpush1.xpose.msra.mxu0 0.0
  %137 = vmatprep.subr.mxu0 0.0
  %138 = vmatpush1.xpose.msra.mxu0 0.0
  %139 = vmatprep.subr.mxu0 0.0
  %140 = vmatpush1.xpose.msra.mxu0 0.0
  %141 = vmatprep.subr.mxu0 0.0
  %142 = vmatpush1.xpose.msra.mxu0 0.0
  %143 = vmatprep.subr.mxu0 0.0
  %144 = vmatpush1.xpose.msra.mxu0 0.0
  %145 = vmatprep.subr.mxu0 0.0
  %146 = vmatpush1.xpose.msra.mxu0 0.0
  %147 = vmatprep.subr.mxu0 0.0
  %148 = vmatpush1.xpose.msra.mxu0 0.0
  %149 = vmatprep.subr.mxu0 0.0
  %150 = vmatpush1.xpose.msra.mxu0 0.0
  %151 = vmatprep.subr.mxu0 0.0
  %152 = vmatpush1.xpose.msra.mxu0 0.0
  %153 = vmatprep.subr.mxu0 0.0
  %154 = vmatpush1.xpose.msra.mxu0 0.0
  %155 = vmatprep.subr.mxu0 0.0
  %156 = vmatpush1.xpose.msra.mxu0 0.0
  %157 = vmatprep.subr.mxu0 0.0
  %158 = vmatpush1.xpose.msra.mxu0 0.0
  %159 = vmatprep.subr.mxu0 0.0
  %160 = vmatpush1.xpose.msra.mxu0 0.0
  %161 = vmatprep.subr.mxu0 0.0
  %162 = vmatpush1.xpose.msra.mxu0 0.0
  %163 = vmatprep.subr.mxu0 0.0
  %164 = vmatpush1.xpose.msra.mxu0 0.0
  %165 = vmatprep.subr.mxu0 0.0
  %166 = vmatpush1.xpose.msra.mxu0 0.0
  %167 = vmatprep.subr.mxu0 0.0
  %168 = vmatpush1.xpose.msra.mxu0 0.0
  %169 = vmatprep.mubr.f32.mxu0 0.0
  %170 = vmatmul.mubr.f32.gmra.mrb[0].mxu0 %v88
  %v171 = vpop.f32.mrb[0].mxu0
  %v172 = vadd.f32 0.0, %v171
  %v173 = vpop.f32.mrb[0].mxu0
  %174 = vmatprep.mubr.f32.mxu0 0.0
  %175 = vmatmul.mubr.f32.gmra.mrb[0].mxu0 %v91
  %v176 = vpop.f32.mrb[0].mxu0
  %v177 = vadd.f32 0.0, %v176
  %v178 = vpop.f32.mrb[0].mxu0
  %179 = vmatprep.mubr.f32.mxu0 0.0
  %180 = vmatmul.mubr.f32.gmra.mrb[0].mxu0 %v94
  %v181 = vpop.f32.mrb[0].mxu0
  %v182 = vadd.f32 0.0, %v181
  %v183 = vpop.f32.mrb[0].mxu0
  %184 = vdwg.mxu0
  %v186 = vsel %vm86, %v17, 0
  %v189 = vsel %vm86, %v18, 0
  %v192 = vsel %vm86, %v19, 0
  %v195 = vsel %vm86, %v41, 0
  %v198 = vsel %vm86, %v42, 0
  %v201 = vsel %vm86, %v43, 0
  %203 = vmatprep.subr.mxu0 0.0
  %204 = vmatpush1.xpose.msra.mxu0 %v195
  %205 = vmatprep.subr.mxu0 0.0
  %206 = vmatpush1.xpose.msra.mxu0 %v198
  %207 = vmatprep.subr.mxu0 0.0
  %208 = vmatpush1.xpose.msra.mxu0 %v201
  %209 = vmatprep.subr.mxu0 0.0
  %210 = vmatpush1.xpose.msra.mxu0 0.0
  %211 = vmatprep.subr.mxu0 0.0
  %212 = vmatpush1.xpose.msra.mxu0 0.0
  %213 = vmatprep.subr.mxu0 0.0
  %214 = vmatpush1.xpose.msra.mxu0 0.0
  %215 = vmatprep.subr.mxu0 0.0
  %216 = vmatpush1.xpose.msra.mxu0 0.0
  %217 = vmatprep.subr.mxu0 0.0
  %218 = vmatpush1.xpose.msra.mxu0 0.0
  %219 = vmatprep.subr.mxu0 0.0
  %220 = vmatpush1.xpose.msra.mxu0 0.0
  %221 = vmatprep.subr.mxu0 0.0
  %222 = vmatpush1.xpose.msra.mxu0 0.0
  %223 = vmatprep.subr.mxu0 0.0
  %224 = vmatpush1.xpose.msra.mxu0 0.0
  %225 = vmatprep.subr.mxu0 0.0
  %226 = vmatpush1.xpose.msra.mxu0 0.0
  %227 = vmatprep.subr.mxu0 0.0
  %228 = vmatpush1.xpose.msra.mxu0 0.0
  %229 = vmatprep.subr.mxu0 0.0
  %230 = vmatpush1.xpose.msra.mxu0 0.0
  %231 = vmatprep.subr.mxu0 0.0
  %232 = vmatpush1.xpose.msra.mxu0 0.0
  %233 = vmatprep.subr.mxu0 0.0
  %234 = vmatpush1.xpose.msra.mxu0 0.0
  %235 = vmatprep.subr.mxu0 0.0
  %236 = vmatpush1.xpose.msra.mxu0 0.0
  %237 = vmatprep.subr.mxu0 0.0
  %238 = vmatpush1.xpose.msra.mxu0 0.0
  %239 = vmatprep.subr.mxu0 0.0
  %240 = vmatpush1.xpose.msra.mxu0 0.0
  %241 = vmatprep.subr.mxu0 0.0
  %242 = vmatpush1.xpose.msra.mxu0 0.0
  %243 = vmatprep.subr.mxu0 0.0
  %244 = vmatpush1.xpose.msra.mxu0 0.0
  %245 = vmatprep.subr.mxu0 0.0
  %246 = vmatpush1.xpose.msra.mxu0 0.0
  %247 = vmatprep.subr.mxu0 0.0
  %248 = vmatpush1.xpose.msra.mxu0 0.0
  %249 = vmatprep.subr.mxu0 0.0
  %250 = vmatpush1.xpose.msra.mxu0 0.0
  %251 = vmatprep.subr.mxu0 0.0
  %252 = vmatpush1.xpose.msra.mxu0 0.0
  %253 = vmatprep.subr.mxu0 0.0
  %254 = vmatpush1.xpose.msra.mxu0 0.0
  %255 = vmatprep.subr.mxu0 0.0
  %256 = vmatpush1.xpose.msra.mxu0 0.0
  %257 = vmatprep.subr.mxu0 0.0
  %258 = vmatpush1.xpose.msra.mxu0 0.0
  %259 = vmatprep.subr.mxu0 0.0
  %260 = vmatpush1.xpose.msra.mxu0 0.0
  %261 = vmatprep.subr.mxu0 0.0
  %262 = vmatpush1.xpose.msra.mxu0 0.0
  %263 = vmatprep.subr.mxu0 0.0
  %264 = vmatpush1.xpose.msra.mxu0 0.0
  %265 = vmatprep.subr.mxu0 0.0
  %266 = vmatpush1.xpose.msra.mxu0 0.0
  %267 = vmatprep.mubr.f32.mxu0 0.0
  %268 = vmatmul.mubr.f32.gmra.mrb[0].mxu0 %v186
  %v269 = vpop.f32.mrb[0].mxu0
  %v270 = vadd.f32 0.0, %v269
  %v271 = vpop.f32.mrb[0].mxu0
  %272 = vmatprep.mubr.f32.mxu0 0.0
  %273 = vmatmul.mubr.f32.gmra.mrb[0].mxu0 %v189
  %v274 = vpop.f32.mrb[0].mxu0
  %v275 = vadd.f32 0.0, %v274
  %v276 = vpop.f32.mrb[0].mxu0
  %277 = vmatprep.mubr.f32.mxu0 0.0
  %278 = vmatmul.mubr.f32.gmra.mrb[0].mxu0 %v192
  %v279 = vpop.f32.mrb[0].mxu0
  %v280 = vadd.f32 0.0, %v279
  %v281 = vpop.f32.mrb[0].mxu0
  %282 = vdwg.mxu0
  %v284 = vsel %vm86, %v20, 0
  %v287 = vsel %vm86, %v21, 0
  %v290 = vsel %vm86, %v22, 0
  %v293 = vsel %vm86, %v44, 0
  %v296 = vsel %vm86, %v45, 0
  %v299 = vsel %vm86, %v46, 0
  %301 = vmatprep.subr.mxu0 0.0
  %302 = vmatpush1.xpose.msra.mxu0 %v293
  %303 = vmatprep.subr.mxu0 0.0
  %304 = vmatpush1.xpose.msra.mxu0 %v296
  %305 = vmatprep.subr.mxu0 0.0
  %306 = vmatpush1.xpose.msra.mxu0 %v299
  %307 = vmatprep.subr.mxu0 0.0
  %308 = vmatpush1.xpose.msra.mxu0 0.0
  %309 = vmatprep.subr.mxu0 0.0
  %310 = vmatpush1.xpose.msra.mxu0 0.0
  %311 = vmatprep.subr.mxu0 0.0
  %312 = vmatpush1.xpose.msra.mxu0 0.0
  %313 = vmatprep.subr.mxu0 0.0
  %314 = vmatpush1.xpose.msra.mxu0 0.0
  %315 = vmatprep.subr.mxu0 0.0
  %316 = vmatpush1.xpose.msra.mxu0 0.0
  %317 = vmatprep.subr.mxu0 0.0
  %318 = vmatpush1.xpose.msra.mxu0 0.0
  %319 = vmatprep.subr.mxu0 0.0
  %320 = vmatpush1.xpose.msra.mxu0 0.0
  %321 = vmatprep.subr.mxu0 0.0
  %322 = vmatpush1.xpose.msra.mxu0 0.0
  %323 = vmatprep.subr.mxu0 0.0
  %324 = vmatpush1.xpose.msra.mxu0 0.0
  %325 = vmatprep.subr.mxu0 0.0
  %326 = vmatpush1.xpose.msra.mxu0 0.0
  %327 = vmatprep.subr.mxu0 0.0
  %328 = vmatpush1.xpose.msra.mxu0 0.0
  %329 = vmatprep.subr.mxu0 0.0
  %330 = vmatpush1.xpose.msra.mxu0 0.0
  %331 = vmatprep.subr.mxu0 0.0
  %332 = vmatpush1.xpose.msra.mxu0 0.0
  %333 = vmatprep.subr.mxu0 0.0
  %334 = vmatpush1.xpose.msra.mxu0 0.0
  %335 = vmatprep.subr.mxu0 0.0
  %336 = vmatpush1.xpose.msra.mxu0 0.0
  %337 = vmatprep.subr.mxu0 0.0
  %338 = vmatpush1.xpose.msra.mxu0 0.0
  %339 = vmatprep.subr.mxu0 0.0
  %340 = vmatpush1.xpose.msra.mxu0 0.0
  %341 = vmatprep.subr.mxu0 0.0
  %342 = vmatpush1.xpose.msra.mxu0 0.0
  %343 = vmatprep.subr.mxu0 0.0
  %344 = vmatpush1.xpose.msra.mxu0 0.0
  %345 = vmatprep.subr.mxu0 0.0
  %346 = vmatpush1.xpose.msra.mxu0 0.0
  %347 = vmatprep.subr.mxu0 0.0
  %348 = vmatpush1.xpose.msra.mxu0 0.0
  %349 = vmatprep.subr.mxu0 0.0
  %350 = vmatpush1.xpose.msra.mxu0 0.0
  %351 = vmatprep.subr.mxu0 0.0
  %352 = vmatpush1.xpose.msra.mxu0 0.0
  %353 = vmatprep.subr.mxu0 0.0
  %354 = vmatpush1.xpose.msra.mxu0 0.0
  %355 = vmatprep.subr.mxu0 0.0
  %356 = vmatpush1.xpose.msra.mxu0 0.0
  %357 = vmatprep.subr.mxu0 0.0
  %358 = vmatpush1.xpose.msra.mxu0 0.0
  %359 = vmatprep.subr.mxu0 0.0
  %360 = vmatpush1.xpose.msra.mxu0 0.0
  %361 = vmatprep.subr.mxu0 0.0
  %362 = vmatpush1.xpose.msra.mxu0 0.0
  %363 = vmatprep.subr.mxu0 0.0
  %364 = vmatpush1.xpose.msra.mxu0 0.0
  %365 = vmatprep.mubr.f32.mxu0 0.0
  %366 = vmatmul.mubr.f32.gmra.mrb[0].mxu0 %v284
  %v367 = vpop.f32.mrb[0].mxu0
  %v368 = vadd.f32 0.0, %v367
  %v369 = vpop.f32.mrb[0].mxu0
  %370 = vmatprep.mubr.f32.mxu0 0.0
  %371 = vmatmul.mubr.f32.gmra.mrb[0].mxu0 %v287
  %v372 = vpop.f32.mrb[0].mxu0
  %v373 = vadd.f32 0.0, %v372
  %v374 = vpop.f32.mrb[0].mxu0
  %375 = vmatprep.mubr.f32.mxu0 0.0
  %376 = vmatmul.mubr.f32.gmra.mrb[0].mxu0 %v290
  %v377 = vpop.f32.mrb[0].mxu0
  %v378 = vadd.f32 0.0, %v377
  %v379 = vpop.f32.mrb[0].mxu0
  %380 = vdwg.mxu0
  %v382 = vsel %vm86, %v23, 0
  %v385 = vsel %vm86, %v24, 0
  %v388 = vsel %vm86, %v25, 0
  %v391 = vsel %vm86, %v47, 0
  %v394 = vsel %vm86, %v48, 0
  %v397 = vsel %vm86, %v49, 0
  %399 = vmatprep.subr.mxu0 0.0
  %400 = vmatpush1.xpose.msra.mxu0 %v391
  %401 = vmatprep.subr.mxu0 0.0
  %402 = vmatpush1.xpose.msra.mxu0 %v394
  %403 = vmatprep.subr.mxu0 0.0
  %404 = vmatpush1.xpose.msra.mxu0 %v397
  %405 = vmatprep.subr.mxu0 0.0
  %406 = vmatpush1.xpose.msra.mxu0 0.0
  %407 = vmatprep.subr.mxu0 0.0
  %408 = vmatpush1.xpose.msra.mxu0 0.0
  %409 = vmatprep.subr.mxu0 0.0
  %410 = vmatpush1.xpose.msra.mxu0 0.0
  %411 = vmatprep.subr.mxu0 0.0
  %412 = vmatpush1.xpose.msra.mxu0 0.0
  %413 = vmatprep.subr.mxu0 0.0
  %414 = vmatpush1.xpose.msra.mxu0 0.0
  %415 = vmatprep.subr.mxu0 0.0
  %416 = vmatpush1.xpose.msra.mxu0 0.0
  %417 = vmatprep.subr.mxu0 0.0
  %418 = vmatpush1.xpose.msra.mxu0 0.0
  %419 = vmatprep.subr.mxu0 0.0
  %420 = vmatpush1.xpose.msra.mxu0 0.0
  %421 = vmatprep.subr.mxu0 0.0
  %422 = vmatpush1.xpose.msra.mxu0 0.0
  %423 = vmatprep.subr.mxu0 0.0
  %424 = vmatpush1.xpose.msra.mxu0 0.0
  %425 = vmatprep.subr.mxu0 0.0
  %426 = vmatpush1.xpose.msra.mxu0 0.0
  %427 = vmatprep.subr.mxu0 0.0
  %428 = vmatpush1.xpose.msra.mxu0 0.0
  %429 = vmatprep.subr.mxu0 0.0
  %430 = vmatpush1.xpose.msra.mxu0 0.0
  %431 = vmatprep.subr.mxu0 0.0
  %432 = vmatpush1.xpose.msra.mxu0 0.0
  %433 = vmatprep.subr.mxu0 0.0
  %434 = vmatpush1.xpose.msra.mxu0 0.0
  %435 = vmatprep.subr.mxu0 0.0
  %436 = vmatpush1.xpose.msra.mxu0 0.0
  %437 = vmatprep.subr.mxu0 0.0
  %438 = vmatpush1.xpose.msra.mxu0 0.0
  %439 = vmatprep.subr.mxu0 0.0
  %440 = vmatpush1.xpose.msra.mxu0 0.0
  %441 = vmatprep.subr.mxu0 0.0
  %442 = vmatpush1.xpose.msra.mxu0 0.0
  %443 = vmatprep.subr.mxu0 0.0
  %444 = vmatpush1.xpose.msra.mxu0 0.0
  %445 = vmatprep.subr.mxu0 0.0
  %446 = vmatpush1.xpose.msra.mxu0 0.0
  %447 = vmatprep.subr.mxu0 0.0
  %448 = vmatpush1.xpose.msra.mxu0 0.0
  %449 = vmatprep.subr.mxu0 0.0
  %450 = vmatpush1.xpose.msra.mxu0 0.0
  %451 = vmatprep.subr.mxu0 0.0
  %452 = vmatpush1.xpose.msra.mxu0 0.0
  %453 = vmatprep.subr.mxu0 0.0
  %454 = vmatpush1.xpose.msra.mxu0 0.0
  %455 = vmatprep.subr.mxu0 0.0
  %456 = vmatpush1.xpose.msra.mxu0 0.0
  %457 = vmatprep.subr.mxu0 0.0
  %458 = vmatpush1.xpose.msra.mxu0 0.0
  %459 = vmatprep.subr.mxu0 0.0
  %460 = vmatpush1.xpose.msra.mxu0 0.0
  %461 = vmatprep.subr.mxu0 0.0
  %462 = vmatpush1.xpose.msra.mxu0 0.0
  %463 = vmatprep.mubr.f32.mxu0 0.0
  %464 = vmatmul.mubr.f32.gmra.mrb[0].mxu0 %v382
  %v465 = vpop.f32.mrb[0].mxu0
  %v466 = vadd.f32 0.0, %v465
  %v467 = vpop.f32.mrb[0].mxu0
  %468 = vmatprep.mubr.f32.mxu0 0.0
  %469 = vmatmul.mubr.f32.gmra.mrb[0].mxu0 %v385
  %v470 = vpop.f32.mrb[0].mxu0
  %v471 = vadd.f32 0.0, %v470
  %v472 = vpop.f32.mrb[0].mxu0
  %473 = vmatprep.mubr.f32.mxu0 0.0
  %474 = vmatmul.mubr.f32.gmra.mrb[0].mxu0 %v388
  %v475 = vpop.f32.mrb[0].mxu0
  %v476 = vadd.f32 0.0, %v475
  %v477 = vpop.f32.mrb[0].mxu0
  %478 = vdwg.mxu0
  %v480 = vsel %vm86, %v26, 0
  %v483 = vsel %vm86, %v27, 0
  %v486 = vsel %vm86, %v28, 0
  %v489 = vsel %vm86, %v50, 0
  %v492 = vsel %vm86, %v51, 0
  %v495 = vsel %vm86, %v52, 0
  %497 = vmatprep.subr.mxu0 0.0
  %498 = vmatpush1.xpose.msra.mxu0 %v489
  %499 = vmatprep.subr.mxu0 0.0
  %500 = vmatpush1.xpose.msra.mxu0 %v492
  %501 = vmatprep.subr.mxu0 0.0
  %502 = vmatpush1.xpose.msra.mxu0 %v495
  %503 = vmatprep.subr.mxu0 0.0
  %504 = vmatpush1.xpose.msra.mxu0 0.0
  %505 = vmatprep.subr.mxu0 0.0
  %506 = vmatpush1.xpose.msra.mxu0 0.0
  %507 = vmatprep.subr.mxu0 0.0
  %508 = vmatpush1.xpose.msra.mxu0 0.0
  %509 = vmatprep.subr.mxu0 0.0
  %510 = vmatpush1.xpose.msra.mxu0 0.0
  %511 = vmatprep.subr.mxu0 0.0
  %512 = vmatpush1.xpose.msra.mxu0 0.0
  %513 = vmatprep.subr.mxu0 0.0
  %514 = vmatpush1.xpose.msra.mxu0 0.0
  %515 = vmatprep.subr.mxu0 0.0
  %516 = vmatpush1.xpose.msra.mxu0 0.0
  %517 = vmatprep.subr.mxu0 0.0
  %518 = vmatpush1.xpose.msra.mxu0 0.0
  %519 = vmatprep.subr.mxu0 0.0
  %520 = vmatpush1.xpose.msra.mxu0 0.0
  %521 = vmatprep.subr.mxu0 0.0
  %522 = vmatpush1.xpose.msra.mxu0 0.0
  %523 = vmatprep.subr.mxu0 0.0
  %524 = vmatpush1.xpose.msra.mxu0 0.0
  %525 = vmatprep.subr.mxu0 0.0
  %526 = vmatpush1.xpose.msra.mxu0 0.0
  %527 = vmatprep.subr.mxu0 0.0
  %528 = vmatpush1.xpose.msra.mxu0 0.0
  %529 = vmatprep.subr.mxu0 0.0
  %530 = vmatpush1.xpose.msra.mxu0 0.0
  %531 = vmatprep.subr.mxu0 0.0
  %532 = vmatpush1.xpose.msra.mxu0 0.0
  %533 = vmatprep.subr.mxu0 0.0
  %534 = vmatpush1.xpose.msra.mxu0 0.0
  %535 = vmatprep.subr.mxu0 0.0
  %536 = vmatpush1.xpose.msra.mxu0 0.0
  %537 = vmatprep.subr.mxu0 0.0
  %538 = vmatpush1.xpose.msra.mxu0 0.0
  %539 = vmatprep.subr.mxu0 0.0
  %540 = vmatpush1.xpose.msra.mxu0 0.0
  %541 = vmatprep.subr.mxu0 0.0
  %542 = vmatpush1.xpose.msra.mxu0 0.0
  %543 = vmatprep.subr.mxu0 0.0
  %544 = vmatpush1.xpose.msra.mxu0 0.0
  %545 = vmatprep.subr.mxu0 0.0
  %546 = vmatpush1.xpose.msra.mxu0 0.0
  %547 = vmatprep.subr.mxu0 0.0
  %548 = vmatpush1.xpose.msra.mxu0 0.0
  %549 = vmatprep.subr.mxu0 0.0
  %550 = vmatpush1.xpose.msra.mxu0 0.0
  %551 = vmatprep.subr.mxu0 0.0
  %552 = vmatpush1.xpose.msra.mxu0 0.0
  %553 = vmatprep.subr.mxu0 0.0
  %554 = vmatpush1.xpose.msra.mxu0 0.0
  %555 = vmatprep.subr.mxu0 0.0
  %556 = vmatpush1.xpose.msra.mxu0 0.0
  %557 = vmatprep.subr.mxu0 0.0
  %558 = vmatpush1.xpose.msra.mxu0 0.0
  %559 = vmatprep.subr.mxu0 0.0
  %560 = vmatpush1.xpose.msra.mxu0 0.0
  %561 = vmatprep.mubr.f32.mxu0 0.0
  %562 = vmatmul.mubr.f32.gmra.mrb[0].mxu0 %v480
  %v563 = vpop.f32.mrb[0].mxu0
  %v564 = vadd.f32 0.0, %v563
  %v565 = vpop.f32.mrb[0].mxu0
  %566 = vmatprep.mubr.f32.mxu0 0.0
  %567 = vmatmul.mubr.f32.gmra.mrb[0].mxu0 %v483
  %v568 = vpop.f32.mrb[0].mxu0
  %v569 = vadd.f32 0.0, %v568
  %v570 = vpop.f32.mrb[0].mxu0
  %571 = vmatprep.mubr.f32.mxu0 0.0
  %572 = vmatmul.mubr.f32.gmra.mrb[0].mxu0 %v486
  %v573 = vpop.f32.mrb[0].mxu0
  %v574 = vadd.f32 0.0, %v573
  %v575 = vpop.f32.mrb[0].mxu0
  %576 = vdwg.mxu0
  %v578 = vsel %vm86, %v29, 0
  %v581 = vsel %vm86, %v30, 0
  %v584 = vsel %vm86, %v31, 0
  %v587 = vsel %vm86, %v53, 0
  %v590 = vsel %vm86, %v54, 0
  %v593 = vsel %vm86, %v55, 0
  %595 = vmatprep.subr.mxu0 0.0
  %596 = vmatpush1.xpose.msra.mxu0 %v587
  %597 = vmatprep.subr.mxu0 0.0
  %598 = vmatpush1.xpose.msra.mxu0 %v590
  %599 = vmatprep.subr.mxu0 0.0
  %600 = vmatpush1.xpose.msra.mxu0 %v593
  %601 = vmatprep.subr.mxu0 0.0
  %602 = vmatpush1.xpose.msra.mxu0 0.0
  %603 = vmatprep.subr.mxu0 0.0
  %604 = vmatpush1.xpose.msra.mxu0 0.0
  %605 = vmatprep.subr.mxu0 0.0
  %606 = vmatpush1.xpose.msra.mxu0 0.0
  %607 = vmatprep.subr.mxu0 0.0
  %608 = vmatpush1.xpose.msra.mxu0 0.0
  %609 = vmatprep.subr.mxu0 0.0
  %610 = vmatpush1.xpose.msra.mxu0 0.0
  %611 = vmatprep.subr.mxu0 0.0
  %612 = vmatpush1.xpose.msra.mxu0 0.0
  %613 = vmatprep.subr.mxu0 0.0
  %614 = vmatpush1.xpose.msra.mxu0 0.0
  %615 = vmatprep.subr.mxu0 0.0
  %616 = vmatpush1.xpose.msra.mxu0 0.0
  %617 = vmatprep.subr.mxu0 0.0
  %618 = vmatpush1.xpose.msra.mxu0 0.0
  %619 = vmatprep.subr.mxu0 0.0
  %620 = vmatpush1.xpose.msra.mxu0 0.0
  %621 = vmatprep.subr.mxu0 0.0
  %622 = vmatpush1.xpose.msra.mxu0 0.0
  %623 = vmatprep.subr.mxu0 0.0
  %624 = vmatpush1.xpose.msra.mxu0 0.0
  %625 = vmatprep.subr.mxu0 0.0
  %626 = vmatpush1.xpose.msra.mxu0 0.0
  %627 = vmatprep.subr.mxu0 0.0
  %628 = vmatpush1.xpose.msra.mxu0 0.0
  %629 = vmatprep.subr.mxu0 0.0
  %630 = vmatpush1.xpose.msra.mxu0 0.0
  %631 = vmatprep.subr.mxu0 0.0
  %632 = vmatpush1.xpose.msra.mxu0 0.0
  %633 = vmatprep.subr.mxu0 0.0
  %634 = vmatpush1.xpose.msra.mxu0 0.0
  %635 = vmatprep.subr.mxu0 0.0
  %636 = vmatpush1.xpose.msra.mxu0 0.0
  %637 = vmatprep.subr.mxu0 0.0
  %638 = vmatpush1.xpose.msra.mxu0 0.0
  %639 = vmatprep.subr.mxu0 0.0
  %640 = vmatpush1.xpose.msra.mxu0 0.0
  %641 = vmatprep.subr.mxu0 0.0
  %642 = vmatpush1.xpose.msra.mxu0 0.0
  %643 = vmatprep.subr.mxu0 0.0
  %644 = vmatpush1.xpose.msra.mxu0 0.0
  %645 = vmatprep.subr.mxu0 0.0
  %646 = vmatpush1.xpose.msra.mxu0 0.0
  %647 = vmatprep.subr.mxu0 0.0
  %648 = vmatpush1.xpose.msra.mxu0 0.0
  %649 = vmatprep.subr.mxu0 0.0
  %650 = vmatpush1.xpose.msra.mxu0 0.0
  %651 = vmatprep.subr.mxu0 0.0
  %652 = vmatpush1.xpose.msra.mxu0 0.0
  %653 = vmatprep.subr.mxu0 0.0
  %654 = vmatpush1.xpose.msra.mxu0 0.0
  %655 = vmatprep.subr.mxu0 0.0
  %656 = vmatpush1.xpose.msra.mxu0 0.0
  %657 = vmatprep.subr.mxu0 0.0
  %658 = vmatpush1.xpose.msra.mxu0 0.0
  %659 = vmatprep.mubr.f32.mxu0 0.0
  %660 = vmatmul.mubr.f32.gmra.mrb[0].mxu0 %v578
  %v661 = vpop.f32.mrb[0].mxu0
  %v662 = vadd.f32 0.0, %v661
  %v663 = vpop.f32.mrb[0].mxu0
  %664 = vmatprep.mubr.f32.mxu0 0.0
  %665 = vmatmul.mubr.f32.gmra.mrb[0].mxu0 %v581
  %v666 = vpop.f32.mrb[0].mxu0
  %v667 = vadd.f32 0.0, %v666
  %v668 = vpop.f32.mrb[0].mxu0
  %669 = vmatprep.mubr.f32.mxu0 0.0
  %670 = vmatmul.mubr.f32.gmra.mrb[0].mxu0 %v584
  %v671 = vpop.f32.mrb[0].mxu0
  %v672 = vadd.f32 0.0, %v671
  %v673 = vpop.f32.mrb[0].mxu0
  %674 = vdwg.mxu0
  %v676 = vsel %vm86, %v32, 0
  %v679 = vsel %vm86, %v33, 0
  %v682 = vsel %vm86, %v34, 0
  %v685 = vsel %vm86, %v56, 0
  %v688 = vsel %vm86, %v57, 0
  %v691 = vsel %vm86, %v58, 0
  %693 = vmatprep.subr.mxu0 0.0
  %694 = vmatpush1.xpose.msra.mxu0 %v685
  %695 = vmatprep.subr.mxu0 0.0
  %696 = vmatpush1.xpose.msra.mxu0 %v688
  %697 = vmatprep.subr.mxu0 0.0
  %698 = vmatpush1.xpose.msra.mxu0 %v691
  %699 = vmatprep.subr.mxu0 0.0
  %700 = vmatpush1.xpose.msra.mxu0 0.0
  %701 = vmatprep.subr.mxu0 0.0
  %702 = vmatpush1.xpose.msra.mxu0 0.0
  %703 = vmatprep.subr.mxu0 0.0
  %704 = vmatpush1.xpose.msra.mxu0 0.0
  %705 = vmatprep.subr.mxu0 0.0
  %706 = vmatpush1.xpose.msra.mxu0 0.0
  %707 = vmatprep.subr.mxu0 0.0
  %708 = vmatpush1.xpose.msra.mxu0 0.0
  %709 = vmatprep.subr.mxu0 0.0
  %710 = vmatpush1.xpose.msra.mxu0 0.0
  %711 = vmatprep.subr.mxu0 0.0
  %712 = vmatpush1.xpose.msra.mxu0 0.0
  %713 = vmatprep.subr.mxu0 0.0
  %714 = vmatpush1.xpose.msra.mxu0 0.0
  %715 = vmatprep.subr.mxu0 0.0
  %716 = vmatpush1.xpose.msra.mxu0 0.0
  %717 = vmatprep.subr.mxu0 0.0
  %718 = vmatpush1.xpose.msra.mxu0 0.0
  %719 = vmatprep.subr.mxu0 0.0
  %720 = vmatpush1.xpose.msra.mxu0 0.0
  %721 = vmatprep.subr.mxu0 0.0
  %722 = vmatpush1.xpose.msra.mxu0 0.0
  %723 = vmatprep.subr.mxu0 0.0
  %724 = vmatpush1.xpose.msra.mxu0 0.0
  %725 = vmatprep.subr.mxu0 0.0
  %726 = vmatpush1.xpose.msra.mxu0 0.0
  %727 = vmatprep.subr.mxu0 0.0
  %728 = vmatpush1.xpose.msra.mxu0 0.0
  %729 = vmatprep.subr.mxu0 0.0
  %730 = vmatpush1.xpose.msra.mxu0 0.0
  %731 = vmatprep.subr.mxu0 0.0
  %732 = vmatpush1.xpose.msra.mxu0 0.0
  %733 = vmatprep.subr.mxu0 0.0
  %734 = vmatpush1.xpose.msra.mxu0 0.0
  %735 = vmatprep.subr.mxu0 0.0
  %736 = vmatpush1.xpose.msra.mxu0 0.0
  %737 = vmatprep.subr.mxu0 0.0
  %738 = vmatpush1.xpose.msra.mxu0 0.0
  %739 = vmatprep.subr.mxu0 0.0
  %740 = vmatpush1.xpose.msra.mxu0 0.0
  %741 = vmatprep.subr.mxu0 0.0
  %742 = vmatpush1.xpose.msra.mxu0 0.0
  %743 = vmatprep.subr.mxu0 0.0
  %744 = vmatpush1.xpose.msra.mxu0 0.0
  %745 = vmatprep.subr.mxu0 0.0
  %746 = vmatpush1.xpose.msra.mxu0 0.0
  %747 = vmatprep.subr.mxu0 0.0
  %748 = vmatpush1.xpose.msra.mxu0 0.0
  %749 = vmatprep.subr.mxu0 0.0
  %750 = vmatpush1.xpose.msra.mxu0 0.0
  %751 = vmatprep.subr.mxu0 0.0
  %752 = vmatpush1.xpose.msra.mxu0 0.0
  %753 = vmatprep.subr.mxu0 0.0
  %754 = vmatpush1.xpose.msra.mxu0 0.0
  %755 = vmatprep.subr.mxu0 0.0
  %756 = vmatpush1.xpose.msra.mxu0 0.0
  %757 = vmatprep.mubr.f32.mxu0 0.0
  %758 = vmatmul.mubr.f32.gmra.mrb[0].mxu0 %v676
  %v759 = vpop.f32.mrb[0].mxu0
  %v760 = vadd.f32 0.0, %v759
  %v761 = vpop.f32.mrb[0].mxu0
  %762 = vmatprep.mubr.f32.mxu0 0.0
  %763 = vmatmul.mubr.f32.gmra.mrb[0].mxu0 %v679
  %v764 = vpop.f32.mrb[0].mxu0
  %v765 = vadd.f32 0.0, %v764
  %v766 = vpop.f32.mrb[0].mxu0
  %767 = vmatprep.mubr.f32.mxu0 0.0
  %768 = vmatmul.mubr.f32.gmra.mrb[0].mxu0 %v682
  %v769 = vpop.f32.mrb[0].mxu0
  %v770 = vadd.f32 0.0, %v769
  %v771 = vpop.f32.mrb[0].mxu0
  %772 = vdwg.mxu0
  %v774 = vsel %vm86, %v35, 0
  %v777 = vsel %vm86, %v36, 0
  %v780 = vsel %vm86, %v37, 0
  %v783 = vsel %vm86, %v59, 0
  %v786 = vsel %vm86, %v60, 0
  %v789 = vsel %vm86, %v61, 0
  %791 = vmatprep.subr.mxu0 0.0
  %792 = vmatpush1.xpose.msra.mxu0 %v783
  %793 = vmatprep.subr.mxu0 0.0
  %794 = vmatpush1.xpose.msra.mxu0 %v786
  %795 = vmatprep.subr.mxu0 0.0
  %796 = vmatpush1.xpose.msra.mxu0 %v789
  %797 = vmatprep.subr.mxu0 0.0
  %798 = vmatpush1.xpose.msra.mxu0 0.0
  %799 = vmatprep.subr.mxu0 0.0
  %800 = vmatpush1.xpose.msra.mxu0 0.0
  %801 = vmatprep.subr.mxu0 0.0
  %802 = vmatpush1.xpose.msra.mxu0 0.0
  %803 = vmatprep.subr.mxu0 0.0
  %804 = vmatpush1.xpose.msra.mxu0 0.0
  %805 = vmatprep.subr.mxu0 0.0
  %806 = vmatpush1.xpose.msra.mxu0 0.0
  %807 = vmatprep.subr.mxu0 0.0
  %808 = vmatpush1.xpose.msra.mxu0 0.0
  %809 = vmatprep.subr.mxu0 0.0
  %810 = vmatpush1.xpose.msra.mxu0 0.0
  %811 = vmatprep.subr.mxu0 0.0
  %812 = vmatpush1.xpose.msra.mxu0 0.0
  %813 = vmatprep.subr.mxu0 0.0
  %814 = vmatpush1.xpose.msra.mxu0 0.0
  %815 = vmatprep.subr.mxu0 0.0
  %816 = vmatpush1.xpose.msra.mxu0 0.0
  %817 = vmatprep.subr.mxu0 0.0
  %818 = vmatpush1.xpose.msra.mxu0 0.0
  %819 = vmatprep.subr.mxu0 0.0
  %820 = vmatpush1.xpose.msra.mxu0 0.0
  %821 = vmatprep.subr.mxu0 0.0
  %822 = vmatpush1.xpose.msra.mxu0 0.0
  %823 = vmatprep.subr.mxu0 0.0
  %824 = vmatpush1.xpose.msra.mxu0 0.0
  %825 = vmatprep.subr.mxu0 0.0
  %826 = vmatpush1.xpose.msra.mxu0 0.0
  %827 = vmatprep.subr.mxu0 0.0
  %828 = vmatpush1.xpose.msra.mxu0 0.0
  %829 = vmatprep.subr.mxu0 0.0
  %830 = vmatpush1.xpose.msra.mxu0 0.0
  %831 = vmatprep.subr.mxu0 0.0
  %832 = vmatpush1.xpose.msra.mxu0 0.0
  %833 = vmatprep.subr.mxu0 0.0
  %834 = vmatpush1.xpose.msra.mxu0 0.0
  %835 = vmatprep.subr.mxu0 0.0
  %836 = vmatpush1.xpose.msra.mxu0 0.0
  %837 = vmatprep.subr.mxu0 0.0
  %838 = vmatpush1.xpose.msra.mxu0 0.0
  %839 = vmatprep.subr.mxu0 0.0
  %840 = vmatpush1.xpose.msra.mxu0 0.0
  %841 = vmatprep.subr.mxu0 0.0
  %842 = vmatpush1.xpose.msra.mxu0 0.0
  %843 = vmatprep.subr.mxu0 0.0
  %844 = vmatpush1.xpose.msra.mxu0 0.0
  %845 = vmatprep.subr.mxu0 0.0
  %846 = vmatpush1.xpose.msra.mxu0 0.0
  %847 = vmatprep.subr.mxu0 0.0
  %848 = vmatpush1.xpose.msra.mxu0 0.0
  %849 = vmatprep.subr.mxu0 0.0
  %850 = vmatpush1.xpose.msra.mxu0 0.0
  %851 = vmatprep.subr.mxu0 0.0
  %852 = vmatpush1.xpose.msra.mxu0 0.0
  %853 = vmatprep.subr.mxu0 0.0
  %854 = vmatpush1.xpose.msra.mxu0 0.0
  %855 = vmatprep.mubr.f32.mxu0 0.0
  %856 = vmatmul.mubr.f32.gmra.mrb[0].mxu0 %v774
  %v857 = vpop.f32.mrb[0].mxu0
  %v858 = vadd.f32 0.0, %v857
  %v859 = vpop.f32.mrb[0].mxu0
  %860 = vmatprep.mubr.f32.mxu0 0.0
  %861 = vmatmul.mubr.f32.gmra.mrb[0].mxu0 %v777
  %v862 = vpop.f32.mrb[0].mxu0
  %v863 = vadd.f32 0.0, %v862
  %v864 = vpop.f32.mrb[0].mxu0
  %865 = vmatprep.mubr.f32.mxu0 0.0
  %866 = vmatmul.mubr.f32.gmra.mrb[0].mxu0 %v780
  %v867 = vpop.f32.mrb[0].mxu0
  %v868 = vadd.f32 0.0, %v867
  %v869 = vpop.f32.mrb[0].mxu0
  %870 = vdwg.mxu0
  %v871 = vmul.f32 %v172, 0.35355338
  %v872 = vmul.f32 %v177, 0.35355338
  %v873 = vmul.f32 %v182, 0.35355338
  %v874 = vmul.f32 %v270, 0.35355338
  %v875 = vmul.f32 %v275, 0.35355338
  %v876 = vmul.f32 %v280, 0.35355338
  %v877 = vmul.f32 %v368, 0.35355338
  %v878 = vmul.f32 %v373, 0.35355338
  %v879 = vmul.f32 %v378, 0.35355338
  %v880 = vmul.f32 %v466, 0.35355338
  %v881 = vmul.f32 %v471, 0.35355338
  %v882 = vmul.f32 %v476, 0.35355338
  %v883 = vmul.f32 %v564, 0.35355338
  %v884 = vmul.f32 %v569, 0.35355338
  %v885 = vmul.f32 %v574, 0.35355338
  %v886 = vmul.f32 %v662, 0.35355338
  %v887 = vmul.f32 %v667, 0.35355338
  %v888 = vmul.f32 %v672, 0.35355338
  %v889 = vmul.f32 %v760, 0.35355338
  %v890 = vmul.f32 %v765, 0.35355338
  %v891 = vmul.f32 %v770, 0.35355338
  %v892 = vmul.f32 %v858, 0.35355338
  %v893 = vmul.f32 %v863, 0.35355338
  %v894 = vmul.f32 %v868, 0.35355338
  %vm895 = vcmask 138240
  %v896 = vsel %vm895, %v871, -inf
  %897 = vmax.xlane.f32.xlu0 %v896
  %v898 = vpop.xlane.xlu0 %897
  %v899 = vsel %vm895, %v872, -inf
  %900 = vmax.xlane.f32.xlu0 %v899
  %v901 = vpop.xlane.xlu0 %900
  %vm902 = vcmask 131072
  %v903 = vsel %vm902, %v873, -inf
  %904 = vmax.xlane.f32.xlu0 %v903
  %v905 = vpop.xlane.xlu0 %904
  %v906 = vsel %vm895, %v874, -inf
  %907 = vmax.xlane.f32.xlu0 %v906
  %v908 = vpop.xlane.xlu0 %907
  %v909 = vsel %vm895, %v875, -inf
  %910 = vmax.xlane.f32.xlu0 %v909
  %v911 = vpop.xlane.xlu0 %910
  %v912 = vsel %vm902, %v876, -inf
  %913 = vmax.xlane.f32.xlu0 %v912
  %v914 = vpop.xlane.xlu0 %913
  %v915 = vsel %vm895, %v877, -inf
  %916 = vmax.xlane.f32.xlu0 %v915
  %v917 = vpop.xlane.xlu0 %916
  %v918 = vsel %vm895, %v878, -inf
  %919 = vmax.xlane.f32.xlu0 %v918
  %v920 = vpop.xlane.xlu0 %919
  %v921 = vsel %vm902, %v879, -inf
  %922 = vmax.xlane.f32.xlu0 %v921
  %v923 = vpop.xlane.xlu0 %922
  %v924 = vsel %vm895, %v880, -inf
  %925 = vmax.xlane.f32.xlu0 %v924
  %v926 = vpop.xlane.xlu0 %925
  %v927 = vsel %vm895, %v881, -inf
  %928 = vmax.xlane.f32.xlu0 %v927
  %v929 = vpop.xlane.xlu0 %928
  %v930 = vsel %vm902, %v882, -inf
  %931 = vmax.xlane.f32.xlu0 %v930
  %v932 = vpop.xlane.xlu0 %931
  %v933 = vsel %vm895, %v883, -inf
  %934 = vmax.xlane.f32.xlu0 %v933
  %v935 = vpop.xlane.xlu0 %934
  %v936 = vsel %vm895, %v884, -inf
  %937 = vmax.xlane.f32.xlu0 %v936
  %v938 = vpop.xlane.xlu0 %937
  %v939 = vsel %vm902, %v885, -inf
  %940 = vmax.xlane.f32.xlu0 %v939
  %v941 = vpop.xlane.xlu0 %940
  %v942 = vsel %vm895, %v886, -inf
  %943 = vmax.xlane.f32.xlu0 %v942
  %v944 = vpop.xlane.xlu0 %943
  %v945 = vsel %vm895, %v887, -inf
  %946 = vmax.xlane.f32.xlu0 %v945
  %v947 = vpop.xlane.xlu0 %946
  %v948 = vsel %vm902, %v888, -inf
  %949 = vmax.xlane.f32.xlu0 %v948
  %v950 = vpop.xlane.xlu0 %949
  %v951 = vsel %vm895, %v889, -inf
  %952 = vmax.xlane.f32.xlu0 %v951
  %v953 = vpop.xlane.xlu0 %952
  %v954 = vsel %vm895, %v890, -inf
  %955 = vmax.xlane.f32.xlu0 %v954
  %v956 = vpop.xlane.xlu0 %955
  %v957 = vsel %vm902, %v891, -inf
  %958 = vmax.xlane.f32.xlu0 %v957
  %v959 = vpop.xlane.xlu0 %958
  %v960 = vsel %vm895, %v892, -inf
  %961 = vmax.xlane.f32.xlu0 %v960
  %v962 = vpop.xlane.xlu0 %961
  %v963 = vsel %vm895, %v893, -inf
  %964 = vmax.xlane.f32.xlu0 %v963
  %v965 = vpop.xlane.xlu0 %964
  %v966 = vsel %vm902, %v894, -inf
  %967 = vmax.xlane.f32.xlu0 %v966
  %v968 = vpop.xlane.xlu0 %967
  %v969 = vsub.f32 %v871, %v898
  %v970 = vsub.f32 %v872, %v901
  %v971 = vsub.f32 %v873, %v905
  %v972 = vsub.f32 %v874, %v908
  %v973 = vsub.f32 %v875, %v911
  %v974 = vsub.f32 %v876, %v914
  %v975 = vsub.f32 %v877, %v917
  %v976 = vsub.f32 %v878, %v920
  %v977 = vsub.f32 %v879, %v923
  %v978 = vsub.f32 %v880, %v926
  %v979 = vsub.f32 %v881, %v929
  %v980 = vsub.f32 %v882, %v932
  %v981 = vsub.f32 %v883, %v935
  %v982 = vsub.f32 %v884, %v938
  %v983 = vsub.f32 %v885, %v941
  %v984 = vsub.f32 %v886, %v944
  %v985 = vsub.f32 %v887, %v947
  %v986 = vsub.f32 %v888, %v950
  %v987 = vsub.f32 %v889, %v953
  %v988 = vsub.f32 %v890, %v956
  %v989 = vsub.f32 %v891, %v959
  %v990 = vsub.f32 %v892, %v962
  %v991 = vsub.f32 %v893, %v965
  %v992 = vsub.f32 %v894, %v968
  %v993 = vmul.f32 %v969, 1.442695
  %v994 = vpow.pop %v993
  %v995 = vmul.f32 %v970, 1.442695
  %v996 = vpow.pop %v995
  %v997 = vmul.f32 %v971, 1.442695
  %v998 = vpow.pop %v997
  %v999 = vmul.f32 %v972, 1.442695
  %v1000 = vpow.pop %v999
  %v1001 = vmul.f32 %v973, 1.442695
  %v1002 = vpow.pop %v1001
  %v1003 = vmul.f32 %v974, 1.442695
  %v1004 = vpow.pop %v1003
  %v1005 = vmul.f32 %v975, 1.442695
  %v1006 = vpow.pop %v1005
  %v1007 = vmul.f32 %v976, 1.442695
  %v1008 = vpow.pop %v1007
  %v1009 = vmul.f32 %v977, 1.442695
  %v1010 = vpow.pop %v1009
  %v1011 = vmul.f32 %v978, 1.442695
  %v1012 = vpow.pop %v1011
  %v1013 = vmul.f32 %v979, 1.442695
  %v1014 = vpow.pop %v1013
  %v1015 = vmul.f32 %v980, 1.442695
  %v1016 = vpow.pop %v1015
  %v1017 = vmul.f32 %v981, 1.442695
  %v1018 = vpow.pop %v1017
  %v1019 = vmul.f32 %v982, 1.442695
  %v1020 = vpow.pop %v1019
  %v1021 = vmul.f32 %v983, 1.442695
  %v1022 = vpow.pop %v1021
  %v1023 = vmul.f32 %v984, 1.442695
  %v1024 = vpow.pop %v1023
  %v1025 = vmul.f32 %v985, 1.442695
  %v1026 = vpow.pop %v1025
  %v1027 = vmul.f32 %v986, 1.442695
  %v1028 = vpow.pop %v1027
  %v1029 = vmul.f32 %v987, 1.442695
  %v1030 = vpow.pop %v1029
  %v1031 = vmul.f32 %v988, 1.442695
  %v1032 = vpow.pop %v1031
  %v1033 = vmul.f32 %v989, 1.442695
  %v1034 = vpow.pop %v1033
  %v1035 = vmul.f32 %v990, 1.442695
  %v1036 = vpow.pop %v1035
  %v1037 = vmul.f32 %v991, 1.442695
  %v1038 = vpow.pop %v1037
  %v1039 = vmul.f32 %v992, 1.442695
  %v1040 = vpow.pop %v1039
  %v1041 = vsel %vm895, %v994, 0.0
  %1042 = vadd.xlane.f32.xlu0 %v1041
  %v1043 = vpop.xlane.xlu0 %1042
  %v1044 = vsel %vm895, %v996, 0.0
  %1045 = vadd.xlane.f32.xlu0 %v1044
  %v1046 = vpop.xlane.xlu0 %1045
  %v1047 = vsel %vm902, %v998, 0.0
  %1048 = vadd.xlane.f32.xlu0 %v1047
  %v1049 = vpop.xlane.xlu0 %1048
  %v1050 = vsel %vm895, %v1000, 0.0
  %1051 = vadd.xlane.f32.xlu0 %v1050
  %v1052 = vpop.xlane.xlu0 %1051
  %v1053 = vsel %vm895, %v1002, 0.0
  %1054 = vadd.xlane.f32.xlu0 %v1053
  %v1055 = vpop.xlane.xlu0 %1054
  %v1056 = vsel %vm902, %v1004, 0.0
  %1057 = vadd.xlane.f32.xlu0 %v1056
  %v1058 = vpop.xlane.xlu0 %1057
  %v1059 = vsel %vm895, %v1006, 0.0
  %1060 = vadd.xlane.f32.xlu0 %v1059
  %v1061 = vpop.xlane.xlu0 %1060
  %v1062 = vsel %vm895, %v1008, 0.0
  %1063 = vadd.xlane.f32.xlu0 %v1062
  %v1064 = vpop.xlane.xlu0 %1063
  %v1065 = vsel %vm902, %v1010, 0.0
  %1066 = vadd.xlane.f32.xlu0 %v1065
  %v1067 = vpop.xlane.xlu0 %1066
  %v1068 = vsel %vm895, %v1012, 0.0
  %1069 = vadd.xlane.f32.xlu0 %v1068
  %v1070 = vpop.xlane.xlu0 %1069
  %v1071 = vsel %vm895, %v1014, 0.0
  %1072 = vadd.xlane.f32.xlu0 %v1071
  %v1073 = vpop.xlane.xlu0 %1072
  %v1074 = vsel %vm902, %v1016, 0.0
  %1075 = vadd.xlane.f32.xlu0 %v1074
  %v1076 = vpop.xlane.xlu0 %1075
  %v1077 = vsel %vm895, %v1018, 0.0
  %1078 = vadd.xlane.f32.xlu0 %v1077
  %v1079 = vpop.xlane.xlu0 %1078
  %v1080 = vsel %vm895, %v1020, 0.0
  %1081 = vadd.xlane.f32.xlu0 %v1080
  %v1082 = vpop.xlane.xlu0 %1081
  %v1083 = vsel %vm902, %v1022, 0.0
  %1084 = vadd.xlane.f32.xlu0 %v1083
  %v1085 = vpop.xlane.xlu0 %1084
  %v1086 = vsel %vm895, %v1024, 0.0
  %1087 = vadd.xlane.f32.xlu0 %v1086
  %v1088 = vpop.xlane.xlu0 %1087
  %v1089 = vsel %vm895, %v1026, 0.0
  %1090 = vadd.xlane.f32.xlu0 %v1089
  %v1091 = vpop.xlane.xlu0 %1090
  %v1092 = vsel %vm902, %v1028, 0.0
  %1093 = vadd.xlane.f32.xlu0 %v1092
  %v1094 = vpop.xlane.xlu0 %1093
  %v1095 = vsel %vm895, %v1030, 0.0
  %1096 = vadd.xlane.f32.xlu0 %v1095
  %v1097 = vpop.xlane.xlu0 %1096
  %v1098 = vsel %vm895, %v1032, 0.0
  %1099 = vadd.xlane.f32.xlu0 %v1098
  %v1100 = vpop.xlane.xlu0 %1099
  %v1101 = vsel %vm902, %v1034, 0.0
  %1102 = vadd.xlane.f32.xlu0 %v1101
  %v1103 = vpop.xlane.xlu0 %1102
  %v1104 = vsel %vm895, %v1036, 0.0
  %1105 = vadd.xlane.f32.xlu0 %v1104
  %v1106 = vpop.xlane.xlu0 %1105
  %v1107 = vsel %vm895, %v1038, 0.0
  %1108 = vadd.xlane.f32.xlu0 %v1107
  %v1109 = vpop.xlane.xlu0 %1108
  %v1110 = vsel %vm902, %v1040, 0.0
  %1111 = vadd.xlane.f32.xlu0 %v1110
  %v1112 = vpop.xlane.xlu0 %1111
  %v1113 = vrcp.pop %v1043
  %v1114 = vrcp.pop %v1046
  %v1115 = vrcp.pop %v1049
  %v1116 = vrcp.pop %v1052
  %v1117 = vrcp.pop %v1055
  %v1118 = vrcp.pop %v1058
  %v1119 = vrcp.pop %v1061
  %v1120 = vrcp.pop %v1064
  %v1121 = vrcp.pop %v1067
  %v1122 = vrcp.pop %v1070
  %v1123 = vrcp.pop %v1073
  %v1124 = vrcp.pop %v1076
  %v1125 = vrcp.pop %v1079
  %v1126 = vrcp.pop %v1082
  %v1127 = vrcp.pop %v1085
  %v1128 = vrcp.pop %v1088
  %v1129 = vrcp.pop %v1091
  %v1130 = vrcp.pop %v1094
  %v1131 = vrcp.pop %v1097
  %v1132 = vrcp.pop %v1100
  %v1133 = vrcp.pop %v1103
  %v1134 = vrcp.pop %v1106
  %v1135 = vrcp.pop %v1109
  %v1136 = vrcp.pop %v1112
  %v1137 = vmul.f32 %v994, %v1113
  %v1138 = vmul.f32 %v996, %v1114
  %v1139 = vmul.f32 %v998, %v1115
  %v1140 = vmul.f32 %v1000, %v1116
  %v1141 = vmul.f32 %v1002, %v1117
  %v1142 = vmul.f32 %v1004, %v1118
  %v1143 = vmul.f32 %v1006, %v1119
  %v1144 = vmul.f32 %v1008, %v1120
  %v1145 = vmul.f32 %v1010, %v1121
  %v1146 = vmul.f32 %v1012, %v1122
  %v1147 = vmul.f32 %v1014, %v1123
  %v1148 = vmul.f32 %v1016, %v1124
  %v1149 = vmul.f32 %v1018, %v1125
  %v1150 = vmul.f32 %v1020, %v1126
  %v1151 = vmul.f32 %v1022, %v1127
  %v1152 = vmul.f32 %v1024, %v1128
  %v1153 = vmul.f32 %v1026, %v1129
  %v1154 = vmul.f32 %v1028, %v1130
  %v1155 = vmul.f32 %v1030, %v1131
  %v1156 = vmul.f32 %v1032, %v1132
  %v1157 = vmul.f32 %v1034, %v1133
  %v1158 = vmul.f32 %v1036, %v1134
  %v1159 = vmul.f32 %v1038, %v1135
  %v1160 = vmul.f32 %v1040, %v1136
  %v1162 = vsel %vm895, %v1137, 0
  %v1165 = vsel %vm895, %v1138, 0
  %v1168 = vsel %vm895, %v1139, 0
  %vm1170 = vcmask 1040384
  %v1172 = vsel %vm1170, %v64, 0
  %1174 = vmatprep.subr.mxu0 0.0
  %1175 = vmatpush1.msra.mxu0 %v62
  %1176 = vmatprep.subr.mxu0 0.0
  %1177 = vmatpush1.msra.mxu0 %v63
  %1178 = vmatprep.subr.mxu0 0.0
  %1179 = vmatpush1.msra.mxu0 %v1172
  %1180 = vmatprep.subr.mxu0 0.0
  %1181 = vmatpush1.msra.mxu0 0.0
  %1182 = vmatprep.subr.mxu0 0.0
  %1183 = vmatpush1.msra.mxu0 0.0
  %1184 = vmatprep.subr.mxu0 0.0
  %1185 = vmatpush1.msra.mxu0 0.0
  %1186 = vmatprep.subr.mxu0 0.0
  %1187 = vmatpush1.msra.mxu0 0.0
  %1188 = vmatprep.subr.mxu0 0.0
  %1189 = vmatpush1.msra.mxu0 0.0
  %1190 = vmatprep.subr.mxu0 0.0
  %1191 = vmatpush1.msra.mxu0 0.0
  %1192 = vmatprep.subr.mxu0 0.0
  %1193 = vmatpush1.msra.mxu0 0.0
  %1194 = vmatprep.subr.mxu0 0.0
  %1195 = vmatpush1.msra.mxu0 0.0
  %1196 = vmatprep.subr.mxu0 0.0
  %1197 = vmatpush1.msra.mxu0 0.0
  %1198 = vmatprep.subr.mxu0 0.0
  %1199 = vmatpush1.msra.mxu0 0.0
  %1200 = vmatprep.subr.mxu0 0.0
  %1201 = vmatpush1.msra.mxu0 0.0
  %1202 = vmatprep.subr.mxu0 0.0
  %1203 = vmatpush1.msra.mxu0 0.0
  %1204 = vmatprep.subr.mxu0 0.0
  %1205 = vmatpush1.msra.mxu0 0.0
  %1206 = vmatprep.subr.mxu0 0.0
  %1207 = vmatpush1.msra.mxu0 0.0
  %1208 = vmatprep.subr.mxu0 0.0
  %1209 = vmatpush1.msra.mxu0 0.0
  %1210 = vmatprep.subr.mxu0 0.0
  %1211 = vmatpush1.msra.mxu0 0.0
  %1212 = vmatprep.subr.mxu0 0.0
  %1213 = vmatpush1.msra.mxu0 0.0
  %1214 = vmatprep.subr.mxu0 0.0
  %1215 = vmatpush1.msra.mxu0 0.0
  %1216 = vmatprep.subr.mxu0 0.0
  %1217 = vmatpush1.msra.mxu0 0.0
  %1218 = vmatprep.subr.mxu0 0.0
  %1219 = vmatpush1.msra.mxu0 0.0
  %1220 = vmatprep.subr.mxu0 0.0
  %1221 = vmatpush1.msra.mxu0 0.0
  %1222 = vmatprep.subr.mxu0 0.0
  %1223 = vmatpush1.msra.mxu0 0.0
  %1224 = vmatprep.subr.mxu0 0.0
  %1225 = vmatpush1.msra.mxu0 0.0
  %1226 = vmatprep.subr.mxu0 0.0
  %1227 = vmatpush1.msra.mxu0 0.0
  %1228 = vmatprep.subr.mxu0 0.0
  %1229 = vmatpush1.msra.mxu0 0.0
  %1230 = vmatprep.subr.mxu0 0.0
  %1231 = vmatpush1.msra.mxu0 0.0
  %1232 = vmatprep.subr.mxu0 0.0
  %1233 = vmatpush1.msra.mxu0 0.0
  %1234 = vmatprep.subr.mxu0 0.0
  %1235 = vmatpush1.msra.mxu0 0.0
  %1236 = vmatprep.subr.mxu0 0.0
  %1237 = vmatpush1.msra.mxu0 0.0
  %1238 = vmatprep.mubr.f32.mxu0 0.0
  %1239 = vmatmul.mubr.f32.gmra.mrb[0].mxu0 %v1162
  %v1240 = vpop.f32.mrb[0].mxu0
  %v1241 = vadd.f32 0.0, %v1240
  %v1242 = vpop.f32.mrb[0].mxu0
  %1243 = vmatprep.mubr.f32.mxu0 0.0
  %1244 = vmatmul.mubr.f32.gmra.mrb[0].mxu0 %v1165
  %v1245 = vpop.f32.mrb[0].mxu0
  %v1246 = vadd.f32 0.0, %v1245
  %v1247 = vpop.f32.mrb[0].mxu0
  %1248 = vmatprep.mubr.f32.mxu0 0.0
  %1249 = vmatmul.mubr.f32.gmra.mrb[0].mxu0 %v1168
  %v1250 = vpop.f32.mrb[0].mxu0
  %v1251 = vadd.f32 0.0, %v1250
  %v1252 = vpop.f32.mrb[0].mxu0
  %1253 = vdwg.mxu0
  %v1255 = vsel %vm895, %v1140, 0
  %v1258 = vsel %vm895, %v1141, 0
  %v1261 = vsel %vm895, %v1142, 0
  %v1264 = vsel %vm1170, %v67, 0
  %1266 = vmatprep.subr.mxu0 0.0
  %1267 = vmatpush1.msra.mxu0 %v65
  %1268 = vmatprep.subr.mxu0 0.0
  %1269 = vmatpush1.msra.mxu0 %v66
  %1270 = vmatprep.subr.mxu0 0.0
  %1271 = vmatpush1.msra.mxu0 %v1264
  %1272 = vmatprep.subr.mxu0 0.0
  %1273 = vmatpush1.msra.mxu0 0.0
  %1274 = vmatprep.subr.mxu0 0.0
  %1275 = vmatpush1.msra.mxu0 0.0
  %1276 = vmatprep.subr.mxu0 0.0
  %1277 = vmatpush1.msra.mxu0 0.0
  %1278 = vmatprep.subr.mxu0 0.0
  %1279 = vmatpush1.msra.mxu0 0.0
  %1280 = vmatprep.subr.mxu0 0.0
  %1281 = vmatpush1.msra.mxu0 0.0
  %1282 = vmatprep.subr.mxu0 0.0
  %1283 = vmatpush1.msra.mxu0 0.0
  %1284 = vmatprep.subr.mxu0 0.0
  %1285 = vmatpush1.msra.mxu0 0.0
  %1286 = vmatprep.subr.mxu0 0.0
  %1287 = vmatpush1.msra.mxu0 0.0
  %1288 = vmatprep.subr.mxu0 0.0
  %1289 = vmatpush1.msra.mxu0 0.0
  %1290 = vmatprep.subr.mxu0 0.0
  %1291 = vmatpush1.msra.mxu0 0.0
  %1292 = vmatprep.subr.mxu0 0.0
  %1293 = vmatpush1.msra.mxu0 0.0
  %1294 = vmatprep.subr.mxu0 0.0
  %1295 = vmatpush1.msra.mxu0 0.0
  %1296 = vmatprep.subr.mxu0 0.0
  %1297 = vmatpush1.msra.mxu0 0.0
  %1298 = vmatprep.subr.mxu0 0.0
  %1299 = vmatpush1.msra.mxu0 0.0
  %1300 = vmatprep.subr.mxu0 0.0
  %1301 = vmatpush1.msra.mxu0 0.0
  %1302 = vmatprep.subr.mxu0 0.0
  %1303 = vmatpush1.msra.mxu0 0.0
  %1304 = vmatprep.subr.mxu0 0.0
  %1305 = vmatpush1.msra.mxu0 0.0
  %1306 = vmatprep.subr.mxu0 0.0
  %1307 = vmatpush1.msra.mxu0 0.0
  %1308 = vmatprep.subr.mxu0 0.0
  %1309 = vmatpush1.msra.mxu0 0.0
  %1310 = vmatprep.subr.mxu0 0.0
  %1311 = vmatpush1.msra.mxu0 0.0
  %1312 = vmatprep.subr.mxu0 0.0
  %1313 = vmatpush1.msra.mxu0 0.0
  %1314 = vmatprep.subr.mxu0 0.0
  %1315 = vmatpush1.msra.mxu0 0.0
  %1316 = vmatprep.subr.mxu0 0.0
  %1317 = vmatpush1.msra.mxu0 0.0
  %1318 = vmatprep.subr.mxu0 0.0
  %1319 = vmatpush1.msra.mxu0 0.0
  %1320 = vmatprep.subr.mxu0 0.0
  %1321 = vmatpush1.msra.mxu0 0.0
  %1322 = vmatprep.subr.mxu0 0.0
  %1323 = vmatpush1.msra.mxu0 0.0
  %1324 = vmatprep.subr.mxu0 0.0
  %1325 = vmatpush1.msra.mxu0 0.0
  %1326 = vmatprep.subr.mxu0 0.0
  %1327 = vmatpush1.msra.mxu0 0.0
  %1328 = vmatprep.subr.mxu0 0.0
  %1329 = vmatpush1.msra.mxu0 0.0
  %1330 = vmatprep.mubr.f32.mxu0 0.0
  %1331 = vmatmul.mubr.f32.gmra.mrb[0].mxu0 %v1255
  %v1332 = vpop.f32.mrb[0].mxu0
  %v1333 = vadd.f32 0.0, %v1332
  %v1334 = vpop.f32.mrb[0].mxu0
  %1335 = vmatprep.mubr.f32.mxu0 0.0
  %1336 = vmatmul.mubr.f32.gmra.mrb[0].mxu0 %v1258
  %v1337 = vpop.f32.mrb[0].mxu0
  %v1338 = vadd.f32 0.0, %v1337
  %v1339 = vpop.f32.mrb[0].mxu0
  %1340 = vmatprep.mubr.f32.mxu0 0.0
  %1341 = vmatmul.mubr.f32.gmra.mrb[0].mxu0 %v1261
  %v1342 = vpop.f32.mrb[0].mxu0
  %v1343 = vadd.f32 0.0, %v1342
  %v1344 = vpop.f32.mrb[0].mxu0
  %1345 = vdwg.mxu0
  %v1347 = vsel %vm895, %v1143, 0
  %v1350 = vsel %vm895, %v1144, 0
  %v1353 = vsel %vm895, %v1145, 0
  %v1356 = vsel %vm1170, %v70, 0
  %1358 = vmatprep.subr.mxu0 0.0
  %1359 = vmatpush1.msra.mxu0 %v68
  %1360 = vmatprep.subr.mxu0 0.0
  %1361 = vmatpush1.msra.mxu0 %v69
  %1362 = vmatprep.subr.mxu0 0.0
  %1363 = vmatpush1.msra.mxu0 %v1356
  %1364 = vmatprep.subr.mxu0 0.0
  %1365 = vmatpush1.msra.mxu0 0.0
  %1366 = vmatprep.subr.mxu0 0.0
  %1367 = vmatpush1.msra.mxu0 0.0
  %1368 = vmatprep.subr.mxu0 0.0
  %1369 = vmatpush1.msra.mxu0 0.0
  %1370 = vmatprep.subr.mxu0 0.0
  %1371 = vmatpush1.msra.mxu0 0.0
  %1372 = vmatprep.subr.mxu0 0.0
  %1373 = vmatpush1.msra.mxu0 0.0
  %1374 = vmatprep.subr.mxu0 0.0
  %1375 = vmatpush1.msra.mxu0 0.0
  %1376 = vmatprep.subr.mxu0 0.0
  %1377 = vmatpush1.msra.mxu0 0.0
  %1378 = vmatprep.subr.mxu0 0.0
  %1379 = vmatpush1.msra.mxu0 0.0
  %1380 = vmatprep.subr.mxu0 0.0
  %1381 = vmatpush1.msra.mxu0 0.0
  %1382 = vmatprep.subr.mxu0 0.0
  %1383 = vmatpush1.msra.mxu0 0.0
  %1384 = vmatprep.subr.mxu0 0.0
  %1385 = vmatpush1.msra.mxu0 0.0
  %1386 = vmatprep.subr.mxu0 0.0
  %1387 = vmatpush1.msra.mxu0 0.0
  %1388 = vmatprep.subr.mxu0 0.0
  %1389 = vmatpush1.msra.mxu0 0.0
  %1390 = vmatprep.subr.mxu0 0.0
  %1391 = vmatpush1.msra.mxu0 0.0
  %1392 = vmatprep.subr.mxu0 0.0
  %1393 = vmatpush1.msra.mxu0 0.0
  %1394 = vmatprep.subr.mxu0 0.0
  %1395 = vmatpush1.msra.mxu0 0.0
  %1396 = vmatprep.subr.mxu0 0.0
  %1397 = vmatpush1.msra.mxu0 0.0
  %1398 = vmatprep.subr.mxu0 0.0
  %1399 = vmatpush1.msra.mxu0 0.0
  %1400 = vmatprep.subr.mxu0 0.0
  %1401 = vmatpush1.msra.mxu0 0.0
  %1402 = vmatprep.subr.mxu0 0.0
  %1403 = vmatpush1.msra.mxu0 0.0
  %1404 = vmatprep.subr.mxu0 0.0
  %1405 = vmatpush1.msra.mxu0 0.0
  %1406 = vmatprep.subr.mxu0 0.0
  %1407 = vmatpush1.msra.mxu0 0.0
  %1408 = vmatprep.subr.mxu0 0.0
  %1409 = vmatpush1.msra.mxu0 0.0
  %1410 = vmatprep.subr.mxu0 0.0
  %1411 = vmatpush1.msra.mxu0 0.0
  %1412 = vmatprep.subr.mxu0 0.0
  %1413 = vmatpush1.msra.mxu0 0.0
  %1414 = vmatprep.subr.mxu0 0.0
  %1415 = vmatpush1.msra.mxu0 0.0
  %1416 = vmatprep.subr.mxu0 0.0
  %1417 = vmatpush1.msra.mxu0 0.0
  %1418 = vmatprep.subr.mxu0 0.0
  %1419 = vmatpush1.msra.mxu0 0.0
  %1420 = vmatprep.subr.mxu0 0.0
  %1421 = vmatpush1.msra.mxu0 0.0
  %1422 = vmatprep.mubr.f32.mxu0 0.0
  %1423 = vmatmul.mubr.f32.gmra.mrb[0].mxu0 %v1347
  %v1424 = vpop.f32.mrb[0].mxu0
  %v1425 = vadd.f32 0.0, %v1424
  %v1426 = vpop.f32.mrb[0].mxu0
  %1427 = vmatprep.mubr.f32.mxu0 0.0
  %1428 = vmatmul.mubr.f32.gmra.mrb[0].mxu0 %v1350
  %v1429 = vpop.f32.mrb[0].mxu0
  %v1430 = vadd.f32 0.0, %v1429
  %v1431 = vpop.f32.mrb[0].mxu0
  %1432 = vmatprep.mubr.f32.mxu0 0.0
  %1433 = vmatmul.mubr.f32.gmra.mrb[0].mxu0 %v1353
  %v1434 = vpop.f32.mrb[0].mxu0
  %v1435 = vadd.f32 0.0, %v1434
  %v1436 = vpop.f32.mrb[0].mxu0
  %1437 = vdwg.mxu0
  %v1439 = vsel %vm895, %v1146, 0
  %v1442 = vsel %vm895, %v1147, 0
  %v1445 = vsel %vm895, %v1148, 0
  %v1448 = vsel %vm1170, %v73, 0
  %1450 = vmatprep.subr.mxu0 0.0
  %1451 = vmatpush1.msra.mxu0 %v71
  %1452 = vmatprep.subr.mxu0 0.0
  %1453 = vmatpush1.msra.mxu0 %v72
  %1454 = vmatprep.subr.mxu0 0.0
  %1455 = vmatpush1.msra.mxu0 %v1448
  %1456 = vmatprep.subr.mxu0 0.0
  %1457 = vmatpush1.msra.mxu0 0.0
  %1458 = vmatprep.subr.mxu0 0.0
  %1459 = vmatpush1.msra.mxu0 0.0
  %1460 = vmatprep.subr.mxu0 0.0
  %1461 = vmatpush1.msra.mxu0 0.0
  %1462 = vmatprep.subr.mxu0 0.0
  %1463 = vmatpush1.msra.mxu0 0.0
  %1464 = vmatprep.subr.mxu0 0.0
  %1465 = vmatpush1.msra.mxu0 0.0
  %1466 = vmatprep.subr.mxu0 0.0
  %1467 = vmatpush1.msra.mxu0 0.0
  %1468 = vmatprep.subr.mxu0 0.0
  %1469 = vmatpush1.msra.mxu0 0.0
  %1470 = vmatprep.subr.mxu0 0.0
  %1471 = vmatpush1.msra.mxu0 0.0
  %1472 = vmatprep.subr.mxu0 0.0
  %1473 = vmatpush1.msra.mxu0 0.0
  %1474 = vmatprep.subr.mxu0 0.0
  %1475 = vmatpush1.msra.mxu0 0.0
  %1476 = vmatprep.subr.mxu0 0.0
  %1477 = vmatpush1.msra.mxu0 0.0
  %1478 = vmatprep.subr.mxu0 0.0
  %1479 = vmatpush1.msra.mxu0 0.0
  %1480 = vmatprep.subr.mxu0 0.0
  %1481 = vmatpush1.msra.mxu0 0.0
  %1482 = vmatprep.subr.mxu0 0.0
  %1483 = vmatpush1.msra.mxu0 0.0
  %1484 = vmatprep.subr.mxu0 0.0
  %1485 = vmatpush1.msra.mxu0 0.0
  %1486 = vmatprep.subr.mxu0 0.0
  %1487 = vmatpush1.msra.mxu0 0.0
  %1488 = vmatprep.subr.mxu0 0.0
  %1489 = vmatpush1.msra.mxu0 0.0
  %1490 = vmatprep.subr.mxu0 0.0
  %1491 = vmatpush1.msra.mxu0 0.0
  %1492 = vmatprep.subr.mxu0 0.0
  %1493 = vmatpush1.msra.mxu0 0.0
  %1494 = vmatprep.subr.mxu0 0.0
  %1495 = vmatpush1.msra.mxu0 0.0
  %1496 = vmatprep.subr.mxu0 0.0
  %1497 = vmatpush1.msra.mxu0 0.0
  %1498 = vmatprep.subr.mxu0 0.0
  %1499 = vmatpush1.msra.mxu0 0.0
  %1500 = vmatprep.subr.mxu0 0.0
  %1501 = vmatpush1.msra.mxu0 0.0
  %1502 = vmatprep.subr.mxu0 0.0
  %1503 = vmatpush1.msra.mxu0 0.0
  %1504 = vmatprep.subr.mxu0 0.0
  %1505 = vmatpush1.msra.mxu0 0.0
  %1506 = vmatprep.subr.mxu0 0.0
  %1507 = vmatpush1.msra.mxu0 0.0
  %1508 = vmatprep.subr.mxu0 0.0
  %1509 = vmatpush1.msra.mxu0 0.0
  %1510 = vmatprep.subr.mxu0 0.0
  %1511 = vmatpush1.msra.mxu0 0.0
  %1512 = vmatprep.subr.mxu0 0.0
  %1513 = vmatpush1.msra.mxu0 0.0
  %1514 = vmatprep.mubr.f32.mxu0 0.0
  %1515 = vmatmul.mubr.f32.gmra.mrb[0].mxu0 %v1439
  %v1516 = vpop.f32.mrb[0].mxu0
  %v1517 = vadd.f32 0.0, %v1516
  %v1518 = vpop.f32.mrb[0].mxu0
  %1519 = vmatprep.mubr.f32.mxu0 0.0
  %1520 = vmatmul.mubr.f32.gmra.mrb[0].mxu0 %v1442
  %v1521 = vpop.f32.mrb[0].mxu0
  %v1522 = vadd.f32 0.0, %v1521
  %v1523 = vpop.f32.mrb[0].mxu0
  %1524 = vmatprep.mubr.f32.mxu0 0.0
  %1525 = vmatmul.mubr.f32.gmra.mrb[0].mxu0 %v1445
  %v1526 = vpop.f32.mrb[0].mxu0
  %v1527 = vadd.f32 0.0, %v1526
  %v1528 = vpop.f32.mrb[0].mxu0
  %1529 = vdwg.mxu0
  %v1531 = vsel %vm895, %v1149, 0
  %v1534 = vsel %vm895, %v1150, 0
  %v1537 = vsel %vm895, %v1151, 0
  %v1540 = vsel %vm1170, %v76, 0
  %1542 = vmatprep.subr.mxu0 0.0
  %1543 = vmatpush1.msra.mxu0 %v74
  %1544 = vmatprep.subr.mxu0 0.0
  %1545 = vmatpush1.msra.mxu0 %v75
  %1546 = vmatprep.subr.mxu0 0.0
  %1547 = vmatpush1.msra.mxu0 %v1540
  %1548 = vmatprep.subr.mxu0 0.0
  %1549 = vmatpush1.msra.mxu0 0.0
  %1550 = vmatprep.subr.mxu0 0.0
  %1551 = vmatpush1.msra.mxu0 0.0
  %1552 = vmatprep.subr.mxu0 0.0
  %1553 = vmatpush1.msra.mxu0 0.0
  %1554 = vmatprep.subr.mxu0 0.0
  %1555 = vmatpush1.msra.mxu0 0.0
  %1556 = vmatprep.subr.mxu0 0.0
  %1557 = vmatpush1.msra.mxu0 0.0
  %1558 = vmatprep.subr.mxu0 0.0
  %1559 = vmatpush1.msra.mxu0 0.0
  %1560 = vmatprep.subr.mxu0 0.0
  %1561 = vmatpush1.msra.mxu0 0.0
  %1562 = vmatprep.subr.mxu0 0.0
  %1563 = vmatpush1.msra.mxu0 0.0
  %1564 = vmatprep.subr.mxu0 0.0
  %1565 = vmatpush1.msra.mxu0 0.0
  %1566 = vmatprep.subr.mxu0 0.0
  %1567 = vmatpush1.msra.mxu0 0.0
  %1568 = vmatprep.subr.mxu0 0.0
  %1569 = vmatpush1.msra.mxu0 0.0
  %1570 = vmatprep.subr.mxu0 0.0
  %1571 = vmatpush1.msra.mxu0 0.0
  %1572 = vmatprep.subr.mxu0 0.0
  %1573 = vmatpush1.msra.mxu0 0.0
  %1574 = vmatprep.subr.mxu0 0.0
  %1575 = vmatpush1.msra.mxu0 0.0
  %1576 = vmatprep.subr.mxu0 0.0
  %1577 = vmatpush1.msra.mxu0 0.0
  %1578 = vmatprep.subr.mxu0 0.0
  %1579 = vmatpush1.msra.mxu0 0.0
  %1580 = vmatprep.subr.mxu0 0.0
  %1581 = vmatpush1.msra.mxu0 0.0
  %1582 = vmatprep.subr.mxu0 0.0
  %1583 = vmatpush1.msra.mxu0 0.0
  %1584 = vmatprep.subr.mxu0 0.0
  %1585 = vmatpush1.msra.mxu0 0.0
  %1586 = vmatprep.subr.mxu0 0.0
  %1587 = vmatpush1.msra.mxu0 0.0
  %1588 = vmatprep.subr.mxu0 0.0
  %1589 = vmatpush1.msra.mxu0 0.0
  %1590 = vmatprep.subr.mxu0 0.0
  %1591 = vmatpush1.msra.mxu0 0.0
  %1592 = vmatprep.subr.mxu0 0.0
  %1593 = vmatpush1.msra.mxu0 0.0
  %1594 = vmatprep.subr.mxu0 0.0
  %1595 = vmatpush1.msra.mxu0 0.0
  %1596 = vmatprep.subr.mxu0 0.0
  %1597 = vmatpush1.msra.mxu0 0.0
  %1598 = vmatprep.subr.mxu0 0.0
  %1599 = vmatpush1.msra.mxu0 0.0
  %1600 = vmatprep.subr.mxu0 0.0
  %1601 = vmatpush1.msra.mxu0 0.0
  %1602 = vmatprep.subr.mxu0 0.0
  %1603 = vmatpush1.msra.mxu0 0.0
  %1604 = vmatprep.subr.mxu0 0.0
  %1605 = vmatpush1.msra.mxu0 0.0
  %1606 = vmatprep.mubr.f32.mxu0 0.0
  %1607 = vmatmul.mubr.f32.gmra.mrb[0].mxu0 %v1531
  %v1608 = vpop.f32.mrb[0].mxu0
  %v1609 = vadd.f32 0.0, %v1608
  %v1610 = vpop.f32.mrb[0].mxu0
  %1611 = vmatprep.mubr.f32.mxu0 0.0
  %1612 = vmatmul.mubr.f32.gmra.mrb[0].mxu0 %v1534
  %v1613 = vpop.f32.mrb[0].mxu0
  %v1614 = vadd.f32 0.0, %v1613
  %v1615 = vpop.f32.mrb[0].mxu0
  %1616 = vmatprep.mubr.f32.mxu0 0.0
  %1617 = vmatmul.mubr.f32.gmra.mrb[0].mxu0 %v1537
  %v1618 = vpop.f32.mrb[0].mxu0
  %v1619 = vadd.f32 0.0, %v1618
  %v1620 = vpop.f32.mrb[0].mxu0
  %1621 = vdwg.mxu0
  %v1623 = vsel %vm895, %v1152, 0
  %v1626 = vsel %vm895, %v1153, 0
  %v1629 = vsel %vm895, %v1154, 0
  %v1632 = vsel %vm1170, %v79, 0
  %1634 = vmatprep.subr.mxu0 0.0
  %1635 = vmatpush1.msra.mxu0 %v77
  %1636 = vmatprep.subr.mxu0 0.0
  %1637 = vmatpush1.msra.mxu0 %v78
  %1638 = vmatprep.subr.mxu0 0.0
  %1639 = vmatpush1.msra.mxu0 %v1632
  %1640 = vmatprep.subr.mxu0 0.0
  %1641 = vmatpush1.msra.mxu0 0.0
  %1642 = vmatprep.subr.mxu0 0.0
  %1643 = vmatpush1.msra.mxu0 0.0
  %1644 = vmatprep.subr.mxu0 0.0
  %1645 = vmatpush1.msra.mxu0 0.0
  %1646 = vmatprep.subr.mxu0 0.0
  %1647 = vmatpush1.msra.mxu0 0.0
  %1648 = vmatprep.subr.mxu0 0.0
  %1649 = vmatpush1.msra.mxu0 0.0
  %1650 = vmatprep.subr.mxu0 0.0
  %1651 = vmatpush1.msra.mxu0 0.0
  %1652 = vmatprep.subr.mxu0 0.0
  %1653 = vmatpush1.msra.mxu0 0.0
  %1654 = vmatprep.subr.mxu0 0.0
  %1655 = vmatpush1.msra.mxu0 0.0
  %1656 = vmatprep.subr.mxu0 0.0
  %1657 = vmatpush1.msra.mxu0 0.0
  %1658 = vmatprep.subr.mxu0 0.0
  %1659 = vmatpush1.msra.mxu0 0.0
  %1660 = vmatprep.subr.mxu0 0.0
  %1661 = vmatpush1.msra.mxu0 0.0
  %1662 = vmatprep.subr.mxu0 0.0
  %1663 = vmatpush1.msra.mxu0 0.0
  %1664 = vmatprep.subr.mxu0 0.0
  %1665 = vmatpush1.msra.mxu0 0.0
  %1666 = vmatprep.subr.mxu0 0.0
  %1667 = vmatpush1.msra.mxu0 0.0
  %1668 = vmatprep.subr.mxu0 0.0
  %1669 = vmatpush1.msra.mxu0 0.0
  %1670 = vmatprep.subr.mxu0 0.0
  %1671 = vmatpush1.msra.mxu0 0.0
  %1672 = vmatprep.subr.mxu0 0.0
  %1673 = vmatpush1.msra.mxu0 0.0
  %1674 = vmatprep.subr.mxu0 0.0
  %1675 = vmatpush1.msra.mxu0 0.0
  %1676 = vmatprep.subr.mxu0 0.0
  %1677 = vmatpush1.msra.mxu0 0.0
  %1678 = vmatprep.subr.mxu0 0.0
  %1679 = vmatpush1.msra.mxu0 0.0
  %1680 = vmatprep.subr.mxu0 0.0
  %1681 = vmatpush1.msra.mxu0 0.0
  %1682 = vmatprep.subr.mxu0 0.0
  %1683 = vmatpush1.msra.mxu0 0.0
  %1684 = vmatprep.subr.mxu0 0.0
  %1685 = vmatpush1.msra.mxu0 0.0
  %1686 = vmatprep.subr.mxu0 0.0
  %1687 = vmatpush1.msra.mxu0 0.0
  %1688 = vmatprep.subr.mxu0 0.0
  %1689 = vmatpush1.msra.mxu0 0.0
  %1690 = vmatprep.subr.mxu0 0.0
  %1691 = vmatpush1.msra.mxu0 0.0
  %1692 = vmatprep.subr.mxu0 0.0
  %1693 = vmatpush1.msra.mxu0 0.0
  %1694 = vmatprep.subr.mxu0 0.0
  %1695 = vmatpush1.msra.mxu0 0.0
  %1696 = vmatprep.subr.mxu0 0.0
  %1697 = vmatpush1.msra.mxu0 0.0
  %1698 = vmatprep.mubr.f32.mxu0 0.0
  %1699 = vmatmul.mubr.f32.gmra.mrb[0].mxu0 %v1623
  %v1700 = vpop.f32.mrb[0].mxu0
  %v1701 = vadd.f32 0.0, %v1700
  %v1702 = vpop.f32.mrb[0].mxu0
  %1703 = vmatprep.mubr.f32.mxu0 0.0
  %1704 = vmatmul.mubr.f32.gmra.mrb[0].mxu0 %v1626
  %v1705 = vpop.f32.mrb[0].mxu0
  %v1706 = vadd.f32 0.0, %v1705
  %v1707 = vpop.f32.mrb[0].mxu0
  %1708 = vmatprep.mubr.f32.mxu0 0.0
  %1709 = vmatmul.mubr.f32.gmra.mrb[0].mxu0 %v1629
  %v1710 = vpop.f32.mrb[0].mxu0
  %v1711 = vadd.f32 0.0, %v1710
  %v1712 = vpop.f32.mrb[0].mxu0
  %1713 = vdwg.mxu0
  %v1715 = vsel %vm895, %v1155, 0
  %v1718 = vsel %vm895, %v1156, 0
  %v1721 = vsel %vm895, %v1157, 0
  %v1724 = vsel %vm1170, %v82, 0
  %1726 = vmatprep.subr.mxu0 0.0
  %1727 = vmatpush1.msra.mxu0 %v80
  %1728 = vmatprep.subr.mxu0 0.0
  %1729 = vmatpush1.msra.mxu0 %v81
  %1730 = vmatprep.subr.mxu0 0.0
  %1731 = vmatpush1.msra.mxu0 %v1724
  %1732 = vmatprep.subr.mxu0 0.0
  %1733 = vmatpush1.msra.mxu0 0.0
  %1734 = vmatprep.subr.mxu0 0.0
  %1735 = vmatpush1.msra.mxu0 0.0
  %1736 = vmatprep.subr.mxu0 0.0
  %1737 = vmatpush1.msra.mxu0 0.0
  %1738 = vmatprep.subr.mxu0 0.0
  %1739 = vmatpush1.msra.mxu0 0.0
  %1740 = vmatprep.subr.mxu0 0.0
  %1741 = vmatpush1.msra.mxu0 0.0
  %1742 = vmatprep.subr.mxu0 0.0
  %1743 = vmatpush1.msra.mxu0 0.0
  %1744 = vmatprep.subr.mxu0 0.0
  %1745 = vmatpush1.msra.mxu0 0.0
  %1746 = vmatprep.subr.mxu0 0.0
  %1747 = vmatpush1.msra.mxu0 0.0
  %1748 = vmatprep.subr.mxu0 0.0
  %1749 = vmatpush1.msra.mxu0 0.0
  %1750 = vmatprep.subr.mxu0 0.0
  %1751 = vmatpush1.msra.mxu0 0.0
  %1752 = vmatprep.subr.mxu0 0.0
  %1753 = vmatpush1.msra.mxu0 0.0
  %1754 = vmatprep.subr.mxu0 0.0
  %1755 = vmatpush1.msra.mxu0 0.0
  %1756 = vmatprep.subr.mxu0 0.0
  %1757 = vmatpush1.msra.mxu0 0.0
  %1758 = vmatprep.subr.mxu0 0.0
  %1759 = vmatpush1.msra.mxu0 0.0
  %1760 = vmatprep.subr.mxu0 0.0
  %1761 = vmatpush1.msra.mxu0 0.0
  %1762 = vmatprep.subr.mxu0 0.0
  %1763 = vmatpush1.msra.mxu0 0.0
  %1764 = vmatprep.subr.mxu0 0.0
  %1765 = vmatpush1.msra.mxu0 0.0
  %1766 = vmatprep.subr.mxu0 0.0
  %1767 = vmatpush1.msra.mxu0 0.0
  %1768 = vmatprep.subr.mxu0 0.0
  %1769 = vmatpush1.msra.mxu0 0.0
  %1770 = vmatprep.subr.mxu0 0.0
  %1771 = vmatpush1.msra.mxu0 0.0
  %1772 = vmatprep.subr.mxu0 0.0
  %1773 = vmatpush1.msra.mxu0 0.0
  %1774 = vmatprep.subr.mxu0 0.0
  %1775 = vmatpush1.msra.mxu0 0.0
  %1776 = vmatprep.subr.mxu0 0.0
  %1777 = vmatpush1.msra.mxu0 0.0
  %1778 = vmatprep.subr.mxu0 0.0
  %1779 = vmatpush1.msra.mxu0 0.0
  %1780 = vmatprep.subr.mxu0 0.0
  %1781 = vmatpush1.msra.mxu0 0.0
  %1782 = vmatprep.subr.mxu0 0.0
  %1783 = vmatpush1.msra.mxu0 0.0
  %1784 = vmatprep.subr.mxu0 0.0
  %1785 = vmatpush1.msra.mxu0 0.0
  %1786 = vmatprep.subr.mxu0 0.0
  %1787 = vmatpush1.msra.mxu0 0.0
  %1788 = vmatprep.subr.mxu0 0.0
  %1789 = vmatpush1.msra.mxu0 0.0
  %1790 = vmatprep.mubr.f32.mxu0 0.0
  %1791 = vmatmul.mubr.f32.gmra.mrb[0].mxu0 %v1715
  %v1792 = vpop.f32.mrb[0].mxu0
  %v1793 = vadd.f32 0.0, %v1792
  %v1794 = vpop.f32.mrb[0].mxu0
  %1795 = vmatprep.mubr.f32.mxu0 0.0
  %1796 = vmatmul.mubr.f32.gmra.mrb[0].mxu0 %v1718
  %v1797 = vpop.f32.mrb[0].mxu0
  %v1798 = vadd.f32 0.0, %v1797
  %v1799 = vpop.f32.mrb[0].mxu0
  %1800 = vmatprep.mubr.f32.mxu0 0.0
  %1801 = vmatmul.mubr.f32.gmra.mrb[0].mxu0 %v1721
  %v1802 = vpop.f32.mrb[0].mxu0
  %v1803 = vadd.f32 0.0, %v1802
  %v1804 = vpop.f32.mrb[0].mxu0
  %1805 = vdwg.mxu0
  %v1807 = vsel %vm895, %v1158, 0
  %v1810 = vsel %vm895, %v1159, 0
  %v1813 = vsel %vm895, %v1160, 0
  %v1816 = vsel %vm1170, %v85, 0
  %1818 = vmatprep.subr.mxu0 0.0
  %1819 = vmatpush1.msra.mxu0 %v83
  %1820 = vmatprep.subr.mxu0 0.0
  %1821 = vmatpush1.msra.mxu0 %v84
  %1822 = vmatprep.subr.mxu0 0.0
  %1823 = vmatpush1.msra.mxu0 %v1816
  %1824 = vmatprep.subr.mxu0 0.0
  %1825 = vmatpush1.msra.mxu0 0.0
  %1826 = vmatprep.subr.mxu0 0.0
  %1827 = vmatpush1.msra.mxu0 0.0
  %1828 = vmatprep.subr.mxu0 0.0
  %1829 = vmatpush1.msra.mxu0 0.0
  %1830 = vmatprep.subr.mxu0 0.0
  %1831 = vmatpush1.msra.mxu0 0.0
  %1832 = vmatprep.subr.mxu0 0.0
  %1833 = vmatpush1.msra.mxu0 0.0
  %1834 = vmatprep.subr.mxu0 0.0
  %1835 = vmatpush1.msra.mxu0 0.0
  %1836 = vmatprep.subr.mxu0 0.0
  %1837 = vmatpush1.msra.mxu0 0.0
  %1838 = vmatprep.subr.mxu0 0.0
  %1839 = vmatpush1.msra.mxu0 0.0
  %1840 = vmatprep.subr.mxu0 0.0
  %1841 = vmatpush1.msra.mxu0 0.0
  %1842 = vmatprep.subr.mxu0 0.0
  %1843 = vmatpush1.msra.mxu0 0.0
  %1844 = vmatprep.subr.mxu0 0.0
  %1845 = vmatpush1.msra.mxu0 0.0
  %1846 = vmatprep.subr.mxu0 0.0
  %1847 = vmatpush1.msra.mxu0 0.0
  %1848 = vmatprep.subr.mxu0 0.0
  %1849 = vmatpush1.msra.mxu0 0.0
  %1850 = vmatprep.subr.mxu0 0.0
  %1851 = vmatpush1.msra.mxu0 0.0
  %1852 = vmatprep.subr.mxu0 0.0
  %1853 = vmatpush1.msra.mxu0 0.0
  %1854 = vmatprep.subr.mxu0 0.0
  %1855 = vmatpush1.msra.mxu0 0.0
  %1856 = vmatprep.subr.mxu0 0.0
  %1857 = vmatpush1.msra.mxu0 0.0
  %1858 = vmatprep.subr.mxu0 0.0
  %1859 = vmatpush1.msra.mxu0 0.0
  %1860 = vmatprep.subr.mxu0 0.0
  %1861 = vmatpush1.msra.mxu0 0.0
  %1862 = vmatprep.subr.mxu0 0.0
  %1863 = vmatpush1.msra.mxu0 0.0
  %1864 = vmatprep.subr.mxu0 0.0
  %1865 = vmatpush1.msra.mxu0 0.0
  %1866 = vmatprep.subr.mxu0 0.0
  %1867 = vmatpush1.msra.mxu0 0.0
  %1868 = vmatprep.subr.mxu0 0.0
  %1869 = vmatpush1.msra.mxu0 0.0
  %1870 = vmatprep.subr.mxu0 0.0
  %1871 = vmatpush1.msra.mxu0 0.0
  %1872 = vmatprep.subr.mxu0 0.0
  %1873 = vmatpush1.msra.mxu0 0.0
  %1874 = vmatprep.subr.mxu0 0.0
  %1875 = vmatpush1.msra.mxu0 0.0
  %1876 = vmatprep.subr.mxu0 0.0
  %1877 = vmatpush1.msra.mxu0 0.0
  %1878 = vmatprep.subr.mxu0 0.0
  %1879 = vmatpush1.msra.mxu0 0.0
  %1880 = vmatprep.subr.mxu0 0.0
  %1881 = vmatpush1.msra.mxu0 0.0
  %1882 = vmatprep.mubr.f32.mxu0 0.0
  %1883 = vmatmul.mubr.f32.gmra.mrb[0].mxu0 %v1807
  %v1884 = vpop.f32.mrb[0].mxu0
  %v1885 = vadd.f32 0.0, %v1884
  %v1886 = vpop.f32.mrb[0].mxu0
  %1887 = vmatprep.mubr.f32.mxu0 0.0
  %1888 = vmatmul.mubr.f32.gmra.mrb[0].mxu0 %v1810
  %v1889 = vpop.f32.mrb[0].mxu0
  %v1890 = vadd.f32 0.0, %v1889
  %v1891 = vpop.f32.mrb[0].mxu0
  %1892 = vmatprep.mubr.f32.mxu0 0.0
  %1893 = vmatmul.mubr.f32.gmra.mrb[0].mxu0 %v1813
  %v1894 = vpop.f32.mrb[0].mxu0
  %v1895 = vadd.f32 0.0, %v1894
  %v1896 = vpop.f32.mrb[0].mxu0
  %1897 = vdwg.mxu0
  %1898 = vst.msk [vmem:[%s3] sm:$0xff] %vm86, %v1241
  %1899 = vst.msk [vmem:[%s3 + $0x8] sm:$0xff] %vm86, %v1246
  %vm1900 = vcmask 57344
  %1901 = vst.msk [vmem:[%s3 + $0x10] sm:$0x1] %vm1900, %v1251
  %1902 = vst.msk [vmem:[%s3 + $0x18] sm:$0xff] %vm86, %v1333
  %1903 = vst.msk [vmem:[%s3 + $0x20] sm:$0xff] %vm86, %v1338
  %1904 = vst.msk [vmem:[%s3 + $0x28] sm:$0x1] %vm1900, %v1343
  %1905 = vst.msk [vmem:[%s3 + $0x30] sm:$0xff] %vm86, %v1425
  %1906 = vst.msk [vmem:[%s3 + $0x38] sm:$0xff] %vm86, %v1430
  %1907 = vst.msk [vmem:[%s3 + $0x40] sm:$0x1] %vm1900, %v1435
  %1908 = vst.msk [vmem:[%s3 + $0x48] sm:$0xff] %vm86, %v1517
  %1909 = vst.msk [vmem:[%s3 + $0x50] sm:$0xff] %vm86, %v1522
  %1910 = vst.msk [vmem:[%s3 + $0x58] sm:$0x1] %vm1900, %v1527
  %1911 = vst.msk [vmem:[%s3 + $0x60] sm:$0xff] %vm86, %v1609
  %1912 = vst.msk [vmem:[%s3 + $0x68] sm:$0xff] %vm86, %v1614
  %1913 = vst.msk [vmem:[%s3 + $0x70] sm:$0x1] %vm1900, %v1619
  %1914 = vst.msk [vmem:[%s3 + $0x78] sm:$0xff] %vm86, %v1701
  %1915 = vst.msk [vmem:[%s3 + $0x80] sm:$0xff] %vm86, %v1706
  %1916 = vst.msk [vmem:[%s3 + $0x88] sm:$0x1] %vm1900, %v1711
  %1917 = vst.msk [vmem:[%s3 + $0x90] sm:$0xff] %vm86, %v1793
  %1918 = vst.msk [vmem:[%s3 + $0x98] sm:$0xff] %vm86, %v1798
  %1919 = vst.msk [vmem:[%s3 + $0xa0] sm:$0x1] %vm1900, %v1803
  %1920 = vst.msk [vmem:[%s3 + $0xa8] sm:$0xff] %vm86, %v1885
  %1921 = vst.msk [vmem:[%s3 + $0xb0] sm:$0xff] %vm86, %v1890
  %1922 = vst.msk [vmem:[%s3 + $0xb8] sm:$0x1] %vm1900, %v1895
  // Predicated region
  $region14: #{vit_forward.14} parent=0 // pred_check
    _
  $region15: #{vit_forward.14} parent=0 // pred_check_branch
    %1924 = sbr.rel (0) target = $region17
  $region16: #{vit_forward.14} parent=0 // pred_region
    _
  $region17: #{vit_forward.14} parent=0 // pred_fallthru
    _
  // Predicated region
  $region18: #{vit_forward.14} parent=0 // pred_check
    _
  $region19: #{vit_forward.14} parent=0 // pred_check_branch
    %1926 = sbr.rel (0) target = $region21
  $region20: #{vit_forward.14} parent=0 // pred_region
    _
  $region21: #{vit_forward.14} parent=0 // pred_fallthru
    _

// kernel: vit_forward.16
$region0: #{vit_forward.16}
  #allocation0 [shape = 'u32[]', space=smem, size = 0x4, offset = 0x4, fixed_abs, tag = 'smem constant byte address 0x4 - core index']
  #allocation1 [shape = 'u32[144,128]{1,0:T(1,128)}', space=vmem, size = 0x12000, scoped, tag = 'internal scratch']
  %s0 = inlined_call_operand.vmem [shape: f32[34,128], index: 0, kind: input, shape index: {}]
  %s1 = inlined_call_operand.vmem [shape: f32[1,128], index: 1, kind: input, shape index: {}]
  %s2 = inlined_call_operand.vmem [shape: f32[1,128], index: 2, kind: input, shape index: {}]
  %s3 = inlined_call_operand.vmem [shape: f32[128,128], index: 3, kind: input, shape index: {}]
  %s4 = inlined_call_operand.vmem [shape: f32[1,128], index: 4, kind: input, shape index: {}]
  %s5 = inlined_call_operand.vmem [shape: f32[34,128], index: 5, kind: output, shape index: {}]
  %s6 = sld [smem:[#allocation0]]
  $region30: #{vit_forward.16} parent=0
    _
  %s8 = ssub.s32 1, %s6
  %s9 = scalar_select 0, %s8, %s6
  // Predicated region
  $region2: #{vit_forward.16} parent=0 // pred_check
    _
  $region3: #{vit_forward.16} parent=0 // pred_check_branch
    %11 = sbr.rel (0) target = $region5
  $region4: #{vit_forward.16} parent=0 // pred_region
    _
  $region5: #{vit_forward.16} parent=0 // pred_fallthru
    _
  // Predicated region
  $region6: #{vit_forward.16} parent=0 // pred_check
    _
  $region7: #{vit_forward.16} parent=0 // pred_check_branch
    %13 = sbr.rel (0) target = $region9
  $region8: #{vit_forward.16} parent=0 // pred_region
    _
  $region9: #{vit_forward.16} parent=0 // pred_fallthru
    _
  // Predicated region
  $region10: #{vit_forward.16} parent=0 // pred_check
    _
  $region11: #{vit_forward.16} parent=0 // pred_check_branch
    %15 = sbr.rel (0) target = $region13
  $region12: #{vit_forward.16} parent=0 // pred_region
    _
  $region13: #{vit_forward.16} parent=0 // pred_fallthru
    _
  // Predicated region
  $region14: #{vit_forward.16} parent=0 // pred_check
    _
  $region15: #{vit_forward.16} parent=0 // pred_check_branch
    %17 = sbr.rel (0) target = $region17
  $region16: #{vit_forward.16} parent=0 // pred_region
    _
  $region17: #{vit_forward.16} parent=0 // pred_fallthru
    _
  // Predicated region
  $region18: #{vit_forward.16} parent=0 // pred_check
    _
  $region19: #{vit_forward.16} parent=0 // pred_check_branch
    %19 = sbr.rel (0) target = $region21
  $region20: #{vit_forward.16} parent=0 // pred_region
    _
  $region21: #{vit_forward.16} parent=0 // pred_fallthru
    _
  %v20 = vld [vmem:[%s0] sm:$0xff]
  %v21 = vld [vmem:[%s0 + $0x8] sm:$0xff]
  %v22 = vld [vmem:[%s0 + $0x10] sm:$0xff]
  %v23 = vld [vmem:[%s0 + $0x18] sm:$0xff]
  %v24 = vld [vmem:[%s0 + $0x20] sm:$0x3]
  %25 = vadd.xlane.f32.xlu0 %v20
  %v26 = vpop.xlane.xlu0 %25
  %27 = vadd.xlane.f32.xlu0 %v21
  %v28 = vpop.xlane.xlu0 %27
  %29 = vadd.xlane.f32.xlu0 %v22
  %v30 = vpop.xlane.xlu0 %29
  %31 = vadd.xlane.f32.xlu0 %v23
  %v32 = vpop.xlane.xlu0 %31
  %vm33 = vcmask 1041408
  %v34 = vsel %vm33, %v24, 0.0
  %35 = vadd.xlane.f32.xlu0 %v34
  %v36 = vpop.xlane.xlu0 %35
  %v37 = vmul.f32 %v26, 0.03125
  %v38 = vmul.f32 %v28, 0.03125
  %v39 = vmul.f32 %v30, 0.03125
  %v40 = vmul.f32 %v32, 0.03125
  %v41 = vmul.f32 %v36, 0.03125
  %v42 = vmul.f32 %v20, %v20
  %v43 = vmul.f32 %v21, %v21
  %v44 = vmul.f32 %v22, %v22
  %v45 = vmul.f32 %v23, %v23
  %v46 = vmul.f32 %v24, %v24
  %47 = vadd.xlane.f32.xlu0 %v42
  %v48 = vpop.xlane.xlu0 %47
  %49 = vadd.xlane.f32.xlu0 %v43
  %v50 = vpop.xlane.xlu0 %49
  %51 = vadd.xlane.f32.xlu0 %v44
  %v52 = vpop.xlane.xlu0 %51
  %53 = vadd.xlane.f32.xlu0 %v45
  %v54 = vpop.xlane.xlu0 %53
  %v55 = vsel %vm33, %v46, 0.0
  %56 = vadd.xlane.f32.xlu0 %v55
  %v57 = vpop.xlane.xlu0 %56
  %v58 = vmul.f32 %v48, 0.03125
  %v59 = vmul.f32 %v50, 0.03125
  %v60 = vmul.f32 %v52, 0.03125
  %v61 = vmul.f32 %v54, 0.03125
  %v62 = vmul.f32 %v57, 0.03125
  %v63 = vmul.f32 %v37, %v37
  %v64 = vmul.f32 %v38, %v38
  %v65 = vmul.f32 %v39, %v39
  %v66 = vmul.f32 %v40, %v40
  %v67 = vmul.f32 %v41, %v41
  %v68 = vsub.f32 %v58, %v63
  %v69 = vsub.f32 %v59, %v64
  %v70 = vsub.f32 %v60, %v65
  %v71 = vsub.f32 %v61, %v66
  %v72 = vsub.f32 %v62, %v67
  %v73 = vsub.f32 %v20, %v37
  %v74 = vsub.f32 %v21, %v38
  %v75 = vsub.f32 %v22, %v39
  %v76 = vsub.f32 %v23, %v40
  %v77 = vsub.f32 %v24, %v41
  %v78 = vadd.f32 %v68, 1e-05
  %v79 = vadd.f32 %v69, 1e-05
  %v80 = vadd.f32 %v70, 1e-05
  %v81 = vadd.f32 %v71, 1e-05
  %v82 = vadd.f32 %v72, 1e-05
  %v83 = vrsqrt.pop %v78
  %v84 = vrsqrt.pop %v79
  %v85 = vrsqrt.pop %v80
  %v86 = vrsqrt.pop %v81
  %v87 = vrsqrt.pop %v82
  %v88 = vmul.f32 %v73, %v83
  %v89 = vmul.f32 %v74, %v84
  %v90 = vmul.f32 %v75, %v85
  %v91 = vmul.f32 %v76, %v86
  %v92 = vmul.f32 %v77, %v87
  %v93 = vld [vmem:[%s1] sm:$0x1]
  %v95 = vlaneseq
  %v96 = vshrl.u32 %v95, 7
  %v97 = vsub.s32 0, %v96
  %v98 = vrot.slane %v93, %v97
  %v100 = vmul.f32 %v88, %v98
  %v101 = vmul.f32 %v89, %v98
  %v102 = vmul.f32 %v90, %v98
  %v103 = vmul.f32 %v91, %v98
  %v104 = vmul.f32 %v92, %v98
  %v105 = vld [vmem:[%s2] sm:$0x1]
  %v107 = vlaneseq
  %v108 = vshrl.u32 %v107, 7
  %v109 = vsub.s32 0, %v108
  %v110 = vrot.slane %v105, %v109
  %v112 = vadd.f32 %v100, %v110
  %v113 = vadd.f32 %v101, %v110
  %v114 = vadd.f32 %v102, %v110
  %v115 = vadd.f32 %v103, %v110
  %v116 = vadd.f32 %v104, %v110
  %v117 = vld [vmem:[%s3] sm:$0xff]
  %v118 = vld [vmem:[%s3 + $0x8] sm:$0xff]
  %v119 = vld [vmem:[%s3 + $0x10] sm:$0xff]
  %v120 = vld [vmem:[%s3 + $0x18] sm:$0xff]
  %v121 = vld [vmem:[%s3 + $0x20] sm:$0xff]
  %v122 = vld [vmem:[%s3 + $0x28] sm:$0xff]
  %v123 = vld [vmem:[%s3 + $0x30] sm:$0xff]
  %v124 = vld [vmem:[%s3 + $0x38] sm:$0xff]
  %v125 = vld [vmem:[%s3 + $0x40] sm:$0xff]
  %v126 = vld [vmem:[%s3 + $0x48] sm:$0xff]
  %v127 = vld [vmem:[%s3 + $0x50] sm:$0xff]
  %v128 = vld [vmem:[%s3 + $0x58] sm:$0xff]
  %v129 = vld [vmem:[%s3 + $0x60] sm:$0xff]
  %v130 = vld [vmem:[%s3 + $0x68] sm:$0xff]
  %v131 = vld [vmem:[%s3 + $0x70] sm:$0xff]
  %v132 = vld [vmem:[%s3 + $0x78] sm:$0xff]
  %v133 = vld [vmem:[%s4] sm:$0x1]
  %v135 = vlaneseq
  %v136 = vshrl.u32 %v135, 7
  %v137 = vsub.s32 0, %v136
  %v138 = vrot.slane %v133, %v137
  %140 = vmatprep.subr.mxu0 0.0
  %141 = vmatpush1.msra.mxu0 %v117
  %142 = vmatprep.subr.mxu0 0.0
  %143 = vmatpush1.msra.mxu0 %v118
  %144 = vmatprep.subr.mxu0 0.0
  %145 = vmatpush1.msra.mxu0 %v119
  %146 = vmatprep.subr.mxu0 0.0
  %147 = vmatpush1.msra.mxu0 %v120
  %148 = vmatprep.subr.mxu0 0.0
  %149 = vmatpush1.msra.mxu0 %v121
  %150 = vmatprep.subr.mxu0 0.0
  %151 = vmatpush1.msra.mxu0 %v122
  %152 = vmatprep.subr.mxu0 0.0
  %153 = vmatpush1.msra.mxu0 %v123
  %154 = vmatprep.subr.mxu0 0.0
  %155 = vmatpush1.msra.mxu0 %v124
  %156 = vmatprep.subr.mxu0 0.0
  %157 = vmatpush1.msra.mxu0 %v125
  %158 = vmatprep.subr.mxu0 0.0
  %159 = vmatpush1.msra.mxu0 %v126
  %160 = vmatprep.subr.mxu0 0.0
  %161 = vmatpush1.msra.mxu0 %v127
  %162 = vmatprep.subr.mxu0 0.0
  %163 = vmatpush1.msra.mxu0 %v128
  %164 = vmatprep.subr.mxu0 0.0
  %165 = vmatpush1.msra.mxu0 %v129
  %166 = vmatprep.subr.mxu0 0.0
  %167 = vmatpush1.msra.mxu0 %v130
  %168 = vmatprep.subr.mxu0 0.0
  %169 = vmatpush1.msra.mxu0 %v131
  %170 = vmatprep.subr.mxu0 0.0
  %171 = vmatpush1.msra.mxu0 %v132
  %172 = vmatprep.subr.mxu0 0.0
  %173 = vmatpush1.msra.mxu0 0.0
  %174 = vmatprep.subr.mxu0 0.0
  %175 = vmatpush1.msra.mxu0 0.0
  %176 = vmatprep.subr.mxu0 0.0
  %177 = vmatpush1.msra.mxu0 0.0
  %178 = vmatprep.subr.mxu0 0.0
  %179 = vmatpush1.msra.mxu0 0.0
  %180 = vmatprep.subr.mxu0 0.0
  %181 = vmatpush1.msra.mxu0 0.0
  %182 = vmatprep.subr.mxu0 0.0
  %183 = vmatpush1.msra.mxu0 0.0
  %184 = vmatprep.subr.mxu0 0.0
  %185 = vmatpush1.msra.mxu0 0.0
  %186 = vmatprep.subr.mxu0 0.0
  %187 = vmatpush1.msra.mxu0 0.0
  %188 = vmatprep.subr.mxu0 0.0
  %189 = vmatpush1.msra.mxu0 0.0
  %190 = vmatprep.subr.mxu0 0.0
  %191 = vmatpush1.msra.mxu0 0.0
  %192 = vmatprep.subr.mxu0 0.0
  %193 = vmatpush1.msra.mxu0 0.0
  %194 = vmatprep.subr.mxu0 0.0
  %195 = vmatpush1.msra.mxu0 0.0
  %196 = vmatprep.subr.mxu0 0.0
  %197 = vmatpush1.msra.mxu0 0.0
  %198 = vmatprep.subr.mxu0 0.0
  %199 = vmatpush1.msra.mxu0 0.0
  %200 = vmatprep.subr.mxu0 0.0
  %201 = vmatpush1.msra.mxu0 0.0
  %202 = vmatprep.subr.mxu0 0.0
  %203 = vmatpush1.msra.mxu0 0.0
  %204 = vmatprep.mubr.f32.mxu0 0.0
  %205 = vmatmul.mubr.f32.gmra.mrb[0].mxu0 %v112
  %v206 = vpop.f32.mrb[0].mxu0
  %v207 = vadd.f32 %v138, %v206
  %v208 = vpop.f32.mrb[0].mxu0
  %209 = vmatprep.mubr.f32.mxu0 0.0
  %210 = vmatmul.mubr.f32.gmra.mrb[0].mxu0 %v113
  %v211 = vpop.f32.mrb[0].mxu0
  %v212 = vadd.f32 %v138, %v211
  %v213 = vpop.f32.mrb[0].mxu0
  %214 = vmatprep.mubr.f32.mxu0 0.0
  %215 = vmatmul.mubr.f32.gmra.mrb[0].mxu0 %v114
  %v216 = vpop.f32.mrb[0].mxu0
  %v217 = vadd.f32 %v138, %v216
  %v218 = vpop.f32.mrb[0].mxu0
  %219 = vmatprep.mubr.f32.mxu0 0.0
  %220 = vmatmul.mubr.f32.gmra.mrb[0].mxu0 %v115
  %v221 = vpop.f32.mrb[0].mxu0
  %v222 = vadd.f32 %v138, %v221
  %v223 = vpop.f32.mrb[0].mxu0
  %224 = vmatprep.mubr.f32.mxu0 0.0
  %225 = vmatmul.mubr.f32.gmra.mrb[0].mxu0 %v116
  %v226 = vpop.f32.mrb[0].mxu0
  %v227 = vadd.f32 %v138, %v226
  %v228 = vpop.f32.mrb[0].mxu0
  %229 = vdwg.mxu0
  %v230 = vmul.f32 %v207, 0.5
  %v231 = vmul.f32 %v212, 0.5
  %v232 = vmul.f32 %v217, 0.5
  %v233 = vmul.f32 %v222, 0.5
  %v234 = vmul.f32 %v227, 0.5
  %v235 = vmul.f32 %v207, 0.044715
  %v236 = vmul.f32 %v212, 0.044715
  %v237 = vmul.f32 %v217, 0.044715
  %v238 = vmul.f32 %v222, 0.044715
  %v239 = vmul.f32 %v227, 0.044715
  %v240 = vmul.f32 %v235, %v207
  %v241 = vmul.f32 %v236, %v212
  %v242 = vmul.f32 %v237, %v217
  %v243 = vmul.f32 %v238, %v222
  %v244 = vmul.f32 %v239, %v227
  %v245 = vmul.f32 %v240, %v207
  %v246 = vmul.f32 %v241, %v212
  %v247 = vmul.f32 %v242, %v217
  %v248 = vmul.f32 %v243, %v222
  %v249 = vmul.f32 %v244, %v227
  %v250 = vadd.f32 %v207, %v245
  %v251 = vadd.f32 %v212, %v246
  %v252 = vadd.f32 %v217, %v247
  %v253 = vadd.f32 %v222, %v248
  %v254 = vadd.f32 %v227, %v249
  %v255 = vmul.f32 %v250, 0.7978846
  %v256 = vmul.f32 %v251, 0.7978846
  %v257 = vmul.f32 %v252, 0.7978846
  %v258 = vmul.f32 %v253, 0.7978846
  %v259 = vmul.f32 %v254, 0.7978846
  %v260 = vtanh.pop %v255
  %v261 = vtanh.pop %v256
  %v262 = vtanh.pop %v257
  %v263 = vtanh.pop %v258
  %v264 = vtanh.pop %v259
  %v265 = vadd.f32 %v260, 1.0
  %v266 = vadd.f32 %v261, 1.0
  %v267 = vadd.f32 %v262, 1.0
  %v268 = vadd.f32 %v263, 1.0
  %v269 = vadd.f32 %v264, 1.0
  %v270 = vmul.f32 %v230, %v265
  %v271 = vmul.f32 %v231, %v266
  %v272 = vmul.f32 %v232, %v267
  %v273 = vmul.f32 %v233, %v268
  %v274 = vmul.f32 %v234, %v269
  %275 = vst [vmem:[%s5] sm:$0xff] %v270
  %276 = vst [vmem:[%s5 + $0x8] sm:$0xff] %v271
  %277 = vst [vmem:[%s5 + $0x10] sm:$0xff] %v272
  %278 = vst [vmem:[%s5 + $0x18] sm:$0xff] %v273
  %279 = vst [vmem:[%s5 + $0x20] sm:$0x3] %v274
  // Predicated region
  $region22: #{vit_forward.16} parent=0 // pred_check
    _
  $region23: #{vit_forward.16} parent=0 // pred_check_branch
    %281 = sbr.rel (0) target = $region25
  $region24: #{vit_forward.16} parent=0 // pred_region
    _
  $region25: #{vit_forward.16} parent=0 // pred_fallthru
    _
  // Predicated region
  $region26: #{vit_forward.16} parent=0 // pred_check
    _
  $region27: #{vit_forward.16} parent=0 // pred_check_branch
    %283 = sbr.rel (0) target = $region29
  $region28: #{vit_forward.16} parent=0 // pred_region
    _
  $region29: #{vit_forward.16} parent=0 // pred_fallthru
    _

// kernel: vit_forward.15
$region0: #{vit_forward.15}
  #allocation0 [shape = 'u32[]', space=smem, size = 0x4, offset = 0x4, fixed_abs, tag = 'smem constant byte address 0x4 - core index']
  #allocation1 [shape = 'u32[144,128]{1,0:T(1,128)}', space=vmem, size = 0x12000, scoped, tag = 'internal scratch']
  %s0 = inlined_call_operand.vmem [shape: f32[34,32], index: 0, kind: input, shape index: {}]
  %s1 = inlined_call_operand.vmem [shape: f32[32,128], index: 1, kind: input, shape index: {}]
  %s2 = inlined_call_operand.vmem [shape: f32[1,128], index: 2, kind: input, shape index: {}]
  %s3 = inlined_call_operand.vmem [shape: f32[34,128], index: 3, kind: input, shape index: {}]
  %s4 = inlined_call_operand.vmem [shape: f32[34,128], index: 4, kind: output, shape index: {}]
  %s5 = sld [smem:[#allocation0]]
  $region26: #{vit_forward.15} parent=0
    _
  %s7 = ssub.s32 1, %s5
  %s8 = scalar_select 0, %s7, %s5
  // Predicated region
  $region2: #{vit_forward.15} parent=0 // pred_check
    _
  $region3: #{vit_forward.15} parent=0 // pred_check_branch
    %10 = sbr.rel (0) target = $region5
  $region4: #{vit_forward.15} parent=0 // pred_region
    _
  $region5: #{vit_forward.15} parent=0 // pred_fallthru
    _
  // Predicated region
  $region6: #{vit_forward.15} parent=0 // pred_check
    _
  $region7: #{vit_forward.15} parent=0 // pred_check_branch
    %12 = sbr.rel (0) target = $region9
  $region8: #{vit_forward.15} parent=0 // pred_region
    _
  $region9: #{vit_forward.15} parent=0 // pred_fallthru
    _
  // Predicated region
  $region10: #{vit_forward.15} parent=0 // pred_check
    _
  $region11: #{vit_forward.15} parent=0 // pred_check_branch
    %14 = sbr.rel (0) target = $region13
  $region12: #{vit_forward.15} parent=0 // pred_region
    _
  $region13: #{vit_forward.15} parent=0 // pred_fallthru
    _
  // Predicated region
  $region14: #{vit_forward.15} parent=0 // pred_check
    _
  $region15: #{vit_forward.15} parent=0 // pred_check_branch
    %16 = sbr.rel (0) target = $region17
  $region16: #{vit_forward.15} parent=0 // pred_region
    _
  $region17: #{vit_forward.15} parent=0 // pred_fallthru
    _
  %v17 = vld [vmem:[%s0] sm:$0xff]
  %v18 = vld [vmem:[%s0 + $0x8] sm:$0xff]
  %v19 = vld [vmem:[%s0 + $0x10] sm:$0xff]
  %v20 = vld [vmem:[%s0 + $0x18] sm:$0xff]
  %v21 = vld [vmem:[%s0 + $0x20] sm:$0x3]
  %v22 = vld [vmem:[%s1] sm:$0xff]
  %v23 = vld [vmem:[%s1 + $0x8] sm:$0xff]
  %v24 = vld [vmem:[%s1 + $0x10] sm:$0xff]
  %v25 = vld [vmem:[%s1 + $0x18] sm:$0xff]
  %v26 = vld [vmem:[%s2] sm:$0x1]
  %v28 = vlaneseq
  %v29 = vshrl.u32 %v28, 7
  %v30 = vsub.s32 0, %v29
  %v31 = vrot.slane %v26, %v30
  %vm33 = vcmask 261120
  %v35 = vsel %vm33, %v17, 0
  %v38 = vsel %vm33, %v18, 0
  %v41 = vsel %vm33, %v19, 0
  %v44 = vsel %vm33, %v20, 0
  %v47 = vsel %vm33, %v21, 0
  %49 = vmatprep.subr.mxu0 0.0
  %50 = vmatpush1.msra.mxu0 %v22
  %51 = vmatprep.subr.mxu0 0.0
  %52 = vmatpush1.msra.mxu0 %v23
  %53 = vmatprep.subr.mxu0 0.0
  %54 = vmatpush1.msra.mxu0 %v24
  %55 = vmatprep.subr.mxu0 0.0
  %56 = vmatpush1.msra.mxu0 %v25
  %57 = vmatprep.subr.mxu0 0.0
  %58 = vmatpush1.msra.mxu0 0.0
  %59 = vmatprep.subr.mxu0 0.0
  %60 = vmatpush1.msra.mxu0 0.0
  %61 = vmatprep.subr.mxu0 0.0
  %62 = vmatpush1.msra.mxu0 0.0
  %63 = vmatprep.subr.mxu0 0.0
  %64 = vmatpush1.msra.mxu0 0.0
  %65 = vmatprep.subr.mxu0 0.0
  %66 = vmatpush1.msra.mxu0 0.0
  %67 = vmatprep.subr.mxu0 0.0
  %68 = vmatpush1.msra.mxu0 0.0
  %69 = vmatprep.subr.mxu0 0.0
  %70 = vmatpush1.msra.mxu0 0.0
  %71 = vmatprep.subr.mxu0 0.0
  %72 = vmatpush1.msra.mxu0 0.0
  %73 = vmatprep.subr.mxu0 0.0
  %74 = vmatpush1.msra.mxu0 0.0
  %75 = vmatprep.subr.mxu0 0.0
  %76 = vmatpush1.msra.mxu0 0.0
  %77 = vmatprep.subr.mxu0 0.0
  %78 = vmatpush1.msra.mxu0 0.0
  %79 = vmatprep.subr.mxu0 0.0
  %80 = vmatpush1.msra.mxu0 0.0
  %81 = vmatprep.subr.mxu0 0.0
  %82 = vmatpush1.msra.mxu0 0.0
  %83 = vmatprep.subr.mxu0 0.0
  %84 = vmatpush1.msra.mxu0 0.0
  %85 = vmatprep.subr.mxu0 0.0
  %86 = vmatpush1.msra.mxu0 0.0
  %87 = vmatprep.subr.mxu0 0.0
  %88 = vmatpush1.msra.mxu0 0.0
  %89 = vmatprep.subr.mxu0 0.0
  %90 = vmatpush1.msra.mxu0 0.0
  %91 = vmatprep.subr.mxu0 0.0
  %92 = vmatpush1.msra.mxu0 0.0
  %93 = vmatprep.subr.mxu0 0.0
  %94 = vmatpush1.msra.mxu0 0.0
  %95 = vmatprep.subr.mxu0 0.0
  %96 = vmatpush1.msra.mxu0 0.0
  %97 = vmatprep.subr.mxu0 0.0
  %98 = vmatpush1.msra.mxu0 0.0
  %99 = vmatprep.subr.mxu0 0.0
  %100 = vmatpush1.msra.mxu0 0.0
  %101 = vmatprep.subr.mxu0 0.0
  %102 = vmatpush1.msra.mxu0 0.0
  %103 = vmatprep.subr.mxu0 0.0
  %104 = vmatpush1.msra.mxu0 0.0
  %105 = vmatprep.subr.mxu0 0.0
  %106 = vmatpush1.msra.mxu0 0.0
  %107 = vmatprep.subr.mxu0 0.0
  %108 = vmatpush1.msra.mxu0 0.0
  %109 = vmatprep.subr.mxu0 0.0
  %110 = vmatpush1.msra.mxu0 0.0
  %111 = vmatprep.subr.mxu0 0.0
  %112 = vmatpush1.msra.mxu0 0.0
  %113 = vmatprep.mubr.f32.mxu0 0.0
  %114 = vmatmul.mubr.f32.gmra.mrb[0].mxu0 %v35
  %v115 = vpop.f32.mrb[0].mxu0
  %v116 = vadd.f32 %v31, %v115
  %v117 = vpop.f32.mrb[0].mxu0
  %118 = vmatprep.mubr.f32.mxu0 0.0
  %119 = vmatmul.mubr.f32.gmra.mrb[0].mxu0 %v38
  %v120 = vpop.f32.mrb[0].mxu0
  %v121 = vadd.f32 %v31, %v120
  %v122 = vpop.f32.mrb[0].mxu0
  %123 = vmatprep.mubr.f32.mxu0 0.0
  %124 = vmatmul.mubr.f32.gmra.mrb[0].mxu0 %v41
  %v125 = vpop.f32.mrb[0].mxu0
  %v126 = vadd.f32 %v31, %v125
  %v127 = vpop.f32.mrb[0].mxu0
  %128 = vmatprep.mubr.f32.mxu0 0.0
  %129 = vmatmul.mubr.f32.gmra.mrb[0].mxu0 %v44
  %v130 = vpop.f32.mrb[0].mxu0
  %v131 = vadd.f32 %v31, %v130
  %v132 = vpop.f32.mrb[0].mxu0
  %133 = vmatprep.mubr.f32.mxu0 0.0
  %134 = vmatmul.mubr.f32.gmra.mrb[0].mxu0 %v47
  %v135 = vpop.f32.mrb[0].mxu0
  %v136 = vadd.f32 %v31, %v135
  %v137 = vpop.f32.mrb[0].mxu0
  %138 = vdwg.mxu0
  %v139 = vld [vmem:[%s3] sm:$0xff]
  %v140 = vld [vmem:[%s3 + $0x8] sm:$0xff]
  %v141 = vld [vmem:[%s3 + $0x10] sm:$0xff]
  %v142 = vld [vmem:[%s3 + $0x18] sm:$0xff]
  %v143 = vld [vmem:[%s3 + $0x20] sm:$0x3]
  %v144 = vadd.f32 %v116, %v139
  %v145 = vadd.f32 %v121, %v140
  %v146 = vadd.f32 %v126, %v141
  %v147 = vadd.f32 %v131, %v142
  %v148 = vadd.f32 %v136, %v143
  %149 = vst [vmem:[%s4] sm:$0xff] %v144
  %150 = vst [vmem:[%s4 + $0x8] sm:$0xff] %v145
  %151 = vst [vmem:[%s4 + $0x10] sm:$0xff] %v146
  %152 = vst [vmem:[%s4 + $0x18] sm:$0xff] %v147
  %153 = vst [vmem:[%s4 + $0x20] sm:$0x3] %v148
  // Predicated region
  $region18: #{vit_forward.15} parent=0 // pred_check
    _
  $region19: #{vit_forward.15} parent=0 // pred_check_branch
    %155 = sbr.rel (0) target = $region21
  $region20: #{vit_forward.15} parent=0 // pred_region
    _
  $region21: #{vit_forward.15} parent=0 // pred_fallthru
    _
  // Predicated region
  $region22: #{vit_forward.15} parent=0 // pred_check
    _
  $region23: #{vit_forward.15} parent=0 // pred_check_branch
    %157 = sbr.rel (0) target = $region25
  $region24: #{vit_forward.15} parent=0 // pred_region
    _
  $region25: #{vit_forward.15} parent=0 // pred_fallthru
    _

// kernel: vit_forward.17
$region0: #{vit_forward.17}
  #allocation0 [shape = 'u32[]', space=smem, size = 0x4, offset = 0x4, fixed_abs, tag = 'smem constant byte address 0x4 - core index']
  #allocation1 [shape = 'u32[144,128]{1,0:T(1,128)}', space=vmem, size = 0x12000, scoped, tag = 'internal scratch']
  %s0 = inlined_call_operand.vmem [shape: f32[34,128], index: 0, kind: input, shape index: {}]
  %s1 = inlined_call_operand.vmem [shape: f32[128,128], index: 1, kind: input, shape index: {}]
  %s2 = inlined_call_operand.vmem [shape: f32[1,128], index: 2, kind: input, shape index: {}]
  %s3 = inlined_call_operand.vmem [shape: f32[34,128], index: 3, kind: input, shape index: {}]
  %s4 = inlined_call_operand.vmem [shape: f32[34,128], index: 4, kind: output, shape index: {}]
  %s5 = sld [smem:[#allocation0]]
  $region26: #{vit_forward.17} parent=0
    _
  %s7 = ssub.s32 1, %s5
  %s8 = scalar_select 0, %s7, %s5
  // Predicated region
  $region2: #{vit_forward.17} parent=0 // pred_check
    _
  $region3: #{vit_forward.17} parent=0 // pred_check_branch
    %10 = sbr.rel (0) target = $region5
  $region4: #{vit_forward.17} parent=0 // pred_region
    _
  $region5: #{vit_forward.17} parent=0 // pred_fallthru
    _
  // Predicated region
  $region6: #{vit_forward.17} parent=0 // pred_check
    _
  $region7: #{vit_forward.17} parent=0 // pred_check_branch
    %12 = sbr.rel (0) target = $region9
  $region8: #{vit_forward.17} parent=0 // pred_region
    _
  $region9: #{vit_forward.17} parent=0 // pred_fallthru
    _
  // Predicated region
  $region10: #{vit_forward.17} parent=0 // pred_check
    _
  $region11: #{vit_forward.17} parent=0 // pred_check_branch
    %14 = sbr.rel (0) target = $region13
  $region12: #{vit_forward.17} parent=0 // pred_region
    _
  $region13: #{vit_forward.17} parent=0 // pred_fallthru
    _
  // Predicated region
  $region14: #{vit_forward.17} parent=0 // pred_check
    _
  $region15: #{vit_forward.17} parent=0 // pred_check_branch
    %16 = sbr.rel (0) target = $region17
  $region16: #{vit_forward.17} parent=0 // pred_region
    _
  $region17: #{vit_forward.17} parent=0 // pred_fallthru
    _
  %v17 = vld [vmem:[%s0] sm:$0xff]
  %v18 = vld [vmem:[%s0 + $0x8] sm:$0xff]
  %v19 = vld [vmem:[%s0 + $0x10] sm:$0xff]
  %v20 = vld [vmem:[%s0 + $0x18] sm:$0xff]
  %v21 = vld [vmem:[%s0 + $0x20] sm:$0x3]
  %v22 = vld [vmem:[%s1] sm:$0xff]
  %v23 = vld [vmem:[%s1 + $0x8] sm:$0xff]
  %v24 = vld [vmem:[%s1 + $0x10] sm:$0xff]
  %v25 = vld [vmem:[%s1 + $0x18] sm:$0xff]
  %v26 = vld [vmem:[%s1 + $0x20] sm:$0xff]
  %v27 = vld [vmem:[%s1 + $0x28] sm:$0xff]
  %v28 = vld [vmem:[%s1 + $0x30] sm:$0xff]
  %v29 = vld [vmem:[%s1 + $0x38] sm:$0xff]
  %v30 = vld [vmem:[%s1 + $0x40] sm:$0xff]
  %v31 = vld [vmem:[%s1 + $0x48] sm:$0xff]
  %v32 = vld [vmem:[%s1 + $0x50] sm:$0xff]
  %v33 = vld [vmem:[%s1 + $0x58] sm:$0xff]
  %v34 = vld [vmem:[%s1 + $0x60] sm:$0xff]
  %v35 = vld [vmem:[%s1 + $0x68] sm:$0xff]
  %v36 = vld [vmem:[%s1 + $0x70] sm:$0xff]
  %v37 = vld [vmem:[%s1 + $0x78] sm:$0xff]
  %v38 = vld [vmem:[%s2] sm:$0x1]
  %v40 = vlaneseq
  %v41 = vshrl.u32 %v40, 7
  %v42 = vsub.s32 0, %v41
  %v43 = vrot.slane %v38, %v42
  %45 = vmatprep.subr.mxu0 0.0
  %46 = vmatpush1.msra.mxu0 %v22
  %47 = vmatprep.subr.mxu0 0.0
  %48 = vmatpush1.msra.mxu0 %v23
  %49 = vmatprep.subr.mxu0 0.0
  %50 = vmatpush1.msra.mxu0 %v24
  %51 = vmatprep.subr.mxu0 0.0
  %52 = vmatpush1.msra.mxu0 %v25
  %53 = vmatprep.subr.mxu0 0.0
  %54 = vmatpush1.msra.mxu0 %v26
  %55 = vmatprep.subr.mxu0 0.0
  %56 = vmatpush1.msra.mxu0 %v27
  %57 = vmatprep.subr.mxu0 0.0
  %58 = vmatpush1.msra.mxu0 %v28
  %59 = vmatprep.subr.mxu0 0.0
  %60 = vmatpush1.msra.mxu0 %v29
  %61 = vmatprep.subr.mxu0 0.0
  %62 = vmatpush1.msra.mxu0 %v30
  %63 = vmatprep.subr.mxu0 0.0
  %64 = vmatpush1.msra.mxu0 %v31
  %65 = vmatprep.subr.mxu0 0.0
  %66 = vmatpush1.msra.mxu0 %v32
  %67 = vmatprep.subr.mxu0 0.0
  %68 = vmatpush1.msra.mxu0 %v33
  %69 = vmatprep.subr.mxu0 0.0
  %70 = vmatpush1.msra.mxu0 %v34
  %71 = vmatprep.subr.mxu0 0.0
  %72 = vmatpush1.msra.mxu0 %v35
  %73 = vmatprep.subr.mxu0 0.0
  %74 = vmatpush1.msra.mxu0 %v36
  %75 = vmatprep.subr.mxu0 0.0
  %76 = vmatpush1.msra.mxu0 %v37
  %77 = vmatprep.subr.mxu0 0.0
  %78 = vmatpush1.msra.mxu0 0.0
  %79 = vmatprep.subr.mxu0 0.0
  %80 = vmatpush1.msra.mxu0 0.0
  %81 = vmatprep.subr.mxu0 0.0
  %82 = vmatpush1.msra.mxu0 0.0
  %83 = vmatprep.subr.mxu0 0.0
  %84 = vmatpush1.msra.mxu0 0.0
  %85 = vmatprep.subr.mxu0 0.0
  %86 = vmatpush1.msra.mxu0 0.0
  %87 = vmatprep.subr.mxu0 0.0
  %88 = vmatpush1.msra.mxu0 0.0
  %89 = vmatprep.subr.mxu0 0.0
  %90 = vmatpush1.msra.mxu0 0.0
  %91 = vmatprep.subr.mxu0 0.0
  %92 = vmatpush1.msra.mxu0 0.0
  %93 = vmatprep.subr.mxu0 0.0
  %94 = vmatpush1.msra.mxu0 0.0
  %95 = vmatprep.subr.mxu0 0.0
  %96 = vmatpush1.msra.mxu0 0.0
  %97 = vmatprep.subr.mxu0 0.0
  %98 = vmatpush1.msra.mxu0 0.0
  %99 = vmatprep.subr.mxu0 0.0
  %100 = vmatpush1.msra.mxu0 0.0
  %101 = vmatprep.subr.mxu0 0.0
  %102 = vmatpush1.msra.mxu0 0.0
  %103 = vmatprep.subr.mxu0 0.0
  %104 = vmatpush1.msra.mxu0 0.0
  %105 = vmatprep.subr.mxu0 0.0
  %106 = vmatpush1.msra.mxu0 0.0
  %107 = vmatprep.subr.mxu0 0.0
  %108 = vmatpush1.msra.mxu0 0.0
  %109 = vmatprep.mubr.f32.mxu0 0.0
  %110 = vmatmul.mubr.f32.gmra.mrb[0].mxu0 %v17
  %v111 = vpop.f32.mrb[0].mxu0
  %v112 = vadd.f32 %v43, %v111
  %v113 = vpop.f32.mrb[0].mxu0
  %114 = vmatprep.mubr.f32.mxu0 0.0
  %115 = vmatmul.mubr.f32.gmra.mrb[0].mxu0 %v18
  %v116 = vpop.f32.mrb[0].mxu0
  %v117 = vadd.f32 %v43, %v116
  %v118 = vpop.f32.mrb[0].mxu0
  %119 = vmatprep.mubr.f32.mxu0 0.0
  %120 = vmatmul.mubr.f32.gmra.mrb[0].mxu0 %v19
  %v121 = vpop.f32.mrb[0].mxu0
  %v122 = vadd.f32 %v43, %v121
  %v123 = vpop.f32.mrb[0].mxu0
  %124 = vmatprep.mubr.f32.mxu0 0.0
  %125 = vmatmul.mubr.f32.gmra.mrb[0].mxu0 %v20
  %v126 = vpop.f32.mrb[0].mxu0
  %v127 = vadd.f32 %v43, %v126
  %v128 = vpop.f32.mrb[0].mxu0
  %129 = vmatprep.mubr.f32.mxu0 0.0
  %130 = vmatmul.mubr.f32.gmra.mrb[0].mxu0 %v21
  %v131 = vpop.f32.mrb[0].mxu0
  %v132 = vadd.f32 %v43, %v131
  %v133 = vpop.f32.mrb[0].mxu0
  %134 = vdwg.mxu0
  %v135 = vld [vmem:[%s3] sm:$0xff]
  %v136 = vld [vmem:[%s3 + $0x8] sm:$0xff]
  %v137 = vld [vmem:[%s3 + $0x10] sm:$0xff]
  %v138 = vld [vmem:[%s3 + $0x18] sm:$0xff]
  %v139 = vld [vmem:[%s3 + $0x20] sm:$0x3]
  %v140 = vadd.f32 %v112, %v135
  %v141 = vadd.f32 %v117, %v136
  %v142 = vadd.f32 %v122, %v137
  %v143 = vadd.f32 %v127, %v138
  %v144 = vadd.f32 %v132, %v139
  %145 = vst [vmem:[%s4] sm:$0xff] %v140
  %146 = vst [vmem:[%s4 + $0x8] sm:$0xff] %v141
  %147 = vst [vmem:[%s4 + $0x10] sm:$0xff] %v142
  %148 = vst [vmem:[%s4 + $0x18] sm:$0xff] %v143
  %149 = vst [vmem:[%s4 + $0x20] sm:$0x3] %v144
  // Predicated region
  $region18: #{vit_forward.17} parent=0 // pred_check
    _
  $region19: #{vit_forward.17} parent=0 // pred_check_branch
    %151 = sbr.rel (0) target = $region21
  $region20: #{vit_forward.17} parent=0 // pred_region
    _
  $region21: #{vit_forward.17} parent=0 // pred_fallthru
    _
  // Predicated region
  $region22: #{vit_forward.17} parent=0 // pred_check
    _
  $region23: #{vit_forward.17} parent=0 // pred_check_branch
    %153 = sbr.rel (0) target = $region25
  $region24: #{vit_forward.17} parent=0 // pred_region
    _
  $region25: #{vit_forward.17} parent=0 // pred_fallthru
    _

// kernel: vit_forward.23
$region0: #{vit_forward.23}
  #allocation0 [shape = 'u32[]', space=smem, size = 0x4, offset = 0x4, fixed_abs, tag = 'smem constant byte address 0x4 - core index']
  #allocation1 [shape = 'u32[144,128]{1,0:T(1,128)}', space=vmem, size = 0x12000, scoped, tag = 'internal scratch']
  %s0 = inlined_call_operand.vmem [shape: f32[2,128], index: 0, kind: input, shape index: {}]
  %s1 = inlined_call_operand.vmem [shape: f32[1,128], index: 1, kind: input, shape index: {}]
  %s2 = inlined_call_operand.vmem [shape: f32[1,128], index: 2, kind: input, shape index: {}]
  %s3 = inlined_call_operand.vmem [shape: f32[128,128], index: 3, kind: input, shape index: {}]
  %s4 = inlined_call_operand.vmem [shape: f32[128,128], index: 4, kind: input, shape index: {}]
  %s5 = inlined_call_operand.hbm [shape: f32[2,128], index: 5, kind: output, shape index: {}]
  %s6 = sld [smem:[#allocation0]]
  $region30: #{vit_forward.23} parent=0
    _
  %s8 = ssub.s32 1, %s6
  %s9 = scalar_select 0, %s8, %s6
  $region1: #{vit_forward.23} parent=0
    #allocation2 [shape = 'u8[1024]{0}', space=vmem, size = 0x400, scoped, tag = 'output window, operand 0, single buffered']
    #allocation3 [shape = 's32[1]{0}', space=sflag, size = 0x4, scoped, tag = 'scoped memory for vit_forward.23']
    %10 = vsyncpa [#allocation3], 0
    // Predicated region
    $region2: #{vit_forward.23} parent=1 // pred_check
      _
    $region3: #{vit_forward.23} parent=1 // pred_check_branch
      %12 = sbr.rel (0) target = $region5
    $region4: #{vit_forward.23} parent=1 // pred_region
      _
    $region5: #{vit_forward.23} parent=1 // pred_fallthru
      _
    // Predicated region
    $region6: #{vit_forward.23} parent=1 // pred_check
      _
    $region7: #{vit_forward.23} parent=1 // pred_check_branch
      %14 = sbr.rel (0) target = $region9
    $region8: #{vit_forward.23} parent=1 // pred_region
      _
    $region9: #{vit_forward.23} parent=1 // pred_fallthru
      _
    // Predicated region
    $region10: #{vit_forward.23} parent=1 // pred_check
      _
    $region11: #{vit_forward.23} parent=1 // pred_check_branch
      %16 = sbr.rel (0) target = $region13
    $region12: #{vit_forward.23} parent=1 // pred_region
      _
    $region13: #{vit_forward.23} parent=1 // pred_fallthru
      _
    // Predicated region
    $region14: #{vit_forward.23} parent=1 // pred_check
      _
    $region15: #{vit_forward.23} parent=1 // pred_check_branch
      %18 = sbr.rel (0) target = $region17
    $region16: #{vit_forward.23} parent=1 // pred_region
      _
    $region17: #{vit_forward.23} parent=1 // pred_fallthru
      _
    // Predicated region
    $region18: #{vit_forward.23} parent=1 // pred_check
      _
    $region19: #{vit_forward.23} parent=1 // pred_check_branch
      %20 = sbr.rel (0) target = $region21
    $region20: #{vit_forward.23} parent=1 // pred_region
      _
    $region21: #{vit_forward.23} parent=1 // pred_fallthru
      _
    %v21 = vld [vmem:[%s0] sm:$0x3]
    %vm22 = vcmask 1041408
    %v23 = vsel %vm22, %v21, 0.0
    %24 = vadd.xlane.f32.xlu0 %v23
    %v25 = vpop.xlane.xlu0 %24
    %v26 = vmul.f32 %v25, 0.03125
    %v27 = vmul.f32 %v21, %v21
    %v28 = vsel %vm22, %v27, 0.0
    %29 = vadd.xlane.f32.xlu0 %v28
    %v30 = vpop.xlane.xlu0 %29
    %v31 = vmul.f32 %v30, 0.03125
    %v32 = vmul.f32 %v26, %v26
    %v33 = vsub.f32 %v31, %v32
    %v34 = vsub.f32 %v21, %v26
    %v35 = vadd.f32 %v33, 1e-05
    %v36 = vrsqrt.pop %v35
    %v37 = vmul.f32 %v34, %v36
    %v38 = vld [vmem:[%s1] sm:$0x1]
    %v40 = vlaneseq
    %v41 = vshrl.u32 %v40, 7
    %v42 = vsub.s32 0, %v41
    %v43 = vrot.slane %v38, %v42
    %v45 = vmul.f32 %v37, %v43
    %v46 = vld [vmem:[%s2] sm:$0x1]
    %v48 = vlaneseq
    %v49 = vshrl.u32 %v48, 7
    %v50 = vsub.s32 0, %v49
    %v51 = vrot.slane %v46, %v50
    %v53 = vadd.f32 %v45, %v51
    %v54 = vld [vmem:[%s3] sm:$0xff]
    %v55 = vld [vmem:[%s3 + $0x8] sm:$0xff]
    %v56 = vld [vmem:[%s3 + $0x10] sm:$0xff]
    %v57 = vld [vmem:[%s3 + $0x18] sm:$0xff]
    %v58 = vld [vmem:[%s3 + $0x20] sm:$0xff]
    %v59 = vld [vmem:[%s3 + $0x28] sm:$0xff]
    %v60 = vld [vmem:[%s3 + $0x30] sm:$0xff]
    %v61 = vld [vmem:[%s3 + $0x38] sm:$0xff]
    %v62 = vld [vmem:[%s3 + $0x40] sm:$0xff]
    %v63 = vld [vmem:[%s3 + $0x48] sm:$0xff]
    %v64 = vld [vmem:[%s3 + $0x50] sm:$0xff]
    %v65 = vld [vmem:[%s3 + $0x58] sm:$0xff]
    %v66 = vld [vmem:[%s3 + $0x60] sm:$0xff]
    %v67 = vld [vmem:[%s3 + $0x68] sm:$0xff]
    %v68 = vld [vmem:[%s3 + $0x70] sm:$0xff]
    %v69 = vld [vmem:[%s3 + $0x78] sm:$0xff]
    %70 = vmatprep.subr.mxu0 0.0
    %71 = vmatpush1.msra.mxu0 %v54
    %72 = vmatprep.subr.mxu0 0.0
    %73 = vmatpush1.msra.mxu0 %v55
    %74 = vmatprep.subr.mxu0 0.0
    %75 = vmatpush1.msra.mxu0 %v56
    %76 = vmatprep.subr.mxu0 0.0
    %77 = vmatpush1.msra.mxu0 %v57
    %78 = vmatprep.subr.mxu0 0.0
    %79 = vmatpush1.msra.mxu0 %v58
    %80 = vmatprep.subr.mxu0 0.0
    %81 = vmatpush1.msra.mxu0 %v59
    %82 = vmatprep.subr.mxu0 0.0
    %83 = vmatpush1.msra.mxu0 %v60
    %84 = vmatprep.subr.mxu0 0.0
    %85 = vmatpush1.msra.mxu0 %v61
    %86 = vmatprep.subr.mxu0 0.0
    %87 = vmatpush1.msra.mxu0 %v62
    %88 = vmatprep.subr.mxu0 0.0
    %89 = vmatpush1.msra.mxu0 %v63
    %90 = vmatprep.subr.mxu0 0.0
    %91 = vmatpush1.msra.mxu0 %v64
    %92 = vmatprep.subr.mxu0 0.0
    %93 = vmatpush1.msra.mxu0 %v65
    %94 = vmatprep.subr.mxu0 0.0
    %95 = vmatpush1.msra.mxu0 %v66
    %96 = vmatprep.subr.mxu0 0.0
    %97 = vmatpush1.msra.mxu0 %v67
    %98 = vmatprep.subr.mxu0 0.0
    %99 = vmatpush1.msra.mxu0 %v68
    %100 = vmatprep.subr.mxu0 0.0
    %101 = vmatpush1.msra.mxu0 %v69
    %102 = vmatprep.subr.mxu0 0.0
    %103 = vmatpush1.msra.mxu0 0.0
    %104 = vmatprep.subr.mxu0 0.0
    %105 = vmatpush1.msra.mxu0 0.0
    %106 = vmatprep.subr.mxu0 0.0
    %107 = vmatpush1.msra.mxu0 0.0
    %108 = vmatprep.subr.mxu0 0.0
    %109 = vmatpush1.msra.mxu0 0.0
    %110 = vmatprep.subr.mxu0 0.0
    %111 = vmatpush1.msra.mxu0 0.0
    %112 = vmatprep.subr.mxu0 0.0
    %113 = vmatpush1.msra.mxu0 0.0
    %114 = vmatprep.subr.mxu0 0.0
    %115 = vmatpush1.msra.mxu0 0.0
    %116 = vmatprep.subr.mxu0 0.0
    %117 = vmatpush1.msra.mxu0 0.0
    %118 = vmatprep.subr.mxu0 0.0
    %119 = vmatpush1.msra.mxu0 0.0
    %120 = vmatprep.subr.mxu0 0.0
    %121 = vmatpush1.msra.mxu0 0.0
    %122 = vmatprep.subr.mxu0 0.0
    %123 = vmatpush1.msra.mxu0 0.0
    %124 = vmatprep.subr.mxu0 0.0
    %125 = vmatpush1.msra.mxu0 0.0
    %126 = vmatprep.subr.mxu0 0.0
    %127 = vmatpush1.msra.mxu0 0.0
    %128 = vmatprep.subr.mxu0 0.0
    %129 = vmatpush1.msra.mxu0 0.0
    %130 = vmatprep.subr.mxu0 0.0
    %131 = vmatpush1.msra.mxu0 0.0
    %132 = vmatprep.subr.mxu0 0.0
    %133 = vmatpush1.msra.mxu0 0.0
    %134 = vmatprep.mubr.f32.mxu0 0.0
    %135 = vmatmul.mubr.f32.gmra.mrb[0].mxu0 %v53
    %v136 = vpop.f32.mrb[0].mxu0
    %v137 = vadd.f32 0.0, %v136
    %v138 = vpop.f32.mrb[0].mxu0
    %139 = vdwg.mxu0
    %v140 = vmax.f32 %v137, 0.0
    %v141 = vld [vmem:[%s4] sm:$0xff]
    %v142 = vld [vmem:[%s4 + $0x8] sm:$0xff]
    %v143 = vld [vmem:[%s4 + $0x10] sm:$0xff]
    %v144 = vld [vmem:[%s4 + $0x18] sm:$0xff]
    %v145 = vld [vmem:[%s4 + $0x20] sm:$0xff]
    %v146 = vld [vmem:[%s4 + $0x28] sm:$0xff]
    %v147 = vld [vmem:[%s4 + $0x30] sm:$0xff]
    %v148 = vld [vmem:[%s4 + $0x38] sm:$0xff]
    %v149 = vld [vmem:[%s4 + $0x40] sm:$0xff]
    %v150 = vld [vmem:[%s4 + $0x48] sm:$0xff]
    %v151 = vld [vmem:[%s4 + $0x50] sm:$0xff]
    %v152 = vld [vmem:[%s4 + $0x58] sm:$0xff]
    %v153 = vld [vmem:[%s4 + $0x60] sm:$0xff]
    %v154 = vld [vmem:[%s4 + $0x68] sm:$0xff]
    %v155 = vld [vmem:[%s4 + $0x70] sm:$0xff]
    %v156 = vld [vmem:[%s4 + $0x78] sm:$0xff]
    %157 = vmatprep.subr.mxu0 0.0
    %158 = vmatpush1.msra.mxu0 %v141
    %159 = vmatprep.subr.mxu0 0.0
    %160 = vmatpush1.msra.mxu0 %v142
    %161 = vmatprep.subr.mxu0 0.0
    %162 = vmatpush1.msra.mxu0 %v143
    %163 = vmatprep.subr.mxu0 0.0
    %164 = vmatpush1.msra.mxu0 %v144
    %165 = vmatprep.subr.mxu0 0.0
    %166 = vmatpush1.msra.mxu0 %v145
    %167 = vmatprep.subr.mxu0 0.0
    %168 = vmatpush1.msra.mxu0 %v146
    %169 = vmatprep.subr.mxu0 0.0
    %170 = vmatpush1.msra.mxu0 %v147
    %171 = vmatprep.subr.mxu0 0.0
    %172 = vmatpush1.msra.mxu0 %v148
    %173 = vmatprep.subr.mxu0 0.0
    %174 = vmatpush1.msra.mxu0 %v149
    %175 = vmatprep.subr.mxu0 0.0
    %176 = vmatpush1.msra.mxu0 %v150
    %177 = vmatprep.subr.mxu0 0.0
    %178 = vmatpush1.msra.mxu0 %v151
    %179 = vmatprep.subr.mxu0 0.0
    %180 = vmatpush1.msra.mxu0 %v152
    %181 = vmatprep.subr.mxu0 0.0
    %182 = vmatpush1.msra.mxu0 %v153
    %183 = vmatprep.subr.mxu0 0.0
    %184 = vmatpush1.msra.mxu0 %v154
    %185 = vmatprep.subr.mxu0 0.0
    %186 = vmatpush1.msra.mxu0 %v155
    %187 = vmatprep.subr.mxu0 0.0
    %188 = vmatpush1.msra.mxu0 %v156
    %189 = vmatprep.subr.mxu0 0.0
    %190 = vmatpush1.msra.mxu0 0.0
    %191 = vmatprep.subr.mxu0 0.0
    %192 = vmatpush1.msra.mxu0 0.0
    %193 = vmatprep.subr.mxu0 0.0
    %194 = vmatpush1.msra.mxu0 0.0
    %195 = vmatprep.subr.mxu0 0.0
    %196 = vmatpush1.msra.mxu0 0.0
    %197 = vmatprep.subr.mxu0 0.0
    %198 = vmatpush1.msra.mxu0 0.0
    %199 = vmatprep.subr.mxu0 0.0
    %200 = vmatpush1.msra.mxu0 0.0
    %201 = vmatprep.subr.mxu0 0.0
    %202 = vmatpush1.msra.mxu0 0.0
    %203 = vmatprep.subr.mxu0 0.0
    %204 = vmatpush1.msra.mxu0 0.0
    %205 = vmatprep.subr.mxu0 0.0
    %206 = vmatpush1.msra.mxu0 0.0
    %207 = vmatprep.subr.mxu0 0.0
    %208 = vmatpush1.msra.mxu0 0.0
    %209 = vmatprep.subr.mxu0 0.0
    %210 = vmatpush1.msra.mxu0 0.0
    %211 = vmatprep.subr.mxu0 0.0
    %212 = vmatpush1.msra.mxu0 0.0
    %213 = vmatprep.subr.mxu0 0.0
    %214 = vmatpush1.msra.mxu0 0.0
    %215 = vmatprep.subr.mxu0 0.0
    %216 = vmatpush1.msra.mxu0 0.0
    %217 = vmatprep.subr.mxu0 0.0
    %218 = vmatpush1.msra.mxu0 0.0
    %219 = vmatprep.subr.mxu0 0.0
    %220 = vmatpush1.msra.mxu0 0.0
    %221 = vmatprep.mubr.f32.mxu0 0.0
    %222 = vmatmul.mubr.f32.gmra.mrb[0].mxu0 %v140
    %v223 = vpop.f32.mrb[0].mxu0
    %v224 = vadd.f32 0.0, %v223
    %v225 = vpop.f32.mrb[0].mxu0
    %226 = vdwg.mxu0
    %227 = vst [vmem:[#allocation2] sm:$0x3] %v224
    // Predicated region
    $region22: #{vit_forward.23} parent=1 // pred_check
      _
    $region23: #{vit_forward.23} parent=1 // pred_check_branch
      %229 = sbr.rel (0) target = $region25
    $region24: #{vit_forward.23} parent=1 // pred_region
      %s231 = ssub.s32 32, 32
      %232 = vsyncadd [#allocation3], %s231
      %s234 = sshll.u32 [#allocation2], 4
      %s235 = int_to_ptr.vmem [resolvable:$true] %s234
      %237 = dma.vmem_to_hbm [thread:$0]  %s235, 32, %s5, [#allocation3]
    $region25: #{vit_forward.23} parent=1 // pred_fallthru
      _
    // Predicated region
    $region26: #{vit_forward.23} parent=1 // pred_check
      _
    $region27: #{vit_forward.23} parent=1 // pred_check_branch
      %239 = sbr.rel (0) target = $region29
    $region28: #{vit_forward.23} parent=1 // pred_region
      %240 = dma.done [#allocation3], 32
    $region29: #{vit_forward.23} parent=1 // pred_fallthru
      _
    %241 = vsyncpa [#allocation3], 1

</llo_original>
